<compile_context>
chip_gen: v6e
topology: v6e:2x2x1
jax: 0.10.0
libtpu: 0.0.40
codegen_flags: <defaults>
</compile_context>

<pallas_src>
import functools

import jax
import jax.numpy as jnp
from jax.experimental import pallas as pl
from jax.experimental.pallas import tpu as pltpu

BN_EPS = 1e-5


# ---------------------------------------------------------------------------
# Generation-aware sizing & feature probes
# ---------------------------------------------------------------------------
@functools.lru_cache(maxsize=None)
def _vmem_budget_bytes():
    """~75% of this generation's physical VMEM (v5e/v6e: 96 MiB, v7x: 48 MiB)."""
    try:
        cap = int(pltpu.get_tpu_info().vmem_capacity_bytes)
    except Exception:
        cap = 64 * 1024 * 1024          # conservative fallback, safe on all gens
    return (cap * 3) // 4


def _probe_copy_kernel(x_ref, o_ref):
    o_ref[...] = x_ref[...] + 1.0


@functools.lru_cache(maxsize=None)
def _buffered1_ok():
    """True iff single-buffering grid-invariant inputs (pl.Buffered(1)) works."""
    try:
        spec = pl.BlockSpec((8, 128), lambda i: (0, 0),
                            pipeline_mode=pl.Buffered(1))
        out = pl.pallas_call(
            _probe_copy_kernel,
            grid=(2,),
            in_specs=[spec],
            out_specs=pl.BlockSpec((8, 128), lambda i: (i, 0)),
            out_shape=jax.ShapeDtypeStruct((16, 128), jnp.float32),
        )(jnp.zeros((8, 128), jnp.float32))
        return bool(jnp.all(out == 1.0))
    except Exception:
        return False


def _const_spec(block_shape, index_map):
    """BlockSpec for a grid-invariant operand; single-buffered when supported."""
    if _buffered1_ok():
        return pl.BlockSpec(block_shape, index_map, pipeline_mode=pl.Buffered(1))
    return pl.BlockSpec(block_shape, index_map)


def _pick_tile_h(hh, wh, cin, cmid, cout, budget):
    """Largest divisor of hh whose per-grid-step VMEM footprint fits the budget."""
    wbytes = 2 * 9 * (cin * cmid + cmid * cout)                # bf16 weight slabs

    def per_step(th):
        # stage 1: bf16 centre+halo raw-input blocks (double buffered), pooled
        # f32 tile, bf16 im2col slab, f32 matmul partials, bf16 y1 out (dbl).
        s1 = (2 * (2 * th + 4) * wh * 2 * cin * 2
              + (th + 2) * wh * cin * 4
              + th * wh * 3 * cin * 2
              + 3 * th * wh * cmid * 4
              + 2 * th * wh * cmid * 2)
        # stage 2: bf16 y1 centre+halo (dbl), f32 BN'd tile, bf16 im2col slab,
        # f32 partials, bf16 y2 out (dbl).
        s2 = (2 * (th + 2) * wh * cmid * 2
              + (th + 2) * wh * cmid * 4
              + th * wh * 3 * cmid * 2
              + 3 * th * wh * cout * 4
              + 2 * th * wh * cout * 2)
        return wbytes + max(s1, s2)

    best = 1
    for th in range(1, min(hh, 256) + 1):
        if hh % th == 0 and per_step(th) <= (budget * 3) // 5:
            best = th
    return best


def _pick_h3(hh, wh, cout, budget):
    """Stage-3 row block: a multiple of 8 dividing hh (or hh itself)."""
    if hh % 8 != 0:
        return hh
    h3 = 8
    while (h3 * 2 <= min(hh, 32) and hh % (h3 * 2) == 0
           and (h3 * 2) * wh * cout * (2 * 2 + 2 * 4) <= budget // 8):
        h3 *= 2
    return h3


# ---------------------------------------------------------------------------
# In-kernel helpers
# ---------------------------------------------------------------------------
def _partial_stats(y):
    """Per-channel partial sums for BatchNorm: (th, Wh, C) f32 -> (2, C)."""
    y2d = y.reshape(-1, y.shape[-1])
    s = jnp.sum(y2d, axis=0, keepdims=True)
    ss = jnp.sum(y2d * y2d, axis=0, keepdims=True)
    return jnp.concatenate([s, ss], axis=0)


def _conv3x3_circular(a_ext, tile_h, w_ref):
    """3x3 circular conv of an f32 activation tile via 3 accumulated matmuls.

    a_ext: (tile_h+2, Wh, C) f32 with one circular halo row each side.
    w_ref: (3, 3*C, Co) bf16 Ref; leading axis is dx, rows ordered (dy, c).

    Only the dy taps are gathered into the im2col slab (K = 3*C, built from
    static row slices -> no input rolls, 3-way lane concat instead of 9-way);
    the dx taps become +/-1 W-rolls of the two off-centre OUTPUT partials
    (2 XLU rolls of (th, Wh, Co)), keeping the vector-extended slot free for
    the MXU pushes.  bf16 operands, f32 accumulation.
    """
    wh = a_ext.shape[1]
    a3 = jnp.concatenate([a_ext[dy:dy + tile_h] for dy in range(3)], axis=-1)
    a3 = a3.reshape(tile_h * wh, -1).astype(jnp.bfloat16)      # (th*Wh, 3*C)
    co = w_ref.shape[-1]
    p0 = jnp.dot(a3, w_ref[0], preferred_element_type=jnp.float32)
    p1 = jnp.dot(a3, w_ref[1], preferred_element_type=jnp.float32)
    p2 = jnp.dot(a3, w_ref[2], preferred_element_type=jnp.float32)
    p0 = p0.reshape(tile_h, wh, co)
    p1 = p1.reshape(tile_h, wh, co)
    p2 = p2.reshape(tile_h, wh, co)
    return jnp.roll(p0, 1, axis=1) + p1 + jnp.roll(p2, -1, axis=1)


# ---------------------------------------------------------------------------
# Kernels
# ---------------------------------------------------------------------------
def _pool_conv1_kernel(tile_h, cin,
                       xc_ref, xt_ref, xb_ref, w1_ref, y1_ref, st_ref):
    # xc: (1, 2*tile_h, Wh, 2*Cin) bf16 centre raw rows (adjacent W columns
    #     paired on the lane axis); xt/xb: (1, 2, Wh, 2*Cin) circular halo pair.
    def pool(blk):                                    # 2x2 max pool, f32 math (v5e-safe)
        blk = blk.astype(jnp.float32)
        cm = jnp.maximum(blk[..., :cin], blk[..., cin:])        # W pair: lane slices
        cm = cm.reshape(cm.shape[0] // 2, 2, cm.shape[1], cin)  # H pair: leading reshape
        return jnp.maximum(cm[:, 0], cm[:, 1])

    # Pool each block BEFORE concatenating -> the sublane concat moves 4x less data.
    p_ext = jnp.concatenate([pool(xt_ref[0]), pool(xc_ref[0]), pool(xb_ref[0])],
                            axis=0)                   # (tile_h+2, Wh, Cin) f32
    y = _conv3x3_circular(p_ext, tile_h, w1_ref)      # (tile_h, Wh, Cmid) f32
    y1_ref[...] = y.astype(jnp.bfloat16)              # bf16 intermediate: half the HBM
    st_ref[0, 0] = _partial_stats(y)                  # BN1 partial sums (f32)


def _bn_conv2_kernel(tile_h,
                     yc_ref, yt_ref, yb_ref, s_ref, b_ref, w2_ref,
                     y2_ref, st_ref):
    # yc: (tile_h, Wh, Cmid) bf16 pre-BN conv1 output; yt/yb circular halo rows.
    y_ext = jnp.concatenate([yt_ref[...], yc_ref[...], yb_ref[...]],
                            axis=0).astype(jnp.float32)
    scale = s_ref[...].reshape(1, 1, -1)              # fused BN scale/shift, f32 VPU
    shift = b_ref[...].reshape(1, 1, -1)
    a_ext = jnp.maximum(y_ext * scale + shift, 0.0)   # BN1 apply + ReLU
    y = _conv3x3_circular(a_ext, tile_h, w2_ref)
    y2_ref[...] = y.astype(jnp.bfloat16)
    st_ref[0, 0] = _partial_stats(y)                  # BN2 partial sums


def _bn_relu_nchw_kernel(h3, y_ref, s_ref, b_ref, o_ref):
    # Fused BN2 + ReLU + NHWC->NCHW: (h3, Wh, Cout) bf16 -> (1, Cout, h3, Wh) f32.
    # Only cheap 2-D minor transposes (XLU); this stage is HBM-bound so they hide.
    act = jnp.maximum(
        y_ref[...].astype(jnp.float32) * s_ref[...].reshape(1, 1, -1)
        + b_ref[...].reshape(1, 1, -1), 0.0)
    for r in range(h3):
        o_ref[0, :, r, :] = act[r].T


def _bn_relu_nhwc_kernel(y_ref, s_ref, b_ref, o_ref):
    # Fallback stage 3 (NHWC output, XLA does the final transpose).
    o_ref[...] = jnp.maximum(
        y_ref[...].astype(jnp.float32) * s_ref[...].reshape(1, 1, -1)
        + b_ref[...].reshape(1, 1, -1), 0.0)


@functools.lru_cache(maxsize=None)
def _fused_nchw_ok(h3, wh, cout):
    """Probe whether the fused BN+ReLU+NCHW stage-3 kernel lowers on this stack."""
    try:
        out = pl.pallas_call(
            functools.partial(_bn_relu_nchw_kernel, h3),
            grid=(1, 1),
            in_specs=[pl.BlockSpec((h3, wh, cout), lambda n, i: (0, 0, 0)),
                      pl.BlockSpec((1, cout), lambda n, i: (0, 0)),
                      pl.BlockSpec((1, cout), lambda n, i: (0, 0))],
            out_specs=pl.BlockSpec((1, cout, h3, wh), lambda n, i: (0, 0, 0, 0)),
            out_shape=jax.ShapeDtypeStruct((1, cout, h3, wh), jnp.float32),
        )(jnp.zeros((h3, wh, cout), jnp.bfloat16),
          jnp.ones((1, cout), jnp.float32),
          jnp.zeros((1, cout), jnp.float32))
        return bool(jnp.all(out == 0.0))
    except Exception:
        return False


# ---------------------------------------------------------------------------
# Wrapper
# ---------------------------------------------------------------------------
def _bn_scale_shift(stats, gamma, beta, count):
    """stats: (N, n_hb, 2, C) partial [sum; sumsq] -> fused per-channel FMA."""
    s = jnp.sum(stats[:, :, 0, :], axis=(0, 1))
    ss = jnp.sum(stats[:, :, 1, :], axis=(0, 1))
    mean = s / count
    var = jnp.maximum(ss / count - mean * mean, 0.0)
    scale = gamma.reshape(-1) * jax.lax.rsqrt(var + BN_EPS)
    shift = beta.reshape(-1) - mean * scale
    return (scale.reshape(1, -1).astype(jnp.float32),
            shift.reshape(1, -1).astype(jnp.float32))


def down_forward(x_nchw, params, *, tile_h=None):
    """x_nchw: (N, Cin, H, W) f32 -> (N, Cout, H//2, W//2) f32."""
    w1, g1, b1, w2, g2, b2 = params
    N, Cin, H, W = x_nchw.shape
    assert H % 2 == 0 and W % 2 == 0
    Hh, Wh = H // 2, W // 2
    Cmid = w1.shape[-1]
    Cout = w2.shape[-1]

    budget = _vmem_budget_bytes()
    if tile_h is None:
        tile_h = _pick_tile_h(Hh, Wh, Cin, Cmid, Cout, budget)
    assert Hh % tile_h == 0
    n_hb = Hh // tile_h

    # Layout glue: channels-last, pair adjacent W columns on the lane axis
    # (free reshape) so the 2x2 pool taps are static lane slices in-kernel.
    # Input stored bf16: max-pool commutes with (monotone) rounding and the
    # matmul operands are bf16 anyway -> numerically identical, half the DMA.
    x = (jnp.transpose(x_nchw, (0, 2, 3, 1))
         .reshape(N, H, Wh, 2 * Cin).astype(jnp.bfloat16))

    # Weight slabs with dx leading; rows ordered (dy, c) to match the im2col slab.
    w1m = jnp.transpose(w1, (1, 0, 2, 3)).reshape(3, 3 * Cin, Cmid).astype(jnp.bfloat16)
    w2m = jnp.transpose(w2, (1, 0, 2, 3)).reshape(3, 3 * Cmid, Cout).astype(jnp.bfloat16)

    cparams = pltpu.CompilerParams(
        dimension_semantics=("parallel", "parallel"),
        vmem_limit_bytes=budget)

    # ---- stage 1: maxpool + conv1 + BN1 partial stats ------------------------
    y1_pre, st1 = pl.pallas_call(
        functools.partial(_pool_conv1_kernel, tile_h, Cin),
        grid=(N, n_hb),
        in_specs=[
            pl.BlockSpec((1, 2 * tile_h, Wh, 2 * Cin),
                         lambda n, i: (n, i, 0, 0)),
            pl.BlockSpec((1, 2, Wh, 2 * Cin),
                         lambda n, i: (n, (i * tile_h - 1) % Hh, 0, 0)),
            pl.BlockSpec((1, 2, Wh, 2 * Cin),
                         lambda n, i: (n, ((i + 1) * tile_h) % Hh, 0, 0)),
            _const_spec((3, 3 * Cin, Cmid), lambda n, i: (0, 0, 0)),
        ],
        out_specs=(
            pl.BlockSpec((tile_h, Wh, Cmid), lambda n, i: (n * n_hb + i, 0, 0)),
            pl.BlockSpec((1, 1, 2, Cmid), lambda n, i: (n, i, 0, 0)),
        ),
        out_shape=(
            jax.ShapeDtypeStruct((N * Hh, Wh, Cmid), jnp.bfloat16),
            jax.ShapeDtypeStruct((N, n_hb, 2, Cmid), jnp.float32),
        ),
        compiler_params=cparams,
        cost_estimate=pl.CostEstimate(
            flops=2 * N * Hh * Wh * 9 * Cin * Cmid,
            transcendentals=0,
            bytes_accessed=(2 * N * W * Cin * (H + 4 * n_hb)   # bf16 input + halos
                            + 2 * 9 * Cin * Cmid               # bf16 weights
                            + 2 * N * Hh * Wh * Cmid           # bf16 y1
                            + 4 * N * n_hb * 2 * Cmid)),       # f32 stats
    )(x, x, x, w1m)

    count = float(N * Hh * Wh)
    s1, h1 = _bn_scale_shift(st1, g1, b1, count)

    # ---- stage 2: BN1 apply + ReLU + conv2 + BN2 partial stats ---------------
    y2_pre, st2 = pl.pallas_call(
        functools.partial(_bn_conv2_kernel, tile_h),
        grid=(N, n_hb),
        in_specs=[
            pl.BlockSpec((tile_h, Wh, Cmid), lambda n, i: (n * n_hb + i, 0, 0)),
            pl.BlockSpec((1, Wh, Cmid),
                         lambda n, i: (n * Hh + (i * tile_h - 1) % Hh, 0, 0)),
            pl.BlockSpec((1, Wh, Cmid),
                         lambda n, i: (n * Hh + ((i + 1) * tile_h) % Hh, 0, 0)),
            _const_spec((1, Cmid), lambda n, i: (0, 0)),
            _const_spec((1, Cmid), lambda n, i: (0, 0)),
            _const_spec((3, 3 * Cmid, Cout), lambda n, i: (0, 0, 0)),
        ],
        out_specs=(
            pl.BlockSpec((tile_h, Wh, Cout), lambda n, i: (n * n_hb + i, 0, 0)),
            pl.BlockSpec((1, 1, 2, Cout), lambda n, i: (n, i, 0, 0)),
        ),
        out_shape=(
            jax.ShapeDtypeStruct((N * Hh, Wh, Cout), jnp.bfloat16),
            jax.ShapeDtypeStruct((N, n_hb, 2, Cout), jnp.float32),
        ),
        compiler_params=cparams,
        cost_estimate=pl.CostEstimate(
            flops=2 * N * Hh * Wh * 9 * Cmid * Cout,
            transcendentals=0,
            bytes_accessed=(2 * N * Wh * Cmid * (Hh + 2 * n_hb)
                            + 2 * 9 * Cmid * Cout
                            + 2 * N * Hh * Wh * Cout
                            + 4 * N * n_hb * 2 * Cout
                            + 8 * Cmid)),
    )(y1_pre, y1_pre, y1_pre, s1, h1, w2m)

    s2, h2 = _bn_scale_shift(st2, g2, b2, count)

    # ---- stage 3: BN2 apply + ReLU (+ fused NHWC->NCHW when supported) -------
    h3 = _pick_h3(Hh, Wh, Cout, budget)
    n_h3 = Hh // h3
    stage3_cost = pl.CostEstimate(
        flops=3 * N * Hh * Wh * Cout,
        transcendentals=0,
        bytes_accessed=(2 + 4) * N * Hh * Wh * Cout + 8 * Cout)

    if _fused_nchw_ok(h3, Wh, Cout):
        return pl.pallas_call(
            functools.partial(_bn_relu_nchw_kernel, h3),
            grid=(N, n_h3),
            in_specs=[
                pl.BlockSpec((h3, Wh, Cout), lambda n, i: (n * n_h3 + i, 0, 0)),
                _const_spec((1, Cout), lambda n, i: (0, 0)),
                _const_spec((1, Cout), lambda n, i: (0, 0)),
            ],
            out_specs=pl.BlockSpec((1, Cout, h3, Wh), lambda n, i: (n, 0, i, 0)),
            out_shape=jax.ShapeDtypeStruct((N, Cout, Hh, Wh), jnp.float32),
            compiler_params=cparams,
            cost_estimate=stage3_cost,
        )(y2_pre, s2, h2)

    # Fallback: NHWC BN+ReLU kernel, layout change done by XLA.
    y3 = pl.pallas_call(
        _bn_relu_nhwc_kernel,
        grid=(N, n_h3),
        in_specs=[
            pl.BlockSpec((h3, Wh, Cout), lambda n, i: (n * n_h3 + i, 0, 0)),
            _const_spec((1, Cout), lambda n, i: (0, 0)),
            _const_spec((1, Cout), lambda n, i: (0, 0)),
        ],
        out_specs=pl.BlockSpec((h3, Wh, Cout), lambda n, i: (n * n_h3 + i, 0, 0)),
        out_shape=jax.ShapeDtypeStruct((N * Hh, Wh, Cout), jnp.float32),
        compiler_params=cparams,
        cost_estimate=stage3_cost,
    )(y2_pre, s2, h2)
    return jnp.transpose(y3.reshape(N, Hh, Wh, Cout), (0, 3, 1, 2))


# ---------------------------------------------------------------------------
# Pure-JAX f32 reference (numerical sanity check)
# ---------------------------------------------------------------------------
def down_ref(x_nchw, params):
    w1, g1, b1, w2, g2, b2 = params
    x = jnp.transpose(x_nchw, (0, 2, 3, 1))
    p = jnp.max(jnp.stack([x[:, 0::2, 0::2], x[:, 0::2, 1::2],
                           x[:, 1::2, 0::2], x[:, 1::2, 1::2]]), axis=0)

    def block(h, w, g, b):
        acc = 0.0
        for dy in range(3):
            for dx in range(3):
                acc = acc + jnp.einsum(
                    'nhwc,co->nhwo',
                    jnp.roll(h, (1 - dy, 1 - dx), axis=(1, 2)), w[dy, dx])
        m = jnp.mean(acc, axis=(0, 1, 2))
        v = jnp.mean((acc - m) ** 2, axis=(0, 1, 2))
        return jnp.maximum((acc - m) / jnp.sqrt(v + BN_EPS) * g[0] + b[0], 0.0)

    y = block(p, w1, g1, b1)
    y = block(y, w2, g2, b2)
    return jnp.transpose(y, (0, 3, 1, 2))


# ---------------------------------------------------------------------------
if __name__ == "__main__":
    N, Cin, H, W = 2, 4, 16, 16
    Cout = 8
    Cmid = Cout  # DoubleConv default: mid_channels = out_channels

    key = jax.random.PRNGKey(0)
    k = jax.random.split(key, 7)
    # Conv weights stored as (3, 3, Ci, Co)  (== torch (Co, Ci, 3, 3) transposed)
    w1 = 0.1 * jax.random.normal(k[0], (3, 3, Cin, Cmid), jnp.float32)
    g1 = 1.0 + 0.1 * jax.random.normal(k[1], (1, Cmid), jnp.float32)   # BN weight
    b1 = 0.1 * jax.random.normal(k[2], (1, Cmid), jnp.float32)         # BN bias
    w2 = 0.1 * jax.random.normal(k[3], (3, 3, Cmid, Cout), jnp.float32)
    g2 = 1.0 + 0.1 * jax.random.normal(k[4], (1, Cout), jnp.float32)
    b2 = 0.1 * jax.random.normal(k[5], (1, Cout), jnp.float32)
    params = (w1, g1, b1, w2, g2, b2)

    x = jax.random.normal(k[6], (N, Cin, H, W), jnp.float32)

    ref = jax.block_until_ready(down_ref(x, params))

    fwd = jax.jit(down_forward, static_argnames=("tile_h",))
    # Test both the auto-sized single-row-block path and a multi-row-block
    # tiling (tile_h=4) that exercises the circular halo wrap across blocks
    # and the cross-block BN stats reduction.
    for th in (None, 4):
        out = jax.block_until_ready(fwd(x, params, tile_h=th))
        assert out.shape == (N, Cout, H // 2, W // 2), out.shape
        assert bool(jnp.all(jnp.isfinite(out)))
        err = float(jnp.max(jnp.abs(out - ref)))
        # bf16 matmul operands / bf16 intermediates (f32 accumulation & BN math)
        # -> relaxed tolerance vs the f32 reference.
        assert jnp.allclose(out, ref, rtol=5e-2, atol=5e-2), err

    print("KERNEL_OK")
</pallas_src>

<mosaic_0001>
module attributes {stable_mosaic.version = 11 : i64} {
  func.func @_bn_relu_nhwc_kernel(%arg0: i32, %arg1: i32, %arg2: memref<8x8x8xbf16, #tpu.memory_space<vmem>>, %arg3: memref<1x8xf32, #tpu.memory_space<vmem>>, %arg4: memref<1x8xf32, #tpu.memory_space<vmem>>, %arg5: memref<8x8x8xf32, #tpu.memory_space<vmem>>) attributes {dimension_semantics = [#tpu.dimension_semantics<parallel>, #tpu.dimension_semantics<parallel>], iteration_bounds = array<i64: 2, 1>, scalar_prefetch = 0 : i64, scratch_operands = 0 : i64, tpu.core_type = #tpu.core_type<tc>, window_params = [{transform_indices = @transform_0, window_bounds = array<i64: 8, 8, 8>}, {pipeline_mode = #tpu.pipeline_mode<synchronous>, transform_indices = @transform_1, window_bounds = array<i64: 1, 8>}, {pipeline_mode = #tpu.pipeline_mode<synchronous>, transform_indices = @transform_2, window_bounds = array<i64: 1, 8>}, {transform_indices = @transform_3, window_bounds = array<i64: 8, 8, 8>}]} {
    %c0 = arith.constant 0 : index
    %c0_0 = arith.constant 0 : index
    %c0_1 = arith.constant 0 : index
    %0 = vector.load %arg2[%c0, %c0_0, %c0_1] : memref<8x8x8xbf16, #tpu.memory_space<vmem>>, vector<8x8x8xbf16>
    %1 = arith.extf %0 : vector<8x8x8xbf16> to vector<8x8x8xf32>
    %c0_2 = arith.constant 0 : index
    %c0_3 = arith.constant 0 : index
    %2 = vector.load %arg3[%c0_2, %c0_3] : memref<1x8xf32, #tpu.memory_space<vmem>>, vector<1x8xf32>
    %3 = vector.shape_cast %2 : vector<1x8xf32> to vector<1x1x8xf32>
    %4 = vector.broadcast %3 : vector<1x1x8xf32> to vector<8x8x8xf32>
    %5 = arith.mulf %1, %4 : vector<8x8x8xf32>
    %c0_4 = arith.constant 0 : index
    %c0_5 = arith.constant 0 : index
    %6 = vector.load %arg4[%c0_4, %c0_5] : memref<1x8xf32, #tpu.memory_space<vmem>>, vector<1x8xf32>
    %7 = vector.shape_cast %6 : vector<1x8xf32> to vector<1x1x8xf32>
    %8 = vector.broadcast %7 : vector<1x1x8xf32> to vector<8x8x8xf32>
    %9 = arith.addf %5, %8 : vector<8x8x8xf32>
    %cst = arith.constant 0.000000e+00 : f32
    %10 = vector.broadcast %cst : f32 to vector<8x8x8xf32>
    %11 = arith.maximumf %9, %10 : vector<8x8x8xf32>
    %c0_6 = arith.constant 0 : index
    %c0_7 = arith.constant 0 : index
    %c0_8 = arith.constant 0 : index
    %12 = vector.load %arg5[%c0_6, %c0_7, %c0_8] : memref<8x8x8xf32, #tpu.memory_space<vmem>>, vector<8x8x8xf32>
    tpu.vector_store %arg5[%c0_6, %c0_7, %c0_8], %11 {strides = array<i32>} : memref<8x8x8xf32, #tpu.memory_space<vmem>>, vector<8x8x8xf32>,
    return
  }
  func.func @transform_0(%arg0: i32, %arg1: i32) -> (i32, i32, i32) {
    %c1_i32 = arith.constant 1 : i32
    %0 = arith.muli %arg0, %c1_i32 : i32
    %1 = arith.addi %0, %arg1 : i32
    %c0_i32 = arith.constant 0 : i32
    %c0_i32_0 = arith.constant 0 : i32
    %c0_i32_1 = arith.constant 0 : i32
    return %1, %c0_i32, %c0_i32_0 : i32, i32, i32
  }
  func.func @transform_1(%arg0: i32, %arg1: i32) -> (i32, i32) {
    %c0_i32 = arith.constant 0 : i32
    %c0_i32_0 = arith.constant 0 : i32
    %c0_i32_1 = arith.constant 0 : i32
    return %c0_i32, %c0_i32_0 : i32, i32
  }
  func.func @transform_2(%arg0: i32, %arg1: i32) -> (i32, i32) {
    %c0_i32 = arith.constant 0 : i32
    %c0_i32_0 = arith.constant 0 : i32
    %c0_i32_1 = arith.constant 0 : i32
    return %c0_i32, %c0_i32_0 : i32, i32
  }
  func.func @transform_3(%arg0: i32, %arg1: i32) -> (i32, i32, i32) {
    %c1_i32 = arith.constant 1 : i32
    %0 = arith.muli %arg0, %c1_i32 : i32
    %1 = arith.addi %0, %arg1 : i32
    %c0_i32 = arith.constant 0 : i32
    %c0_i32_0 = arith.constant 0 : i32
    %c0_i32_1 = arith.constant 0 : i32
    return %1, %c0_i32, %c0_i32_0 : i32, i32, i32
  }
}

module attributes {stable_mosaic.version = 11 : i64} {
  func.func @_bn_conv2_kernel(%arg0: i32, %arg1: i32, %arg2: memref<8x8x8xbf16, #tpu.memory_space<vmem>>, %arg3: memref<1x8x8xbf16, #tpu.memory_space<vmem>>, %arg4: memref<1x8x8xbf16, #tpu.memory_space<vmem>>, %arg5: memref<1x8xf32, #tpu.memory_space<vmem>>, %arg6: memref<1x8xf32, #tpu.memory_space<vmem>>, %arg7: memref<3x24x8xbf16, #tpu.memory_space<vmem>>, %arg8: memref<8x8x8xbf16, #tpu.memory_space<vmem>>, %arg9: memref<1x1x2x8xf32, #tpu.memory_space<vmem>>) attributes {dimension_semantics = [#tpu.dimension_semantics<parallel>, #tpu.dimension_semantics<parallel>], iteration_bounds = array<i64: 2, 1>, scalar_prefetch = 0 : i64, scratch_operands = 0 : i64, tpu.core_type = #tpu.core_type<tc>, window_params = [{transform_indices = @transform_0, window_bounds = array<i64: 8, 8, 8>}, {transform_indices = @transform_1, window_bounds = array<i64: 1, 8, 8>}, {transform_indices = @transform_2, window_bounds = array<i64: 1, 8, 8>}, {pipeline_mode = #tpu.pipeline_mode<synchronous>, transform_indices = @transform_3, window_bounds = array<i64: 1, 8>}, {pipeline_mode = #tpu.pipeline_mode<synchronous>, transform_indices = @transform_4, window_bounds = array<i64: 1, 8>}, {pipeline_mode = #tpu.pipeline_mode<synchronous>, transform_indices = @transform_5, window_bounds = array<i64: 3, 24, 8>}, {transform_indices = @transform_6, window_bounds = array<i64: 8, 8, 8>}, {transform_indices = @transform_7, window_bounds = array<i64: 1, 1, 2, 8>}]} {
    %c0 = arith.constant 0 : index
    %c0_0 = arith.constant 0 : index
    %c0_1 = arith.constant 0 : index
    %0 = vector.load %arg3[%c0, %c0_0, %c0_1] : memref<1x8x8xbf16, #tpu.memory_space<vmem>>, vector<1x8x8xbf16>
    %c0_2 = arith.constant 0 : index
    %c0_3 = arith.constant 0 : index
    %c0_4 = arith.constant 0 : index
    %1 = vector.load %arg2[%c0_2, %c0_3, %c0_4] : memref<8x8x8xbf16, #tpu.memory_space<vmem>>, vector<8x8x8xbf16>
    %c0_5 = arith.constant 0 : index
    %c0_6 = arith.constant 0 : index
    %c0_7 = arith.constant 0 : index
    %2 = vector.load %arg4[%c0_5, %c0_6, %c0_7] : memref<1x8x8xbf16, #tpu.memory_space<vmem>>, vector<1x8x8xbf16>
    %3 = tpu.concatenate %0, %1, %2 in 0 : vector<1x8x8xbf16>, vector<8x8x8xbf16>, vector<1x8x8xbf16> -> vector<10x8x8xbf16>
    %4 = arith.extf %3 : vector<10x8x8xbf16> to vector<10x8x8xf32>
    %c0_8 = arith.constant 0 : index
    %c0_9 = arith.constant 0 : index
    %5 = vector.load %arg5[%c0_8, %c0_9] : memref<1x8xf32, #tpu.memory_space<vmem>>, vector<1x8xf32>
    %6 = vector.shape_cast %5 : vector<1x8xf32> to vector<1x1x8xf32>
    %c0_10 = arith.constant 0 : index
    %c0_11 = arith.constant 0 : index
    %7 = vector.load %arg6[%c0_10, %c0_11] : memref<1x8xf32, #tpu.memory_space<vmem>>, vector<1x8xf32>
    %8 = vector.shape_cast %7 : vector<1x8xf32> to vector<1x1x8xf32>
    %9 = vector.broadcast %6 : vector<1x1x8xf32> to vector<10x8x8xf32>
    %10 = arith.mulf %4, %9 : vector<10x8x8xf32>
    %11 = vector.broadcast %8 : vector<1x1x8xf32> to vector<10x8x8xf32>
    %12 = arith.addf %10, %11 : vector<10x8x8xf32>
    %cst = arith.constant 0.000000e+00 : f32
    %13 = vector.broadcast %cst : f32 to vector<10x8x8xf32>
    %14 = arith.maximumf %12, %13 : vector<10x8x8xf32>
    %15 = vector.extract_strided_slice %14 {offsets = [0, 0, 0], sizes = [8, 8, 8], strides = [1, 1, 1]} : vector<10x8x8xf32> to vector<8x8x8xf32>
    %16 = vector.extract_strided_slice %14 {offsets = [1, 0, 0], sizes = [8, 8, 8], strides = [1, 1, 1]} : vector<10x8x8xf32> to vector<8x8x8xf32>
    %17 = vector.extract_strided_slice %14 {offsets = [2, 0, 0], sizes = [8, 8, 8], strides = [1, 1, 1]} : vector<10x8x8xf32> to vector<8x8x8xf32>
    %18 = tpu.concatenate %15, %16, %17 in 2 : vector<8x8x8xf32>, vector<8x8x8xf32>, vector<8x8x8xf32> -> vector<8x8x24xf32>
    %19 = vector.shape_cast %18 : vector<8x8x24xf32> to vector<64x24xf32>
    %20 = arith.truncf %19 : vector<64x24xf32> to vector<64x24xbf16>
    %c0_12 = arith.constant 0 : index
    %c0_13 = arith.constant 0 : index
    %c0_14 = arith.constant 0 : index
    %21 = vector.load %arg7[%c0_12, %c0_13, %c0_14] : memref<3x24x8xbf16, #tpu.memory_space<vmem>>, vector<1x24x8xbf16>
    %22 = vector.shape_cast %21 : vector<1x24x8xbf16> to vector<24x8xbf16>
    %cst_15 = arith.constant dense<0.000000e+00> : vector<64x8xf32>
    %23 = tpu.matmul %20, %22, %cst_15 {dimension_numbers = #tpu.dot_dimension_numbers<[1], [0], [0], [1], [0, 0, 1, 1], [], []>} : vector<64x24xbf16>, vector<24x8xbf16>, vector<64x8xf32> -> vector<64x8xf32>
    %c1 = arith.constant 1 : index
    %c0_16 = arith.constant 0 : index
    %c0_17 = arith.constant 0 : index
    %24 = vector.load %arg7[%c1, %c0_16, %c0_17] : memref<3x24x8xbf16, #tpu.memory_space<vmem>>, vector<1x24x8xbf16>
    %25 = vector.shape_cast %24 : vector<1x24x8xbf16> to vector<24x8xbf16>
    %cst_18 = arith.constant dense<0.000000e+00> : vector<64x8xf32>
    %26 = tpu.matmul %20, %25, %cst_18 {dimension_numbers = #tpu.dot_dimension_numbers<[1], [0], [0], [1], [0, 0, 1, 1], [], []>} : vector<64x24xbf16>, vector<24x8xbf16>, vector<64x8xf32> -> vector<64x8xf32>
    %c2 = arith.constant 2 : index
    %c0_19 = arith.constant 0 : index
    %c0_20 = arith.constant 0 : index
    %27 = vector.load %arg7[%c2, %c0_19, %c0_20] : memref<3x24x8xbf16, #tpu.memory_space<vmem>>, vector<1x24x8xbf16>
    %28 = vector.shape_cast %27 : vector<1x24x8xbf16> to vector<24x8xbf16>
    %cst_21 = arith.constant dense<0.000000e+00> : vector<64x8xf32>
    %29 = tpu.matmul %20, %28, %cst_21 {dimension_numbers = #tpu.dot_dimension_numbers<[1], [0], [0], [1], [0, 0, 1, 1], [], []>} : vector<64x24xbf16>, vector<24x8xbf16>, vector<64x8xf32> -> vector<64x8xf32>
    %30 = vector.shape_cast %23 : vector<64x8xf32> to vector<8x8x8xf32>
    %31 = vector.shape_cast %26 : vector<64x8xf32> to vector<8x8x8xf32>
    %32 = vector.shape_cast %29 : vector<64x8xf32> to vector<8x8x8xf32>
    %33 = vector.extract_strided_slice %30 {offsets = [0, 7, 0], sizes = [8, 1, 8], strides = [1, 1, 1]} : vector<8x8x8xf32> to vector<8x1x8xf32>
    %34 = vector.extract_strided_slice %30 {offsets = [0, 0, 0], sizes = [8, 7, 8], strides = [1, 1, 1]} : vector<8x8x8xf32> to vector<8x7x8xf32>
    %35 = tpu.concatenate %33, %34 in 1 : vector<8x1x8xf32>, vector<8x7x8xf32> -> vector<8x8x8xf32>
    %36 = arith.addf %35, %31 : vector<8x8x8xf32>
    %37 = vector.extract_strided_slice %32 {offsets = [0, 1, 0], sizes = [8, 7, 8], strides = [1, 1, 1]} : vector<8x8x8xf32> to vector<8x7x8xf32>
    %38 = vector.extract_strided_slice %32 {offsets = [0, 0, 0], sizes = [8, 1, 8], strides = [1, 1, 1]} : vector<8x8x8xf32> to vector<8x1x8xf32>
    %39 = tpu.concatenate %37, %38 in 1 : vector<8x7x8xf32>, vector<8x1x8xf32> -> vector<8x8x8xf32>
    %40 = arith.addf %36, %39 : vector<8x8x8xf32>
    %41 = arith.truncf %40 : vector<8x8x8xf32> to vector<8x8x8xbf16>
    %c0_22 = arith.constant 0 : index
    %c0_23 = arith.constant 0 : index
    %c0_24 = arith.constant 0 : index
    %42 = vector.load %arg8[%c0_22, %c0_23, %c0_24] : memref<8x8x8xbf16, #tpu.memory_space<vmem>>, vector<8x8x8xbf16>
    tpu.vector_store %arg8[%c0_22, %c0_23, %c0_24], %41 {strides = array<i32>} : memref<8x8x8xbf16, #tpu.memory_space<vmem>>, vector<8x8x8xbf16>,
    %43 = vector.shape_cast %40 : vector<8x8x8xf32> to vector<64x8xf32>
    %cst_25 = arith.constant dense<0.000000e+00> : vector<8xf32>
    %44 = vector.multi_reduction <add>, %43, %cst_25 [0] : vector<64x8xf32> to vector<8xf32>
    %45 = vector.shape_cast %44 : vector<8xf32> to vector<1x8xf32>
    %46 = arith.mulf %43, %43 : vector<64x8xf32>
    %cst_26 = arith.constant dense<0.000000e+00> : vector<8xf32>
    %47 = vector.multi_reduction <add>, %46, %cst_26 [0] : vector<64x8xf32> to vector<8xf32>
    %48 = vector.shape_cast %47 : vector<8xf32> to vector<1x8xf32>
    %49 = tpu.concatenate %45, %48 in 0 : vector<1x8xf32>, vector<1x8xf32> -> vector<2x8xf32>
    %c0_27 = arith.constant 0 : index
    %c0_28 = arith.constant 0 : index
    %c0_29 = arith.constant 0 : index
    %c0_30 = arith.constant 0 : index
    %50 = vector.load %arg9[%c0_27, %c0_28, %c0_29, %c0_30] : memref<1x1x2x8xf32, #tpu.memory_space<vmem>>, vector<1x1x2x8xf32>
    %51 = vector.shape_cast %50 : vector<1x1x2x8xf32> to vector<2x8xf32>
    %52 = vector.shape_cast %49 : vector<2x8xf32> to vector<1x1x2x8xf32>
    tpu.vector_store %arg9[%c0_27, %c0_28, %c0_29, %c0_30], %52 {strides = array<i32>} : memref<1x1x2x8xf32, #tpu.memory_space<vmem>>, vector<1x1x2x8xf32>,
    return
  }
  func.func @transform_0(%arg0: i32, %arg1: i32) -> (i32, i32, i32) {
    %c1_i32 = arith.constant 1 : i32
    %0 = arith.muli %arg0, %c1_i32 : i32
    %1 = arith.addi %0, %arg1 : i32
    %c0_i32 = arith.constant 0 : i32
    %c0_i32_0 = arith.constant 0 : i32
    %c0_i32_1 = arith.constant 0 : i32
    return %1, %c0_i32, %c0_i32_0 : i32, i32, i32
  }
  func.func @transform_1(%arg0: i32, %arg1: i32) -> (i32, i32, i32) {
    %c8_i32 = arith.constant 8 : i32
    %0 = arith.muli %arg0, %c8_i32 : i32
    %c8_i32_0 = arith.constant 8 : i32
    %1 = arith.muli %arg1, %c8_i32_0 : i32
    %c1_i32 = arith.constant 1 : i32
    %2 = arith.subi %1, %c1_i32 : i32
    %c8_i32_1 = arith.constant 8 : i32
    %c0_i32 = arith.constant 0 : i32
    %3 = arith.cmpi eq, %c8_i32_1, %c0_i32 : i32
    %c1_i32_2 = arith.constant 1 : i32
    %4 = arith.select %3, %c1_i32_2, %c8_i32_1 : i32
    %5 = arith.remsi %2, %4 : i32
    %c0_i32_3 = arith.constant 0 : i32
    %6 = arith.cmpi ne, %5, %c0_i32_3 : i32
    %c0_i32_4 = arith.constant 0 : i32
    %7 = arith.cmpi slt, %5, %c0_i32_4 : i32
    %c0_i32_5 = arith.constant 0 : i32
    %8 = arith.cmpi slt, %4, %c0_i32_5 : i32
    %9 = arith.xori %7, %8 : i1
    %10 = arith.andi %9, %6 : i1
    %11 = arith.addi %5, %4 : i32
    %12 = arith.select %10, %11, %5 : i32
    %13 = arith.addi %0, %12 : i32
    %c0_i32_6 = arith.constant 0 : i32
    %c0_i32_7 = arith.constant 0 : i32
    %c0_i32_8 = arith.constant 0 : i32
    return %13, %c0_i32_6, %c0_i32_7 : i32, i32, i32
  }
  func.func @transform_2(%arg0: i32, %arg1: i32) -> (i32, i32, i32) {
    %c8_i32 = arith.constant 8 : i32
    %0 = arith.muli %arg0, %c8_i32 : i32
    %c1_i32 = arith.constant 1 : i32
    %1 = arith.addi %arg1, %c1_i32 : i32
    %c8_i32_0 = arith.constant 8 : i32
    %2 = arith.muli %1, %c8_i32_0 : i32
    %c8_i32_1 = arith.constant 8 : i32
    %c0_i32 = arith.constant 0 : i32
    %3 = arith.cmpi eq, %c8_i32_1, %c0_i32 : i32
    %c1_i32_2 = arith.constant 1 : i32
    %4 = arith.select %3, %c1_i32_2, %c8_i32_1 : i32
    %5 = arith.remsi %2, %4 : i32
    %c0_i32_3 = arith.constant 0 : i32
    %6 = arith.cmpi ne, %5, %c0_i32_3 : i32
    %c0_i32_4 = arith.constant 0 : i32
    %7 = arith.cmpi slt, %5, %c0_i32_4 : i32
    %c0_i32_5 = arith.constant 0 : i32
    %8 = arith.cmpi slt, %4, %c0_i32_5 : i32
    %9 = arith.xori %7, %8 : i1
    %10 = arith.andi %9, %6 : i1
    %11 = arith.addi %5, %4 : i32
    %12 = arith.select %10, %11, %5 : i32
    %13 = arith.addi %0, %12 : i32
    %c0_i32_6 = arith.constant 0 : i32
    %c0_i32_7 = arith.constant 0 : i32
    %c0_i32_8 = arith.constant 0 : i32
    return %13, %c0_i32_6, %c0_i32_7 : i32, i32, i32
  }
  func.func @transform_3(%arg0: i32, %arg1: i32) -> (i32, i32) {
    %c0_i32 = arith.constant 0 : i32
    %c0_i32_0 = arith.constant 0 : i32
    %c0_i32_1 = arith.constant 0 : i32
    return %c0_i32, %c0_i32_0 : i32, i32
  }
  func.func @transform_4(%arg0: i32, %arg1: i32) -> (i32, i32) {
    %c0_i32 = arith.constant 0 : i32
    %c0_i32_0 = arith.constant 0 : i32
    %c0_i32_1 = arith.constant 0 : i32
    return %c0_i32, %c0_i32_0 : i32, i32
  }
  func.func @transform_5(%arg0: i32, %arg1: i32) -> (i32, i32, i32) {
    %c0_i32 = arith.constant 0 : i32
    %c0_i32_0 = arith.constant 0 : i32
    %c0_i32_1 = arith.constant 0 : i32
    %c0_i32_2 = arith.constant 0 : i32
    return %c0_i32, %c0_i32_0, %c0_i32_1 : i32, i32, i32
  }
  func.func @transform_6(%arg0: i32, %arg1: i32) -> (i32, i32, i32) {
    %c1_i32 = arith.constant 1 : i32
    %0 = arith.muli %arg0, %c1_i32 : i32
    %1 = arith.addi %0, %arg1 : i32
    %c0_i32 = arith.constant 0 : i32
    %c0_i32_0 = arith.constant 0 : i32
    %c0_i32_1 = arith.constant 0 : i32
    return %1, %c0_i32, %c0_i32_0 : i32, i32, i32
  }
  func.func @transform_7(%arg0: i32, %arg1: i32) -> (i32, i32, i32, i32) {
    %c0_i32 = arith.constant 0 : i32
    %c0_i32_0 = arith.constant 0 : i32
    %c0_i32_1 = arith.constant 0 : i32
    return %arg0, %arg1, %c0_i32, %c0_i32_0 : i32, i32, i32, i32
  }
}

module attributes {stable_mosaic.version = 11 : i64} {
  func.func @_pool_conv1_kernel(%arg0: i32, %arg1: i32, %arg2: memref<1x16x8x8xbf16, #tpu.memory_space<vmem>>, %arg3: memref<1x2x8x8xbf16, #tpu.memory_space<vmem>>, %arg4: memref<1x2x8x8xbf16, #tpu.memory_space<vmem>>, %arg5: memref<3x12x8xbf16, #tpu.memory_space<vmem>>, %arg6: memref<8x8x8xbf16, #tpu.memory_space<vmem>>, %arg7: memref<1x1x2x8xf32, #tpu.memory_space<vmem>>) attributes {dimension_semantics = [#tpu.dimension_semantics<parallel>, #tpu.dimension_semantics<parallel>], iteration_bounds = array<i64: 2, 1>, scalar_prefetch = 0 : i64, scratch_operands = 0 : i64, tpu.core_type = #tpu.core_type<tc>, window_params = [{transform_indices = @transform_0, window_bounds = array<i64: 1, 16, 8, 8>}, {transform_indices = @transform_1, window_bounds = array<i64: 1, 2, 8, 8>}, {transform_indices = @transform_2, window_bounds = array<i64: 1, 2, 8, 8>}, {pipeline_mode = #tpu.pipeline_mode<synchronous>, transform_indices = @transform_3, window_bounds = array<i64: 3, 12, 8>}, {transform_indices = @transform_4, window_bounds = array<i64: 8, 8, 8>}, {transform_indices = @transform_5, window_bounds = array<i64: 1, 1, 2, 8>}]} {
    %c0 = arith.constant 0 : index
    %c0_0 = arith.constant 0 : index
    %c0_1 = arith.constant 0 : index
    %c0_2 = arith.constant 0 : index
    %0 = vector.load %arg3[%c0, %c0_0, %c0_1, %c0_2] : memref<1x2x8x8xbf16, #tpu.memory_space<vmem>>, vector<1x2x8x8xbf16>
    %1 = vector.shape_cast %0 : vector<1x2x8x8xbf16> to vector<2x8x8xbf16>
    %2 = arith.extf %1 : vector<2x8x8xbf16> to vector<2x8x8xf32>
    %3 = vector.extract_strided_slice %2 {offsets = [0, 0, 0], sizes = [2, 8, 4], strides = [1, 1, 1]} : vector<2x8x8xf32> to vector<2x8x4xf32>
    %4 = vector.extract_strided_slice %2 {offsets = [0, 0, 4], sizes = [2, 8, 4], strides = [1, 1, 1]} : vector<2x8x8xf32> to vector<2x8x4xf32>
    %5 = arith.maximumf %3, %4 : vector<2x8x4xf32>
    %6 = vector.shape_cast %5 : vector<2x8x4xf32> to vector<1x2x8x4xf32>
    %7 = vector.extract_strided_slice %6 {offsets = [0, 0, 0, 0], sizes = [1, 1, 8, 4], strides = [1, 1, 1, 1]} : vector<1x2x8x4xf32> to vector<1x1x8x4xf32>
    %8 = vector.shape_cast %7 : vector<1x1x8x4xf32> to vector<1x8x4xf32>
    %9 = vector.extract_strided_slice %6 {offsets = [0, 1, 0, 0], sizes = [1, 1, 8, 4], strides = [1, 1, 1, 1]} : vector<1x2x8x4xf32> to vector<1x1x8x4xf32>
    %10 = vector.shape_cast %9 : vector<1x1x8x4xf32> to vector<1x8x4xf32>
    %11 = arith.maximumf %8, %10 : vector<1x8x4xf32>
    %c0_3 = arith.constant 0 : index
    %c0_4 = arith.constant 0 : index
    %c0_5 = arith.constant 0 : index
    %c0_6 = arith.constant 0 : index
    %12 = vector.load %arg2[%c0_3, %c0_4, %c0_5, %c0_6] : memref<1x16x8x8xbf16, #tpu.memory_space<vmem>>, vector<1x16x8x8xbf16>
    %13 = vector.shape_cast %12 : vector<1x16x8x8xbf16> to vector<16x8x8xbf16>
    %14 = arith.extf %13 : vector<16x8x8xbf16> to vector<16x8x8xf32>
    %15 = vector.extract_strided_slice %14 {offsets = [0, 0, 0], sizes = [16, 8, 4], strides = [1, 1, 1]} : vector<16x8x8xf32> to vector<16x8x4xf32>
    %16 = vector.extract_strided_slice %14 {offsets = [0, 0, 4], sizes = [16, 8, 4], strides = [1, 1, 1]} : vector<16x8x8xf32> to vector<16x8x4xf32>
    %17 = arith.maximumf %15, %16 : vector<16x8x4xf32>
    %18 = vector.shape_cast %17 : vector<16x8x4xf32> to vector<8x2x8x4xf32>
    %19 = vector.extract_strided_slice %18 {offsets = [0, 0, 0, 0], sizes = [8, 1, 8, 4], strides = [1, 1, 1, 1]} : vector<8x2x8x4xf32> to vector<8x1x8x4xf32>
    %20 = vector.shape_cast %19 : vector<8x1x8x4xf32> to vector<8x8x4xf32>
    %21 = vector.extract_strided_slice %18 {offsets = [0, 1, 0, 0], sizes = [8, 1, 8, 4], strides = [1, 1, 1, 1]} : vector<8x2x8x4xf32> to vector<8x1x8x4xf32>
    %22 = vector.shape_cast %21 : vector<8x1x8x4xf32> to vector<8x8x4xf32>
    %23 = arith.maximumf %20, %22 : vector<8x8x4xf32>
    %c0_7 = arith.constant 0 : index
    %c0_8 = arith.constant 0 : index
    %c0_9 = arith.constant 0 : index
    %c0_10 = arith.constant 0 : index
    %24 = vector.load %arg4[%c0_7, %c0_8, %c0_9, %c0_10] : memref<1x2x8x8xbf16, #tpu.memory_space<vmem>>, vector<1x2x8x8xbf16>
    %25 = vector.shape_cast %24 : vector<1x2x8x8xbf16> to vector<2x8x8xbf16>
    %26 = arith.extf %25 : vector<2x8x8xbf16> to vector<2x8x8xf32>
    %27 = vector.extract_strided_slice %26 {offsets = [0, 0, 0], sizes = [2, 8, 4], strides = [1, 1, 1]} : vector<2x8x8xf32> to vector<2x8x4xf32>
    %28 = vector.extract_strided_slice %26 {offsets = [0, 0, 4], sizes = [2, 8, 4], strides = [1, 1, 1]} : vector<2x8x8xf32> to vector<2x8x4xf32>
    %29 = arith.maximumf %27, %28 : vector<2x8x4xf32>
    %30 = vector.shape_cast %29 : vector<2x8x4xf32> to vector<1x2x8x4xf32>
    %31 = vector.extract_strided_slice %30 {offsets = [0, 0, 0, 0], sizes = [1, 1, 8, 4], strides = [1, 1, 1, 1]} : vector<1x2x8x4xf32> to vector<1x1x8x4xf32>
    %32 = vector.shape_cast %31 : vector<1x1x8x4xf32> to vector<1x8x4xf32>
    %33 = vector.extract_strided_slice %30 {offsets = [0, 1, 0, 0], sizes = [1, 1, 8, 4], strides = [1, 1, 1, 1]} : vector<1x2x8x4xf32> to vector<1x1x8x4xf32>
    %34 = vector.shape_cast %33 : vector<1x1x8x4xf32> to vector<1x8x4xf32>
    %35 = arith.maximumf %32, %34 : vector<1x8x4xf32>
    %36 = tpu.concatenate %11, %23, %35 in 0 : vector<1x8x4xf32>, vector<8x8x4xf32>, vector<1x8x4xf32> -> vector<10x8x4xf32>
    %37 = vector.extract_strided_slice %36 {offsets = [0, 0, 0], sizes = [8, 8, 4], strides = [1, 1, 1]} : vector<10x8x4xf32> to vector<8x8x4xf32>
    %38 = vector.extract_strided_slice %36 {offsets = [1, 0, 0], sizes = [8, 8, 4], strides = [1, 1, 1]} : vector<10x8x4xf32> to vector<8x8x4xf32>
    %39 = vector.extract_strided_slice %36 {offsets = [2, 0, 0], sizes = [8, 8, 4], strides = [1, 1, 1]} : vector<10x8x4xf32> to vector<8x8x4xf32>
    %40 = tpu.concatenate %37, %38, %39 in 2 : vector<8x8x4xf32>, vector<8x8x4xf32>, vector<8x8x4xf32> -> vector<8x8x12xf32>
    %41 = vector.shape_cast %40 : vector<8x8x12xf32> to vector<64x12xf32>
    %42 = arith.truncf %41 : vector<64x12xf32> to vector<64x12xbf16>
    %c0_11 = arith.constant 0 : index
    %c0_12 = arith.constant 0 : index
    %c0_13 = arith.constant 0 : index
    %43 = vector.load %arg5[%c0_11, %c0_12, %c0_13] : memref<3x12x8xbf16, #tpu.memory_space<vmem>>, vector<1x12x8xbf16>
    %44 = vector.shape_cast %43 : vector<1x12x8xbf16> to vector<12x8xbf16>
    %cst = arith.constant dense<0.000000e+00> : vector<64x8xf32>
    %45 = tpu.matmul %42, %44, %cst {dimension_numbers = #tpu.dot_dimension_numbers<[1], [0], [0], [1], [0, 0, 1, 1], [], []>} : vector<64x12xbf16>, vector<12x8xbf16>, vector<64x8xf32> -> vector<64x8xf32>
    %c1 = arith.constant 1 : index
    %c0_14 = arith.constant 0 : index
    %c0_15 = arith.constant 0 : index
    %46 = vector.load %arg5[%c1, %c0_14, %c0_15] : memref<3x12x8xbf16, #tpu.memory_space<vmem>>, vector<1x12x8xbf16>
    %47 = vector.shape_cast %46 : vector<1x12x8xbf16> to vector<12x8xbf16>
    %cst_16 = arith.constant dense<0.000000e+00> : vector<64x8xf32>
    %48 = tpu.matmul %42, %47, %cst_16 {dimension_numbers = #tpu.dot_dimension_numbers<[1], [0], [0], [1], [0, 0, 1, 1], [], []>} : vector<64x12xbf16>, vector<12x8xbf16>, vector<64x8xf32> -> vector<64x8xf32>
    %c2 = arith.constant 2 : index
    %c0_17 = arith.constant 0 : index
    %c0_18 = arith.constant 0 : index
    %49 = vector.load %arg5[%c2, %c0_17, %c0_18] : memref<3x12x8xbf16, #tpu.memory_space<vmem>>, vector<1x12x8xbf16>
    %50 = vector.shape_cast %49 : vector<1x12x8xbf16> to vector<12x8xbf16>
    %cst_19 = arith.constant dense<0.000000e+00> : vector<64x8xf32>
    %51 = tpu.matmul %42, %50, %cst_19 {dimension_numbers = #tpu.dot_dimension_numbers<[1], [0], [0], [1], [0, 0, 1, 1], [], []>} : vector<64x12xbf16>, vector<12x8xbf16>, vector<64x8xf32> -> vector<64x8xf32>
    %52 = vector.shape_cast %45 : vector<64x8xf32> to vector<8x8x8xf32>
    %53 = vector.shape_cast %48 : vector<64x8xf32> to vector<8x8x8xf32>
    %54 = vector.shape_cast %51 : vector<64x8xf32> to vector<8x8x8xf32>
    %55 = vector.extract_strided_slice %52 {offsets = [0, 7, 0], sizes = [8, 1, 8], strides = [1, 1, 1]} : vector<8x8x8xf32> to vector<8x1x8xf32>
    %56 = vector.extract_strided_slice %52 {offsets = [0, 0, 0], sizes = [8, 7, 8], strides = [1, 1, 1]} : vector<8x8x8xf32> to vector<8x7x8xf32>
    %57 = tpu.concatenate %55, %56 in 1 : vector<8x1x8xf32>, vector<8x7x8xf32> -> vector<8x8x8xf32>
    %58 = arith.addf %57, %53 : vector<8x8x8xf32>
    %59 = vector.extract_strided_slice %54 {offsets = [0, 1, 0], sizes = [8, 7, 8], strides = [1, 1, 1]} : vector<8x8x8xf32> to vector<8x7x8xf32>
    %60 = vector.extract_strided_slice %54 {offsets = [0, 0, 0], sizes = [8, 1, 8], strides = [1, 1, 1]} : vector<8x8x8xf32> to vector<8x1x8xf32>
    %61 = tpu.concatenate %59, %60 in 1 : vector<8x7x8xf32>, vector<8x1x8xf32> -> vector<8x8x8xf32>
    %62 = arith.addf %58, %61 : vector<8x8x8xf32>
    %63 = arith.truncf %62 : vector<8x8x8xf32> to vector<8x8x8xbf16>
    %c0_20 = arith.constant 0 : index
    %c0_21 = arith.constant 0 : index
    %c0_22 = arith.constant 0 : index
    %64 = vector.load %arg6[%c0_20, %c0_21, %c0_22] : memref<8x8x8xbf16, #tpu.memory_space<vmem>>, vector<8x8x8xbf16>
    tpu.vector_store %arg6[%c0_20, %c0_21, %c0_22], %63 {strides = array<i32>} : memref<8x8x8xbf16, #tpu.memory_space<vmem>>, vector<8x8x8xbf16>,
    %65 = vector.shape_cast %62 : vector<8x8x8xf32> to vector<64x8xf32>
    %cst_23 = arith.constant dense<0.000000e+00> : vector<8xf32>
    %66 = vector.multi_reduction <add>, %65, %cst_23 [0] : vector<64x8xf32> to vector<8xf32>
    %67 = vector.shape_cast %66 : vector<8xf32> to vector<1x8xf32>
    %68 = arith.mulf %65, %65 : vector<64x8xf32>
    %cst_24 = arith.constant dense<0.000000e+00> : vector<8xf32>
    %69 = vector.multi_reduction <add>, %68, %cst_24 [0] : vector<64x8xf32> to vector<8xf32>
    %70 = vector.shape_cast %69 : vector<8xf32> to vector<1x8xf32>
    %71 = tpu.concatenate %67, %70 in 0 : vector<1x8xf32>, vector<1x8xf32> -> vector<2x8xf32>
    %c0_25 = arith.constant 0 : index
    %c0_26 = arith.constant 0 : index
    %c0_27 = arith.constant 0 : index
    %c0_28 = arith.constant 0 : index
    %72 = vector.load %arg7[%c0_25, %c0_26, %c0_27, %c0_28] : memref<1x1x2x8xf32, #tpu.memory_space<vmem>>, vector<1x1x2x8xf32>
    %73 = vector.shape_cast %72 : vector<1x1x2x8xf32> to vector<2x8xf32>
    %74 = vector.shape_cast %71 : vector<2x8xf32> to vector<1x1x2x8xf32>
    tpu.vector_store %arg7[%c0_25, %c0_26, %c0_27, %c0_28], %74 {strides = array<i32>} : memref<1x1x2x8xf32, #tpu.memory_space<vmem>>, vector<1x1x2x8xf32>,
    return
  }
  func.func @transform_0(%arg0: i32, %arg1: i32) -> (i32, i32, i32, i32) {
    %c0_i32 = arith.constant 0 : i32
    %c0_i32_0 = arith.constant 0 : i32
    %c0_i32_1 = arith.constant 0 : i32
    return %arg0, %arg1, %c0_i32, %c0_i32_0 : i32, i32, i32, i32
  }
  func.func @transform_1(%arg0: i32, %arg1: i32) -> (i32, i32, i32, i32) {
    %c8_i32 = arith.constant 8 : i32
    %0 = arith.muli %arg1, %c8_i32 : i32
    %c1_i32 = arith.constant 1 : i32
    %1 = arith.subi %0, %c1_i32 : i32
    %c8_i32_0 = arith.constant 8 : i32
    %c0_i32 = arith.constant 0 : i32
    %2 = arith.cmpi eq, %c8_i32_0, %c0_i32 : i32
    %c1_i32_1 = arith.constant 1 : i32
    %3 = arith.select %2, %c1_i32_1, %c8_i32_0 : i32
    %4 = arith.remsi %1, %3 : i32
    %c0_i32_2 = arith.constant 0 : i32
    %5 = arith.cmpi ne, %4, %c0_i32_2 : i32
    %c0_i32_3 = arith.constant 0 : i32
    %6 = arith.cmpi slt, %4, %c0_i32_3 : i32
    %c0_i32_4 = arith.constant 0 : i32
    %7 = arith.cmpi slt, %3, %c0_i32_4 : i32
    %8 = arith.xori %6, %7 : i1
    %9 = arith.andi %8, %5 : i1
    %10 = arith.addi %4, %3 : i32
    %11 = arith.select %9, %10, %4 : i32
    %c0_i32_5 = arith.constant 0 : i32
    %c0_i32_6 = arith.constant 0 : i32
    %c0_i32_7 = arith.constant 0 : i32
    return %arg0, %11, %c0_i32_5, %c0_i32_6 : i32, i32, i32, i32
  }
  func.func @transform_2(%arg0: i32, %arg1: i32) -> (i32, i32, i32, i32) {
    %c1_i32 = arith.constant 1 : i32
    %0 = arith.addi %arg1, %c1_i32 : i32
    %c8_i32 = arith.constant 8 : i32
    %1 = arith.muli %0, %c8_i32 : i32
    %c8_i32_0 = arith.constant 8 : i32
    %c0_i32 = arith.constant 0 : i32
    %2 = arith.cmpi eq, %c8_i32_0, %c0_i32 : i32
    %c1_i32_1 = arith.constant 1 : i32
    %3 = arith.select %2, %c1_i32_1, %c8_i32_0 : i32
    %4 = arith.remsi %1, %3 : i32
    %c0_i32_2 = arith.constant 0 : i32
    %5 = arith.cmpi ne, %4, %c0_i32_2 : i32
    %c0_i32_3 = arith.constant 0 : i32
    %6 = arith.cmpi slt, %4, %c0_i32_3 : i32
    %c0_i32_4 = arith.constant 0 : i32
    %7 = arith.cmpi slt, %3, %c0_i32_4 : i32
    %8 = arith.xori %6, %7 : i1
    %9 = arith.andi %8, %5 : i1
    %10 = arith.addi %4, %3 : i32
    %11 = arith.select %9, %10, %4 : i32
    %c0_i32_5 = arith.constant 0 : i32
    %c0_i32_6 = arith.constant 0 : i32
    %c0_i32_7 = arith.constant 0 : i32
    return %arg0, %11, %c0_i32_5, %c0_i32_6 : i32, i32, i32, i32
  }
  func.func @transform_3(%arg0: i32, %arg1: i32) -> (i32, i32, i32) {
    %c0_i32 = arith.constant 0 : i32
    %c0_i32_0 = arith.constant 0 : i32
    %c0_i32_1 = arith.constant 0 : i32
    %c0_i32_2 = arith.constant 0 : i32
    return %c0_i32, %c0_i32_0, %c0_i32_1 : i32, i32, i32
  }
  func.func @transform_4(%arg0: i32, %arg1: i32) -> (i32, i32, i32) {
    %c1_i32 = arith.constant 1 : i32
    %0 = arith.muli %arg0, %c1_i32 : i32
    %1 = arith.addi %0, %arg1 : i32
    %c0_i32 = arith.constant 0 : i32
    %c0_i32_0 = arith.constant 0 : i32
    %c0_i32_1 = arith.constant 0 : i32
    return %1, %c0_i32, %c0_i32_0 : i32, i32, i32
  }
  func.func @transform_5(%arg0: i32, %arg1: i32) -> (i32, i32, i32, i32) {
    %c0_i32 = arith.constant 0 : i32
    %c0_i32_0 = arith.constant 0 : i32
    %c0_i32_1 = arith.constant 0 : i32
    return %arg0, %arg1, %c0_i32, %c0_i32_0 : i32, i32, i32, i32
  }
}

</mosaic_0001>

<llo_original>
// kernel: down_forward.5
$region0: #{down_forward.5}
  #allocation0 [shape = 'u32[]', space=smem, size = 0x4, offset = 0x4, fixed_abs, tag = 'smem constant byte address 0x4 - core index']
  #allocation1 [shape = 'u32[144,128]{1,0:T(1,128)}', space=vmem, size = 0x12000, scoped, tag = 'internal scratch']
  %s0 = inlined_call_operand.vmem [shape: bf16[16,8,8], index: 0, kind: input, shape index: {}]
  %s1 = inlined_call_operand.vmem [shape: f32[1,8], index: 1, kind: input, shape index: {}]
  %s2 = inlined_call_operand.vmem [shape: f32[1,8], index: 2, kind: input, shape index: {}]
  %s3 = inlined_call_operand.vmem [shape: f32[16,8,8], index: 3, kind: output, shape index: {}]
  %s4 = sld [smem:[#allocation0]]
  $region45: #{down_forward.5} parent=0
    _
  %s6 = ssub.s32 1, %s4
  %s7 = scalar_select 0, %s6, %s4
  loop: start=0, step=1, limit=4
  $region2: #{down_forward.5} parent=0 // loop_pre_header
    _
  $region3: #{down_forward.5} parent=0 // loop_header
    %s9 = sphi 0, %s13
    %p10 = scmp.ge.s32.totalorder %s9, 4
    %s16 = sphi 0, %s28
    %s17 = sphi 0, %s24
    %s18 = sphi 0, %s16
    %s19 = sphi 0, %s17
    %s20 = sphi 0, %s18
    %s21 = sphi 0, %s19
    %s33 = sphi 0, %s35
    %s36 = sphi 0, %s33
    %s37 = sphi 0, %s36
    %s53 = sphi 0, %s37
    %s57 = sphi 0, %s57
    %s59 = sphi 0, %s57
    %s60 = sphi 0, %s59
    %s74 = sphi 0, %s60
    %s78 = sphi 0, %s78
    %s80 = sphi 0, %s78
    %s81 = sphi 0, %s80
    %s95 = sphi 0, %s81
    %s103 = sphi 0, %s105
    %s106 = sphi 0, %s103
    %s107 = sphi 0, %s106
    %s123 = sphi 0, %s107
  $region4: #{down_forward.5} parent=0 // loop_header_branch
    %12 = sbr.rel (%p10) target = $region8
  $region5: #{down_forward.5} parent=0 // loop_body
    %s14 = ssub.s32 %s9, 1
    %s15 = ssub.s32 %s9, 2
    %s22 = sadd.s32 1, %s17
    %p23 = scmp.ge.s32.totalorder %s22, 1
    %s24 = scalar_select %p23, 0, %s22
    %s25 = sadd.s32 1, %s16
    %s26 = scalar_select %p23, %s25, %s16
    %p27 = scmp.ge.s32.totalorder %s26, 2
    %s28 = scalar_select %p27, 0, %s26
    %s29 = sadd.s32 %s16, %s17
    %s30 = sadd.s32 %s28, %s24
    %s31 = ssub.s32 %s29, %s30
    %p32 = scmp.eq.s32.totalorder %s31, 0
    %s34 = sadd.s32 %s33, 1
    %s35 = scalar_select %p32, %s33, %s34
    %p38 = pneg %p32
    %p39 = scmp.eq.s32.totalorder %s9, 1
    %p40 = por %p38, %p39
    %p41 = scmp.ne.s32.totalorder %s33, %s36
    %p42 = scmp.eq.s32.totalorder %s9, 0
    %p43 = por %p41, %p42
    %p44 = scmp.ne.s32.totalorder %s33, %s36
    %p45 = scmp.eq.s32.totalorder %s14, 1
    %p46 = por %p44, %p45
    %p47 = scmp.ne.s32.totalorder %s36, %s37
    %p48 = scmp.eq.s32.totalorder %s14, 0
    %p49 = por %p47, %p48
    %p50 = scmp.ne.s32.totalorder %s36, %s37
    %p51 = scmp.eq.s32.totalorder %s15, 1
    %p52 = por %p50, %p51
    %p54 = scmp.ne.s32.totalorder %s37, %s53
    %p55 = scmp.eq.s32.totalorder %s15, 0
    %p56 = por %p54, %p55
    %s58 = sadd.s32 %s57, 1
    %p61 = scmp.eq.s32.totalorder %s9, 1
    %p62 = scmp.ne.s32.totalorder %s57, %s59
    %p63 = scmp.eq.s32.totalorder %s9, 0
    %p64 = por %p62, %p63
    %p65 = scmp.ne.s32.totalorder %s57, %s59
    %p66 = scmp.eq.s32.totalorder %s14, 1
    %p67 = por %p65, %p66
    %p68 = scmp.ne.s32.totalorder %s59, %s60
    %p69 = scmp.eq.s32.totalorder %s14, 0
    %p70 = por %p68, %p69
    %p71 = scmp.ne.s32.totalorder %s59, %s60
    %p72 = scmp.eq.s32.totalorder %s15, 1
    %p73 = por %p71, %p72
    %p75 = scmp.ne.s32.totalorder %s60, %s74
    %p76 = scmp.eq.s32.totalorder %s15, 0
    %p77 = por %p75, %p76
    %s79 = sadd.s32 %s78, 1
    %p82 = scmp.eq.s32.totalorder %s9, 1
    %p83 = scmp.ne.s32.totalorder %s78, %s80
    %p84 = scmp.eq.s32.totalorder %s9, 0
    %p85 = por %p83, %p84
    %p86 = scmp.ne.s32.totalorder %s78, %s80
    %p87 = scmp.eq.s32.totalorder %s14, 1
    %p88 = por %p86, %p87
    %p89 = scmp.ne.s32.totalorder %s80, %s81
    %p90 = scmp.eq.s32.totalorder %s14, 0
    %p91 = por %p89, %p90
    %p92 = scmp.ne.s32.totalorder %s80, %s81
    %p93 = scmp.eq.s32.totalorder %s15, 1
    %p94 = por %p92, %p93
    %p96 = scmp.ne.s32.totalorder %s81, %s95
    %p97 = scmp.eq.s32.totalorder %s15, 0
    %p98 = por %p96, %p97
    %s99 = sadd.s32 %s16, %s17
    %s100 = sadd.s32 %s28, %s24
    %s101 = ssub.s32 %s99, %s100
    %p102 = scmp.eq.s32.totalorder %s101, 0
    %s104 = sadd.s32 %s103, 1
    %s105 = scalar_select %p102, %s103, %s104
    %p108 = pneg %p102
    %p109 = scmp.eq.s32.totalorder %s9, 1
    %p110 = por %p108, %p109
    %p111 = scmp.ne.s32.totalorder %s103, %s106
    %p112 = scmp.eq.s32.totalorder %s9, 0
    %p113 = por %p111, %p112
    %p114 = scmp.ne.s32.totalorder %s103, %s106
    %p115 = scmp.eq.s32.totalorder %s14, 1
    %p116 = por %p114, %p115
    %p117 = scmp.ne.s32.totalorder %s106, %s107
    %p118 = scmp.eq.s32.totalorder %s14, 0
    %p119 = por %p117, %p118
    %p120 = scmp.ne.s32.totalorder %s106, %s107
    %p121 = scmp.eq.s32.totalorder %s15, 1
    %p122 = por %p120, %p121
    %p124 = scmp.ne.s32.totalorder %s107, %s123
    %p125 = scmp.eq.s32.totalorder %s15, 0
    %p126 = por %p124, %p125
    %p127 = scmp.le.s32.totalorder 1, %s9
    %p128 = scmp.lt.s32.totalorder %s9, 3
    %p129 = pnand %p127, %p128
    %p130 = pneg %p129
    // Predicated region
    $region9: #{down_forward.5} parent=5 // pred_check
      _
    $region10: #{down_forward.5} parent=5 // pred_check_branch
      %132 = sbr.rel (%p129) target = $region12
    $region11: #{down_forward.5} parent=5 // pred_region
      %s133 = ssub.s32 %s9, 1
      // Predicated region
      $region13: #{down_forward.5} parent=11 // pred_check
        %p134 = pneg %p70
      $region14: #{down_forward.5} parent=11 // pred_check_branch
        %136 = sbr.rel (%p134) target = $region16
      $region15: #{down_forward.5} parent=11 // pred_region
        _
      $region16: #{down_forward.5} parent=11 // pred_fallthru
        _
      // Predicated region
      $region17: #{down_forward.5} parent=11 // pred_check
        %p137 = pneg %p91
      $region18: #{down_forward.5} parent=11 // pred_check_branch
        %139 = sbr.rel (%p137) target = $region20
      $region19: #{down_forward.5} parent=11 // pred_region
        _
      $region20: #{down_forward.5} parent=11 // pred_fallthru
        _
    $region12: #{down_forward.5} parent=5 // pred_fallthru
      _
    %p140 = scmp.lt.s32.totalorder %s9, 2
    // Predicated region
    $region21: #{down_forward.5} parent=5 // pred_check
      %p141 = pneg %p140
    $region22: #{down_forward.5} parent=5 // pred_check_branch
      %143 = sbr.rel (%p141) target = $region24
    $region23: #{down_forward.5} parent=5 // pred_region
      // Predicated region
      $region25: #{down_forward.5} parent=23 // pred_check
        %p144 = pneg %p43
      $region26: #{down_forward.5} parent=23 // pred_check_branch
        %146 = sbr.rel (%p144) target = $region28
      $region27: #{down_forward.5} parent=23 // pred_region
        %s147 = sadd.s32 %s16, %s17
        %s148 = smul.u32 8, %s147
        %p149 = scmp.lt.s32.totalorder %s148, 15
        %s150 = scalar_select %p149, %s148, 15
        %s151 = smul.addr %s150, 4
        %s152 = scalar_lea.vmem %s0, %s151
        %s153 = sadd.s32 %s16, %s17
        %s154 = smul.u32 8, %s153
      $region28: #{down_forward.5} parent=23 // pred_fallthru
        _
    $region24: #{down_forward.5} parent=5 // pred_fallthru
      _
    %p155 = scmp.le.s32.totalorder 1, %s9
    %p156 = scmp.lt.s32.totalorder %s9, 3
    %p157 = pnand %p155, %p156
    %p158 = pneg %p157
    // Predicated region
    $region29: #{down_forward.5} parent=5 // pred_check
      _
    $region30: #{down_forward.5} parent=5 // pred_check_branch
      %160 = sbr.rel (%p157) target = $region32
    $region31: #{down_forward.5} parent=5 // pred_region
      %s161 = ssub.s32 %s9, 1
      %s162 = sadd.s32 %s18, %s19
      %s163 = smul.u32 8, %s162
      %p164 = scmp.lt.s32.totalorder %s163, 15
      %s165 = scalar_select %p164, %s163, 15
      %s166 = smul.addr %s165, 4
      %s167 = scalar_lea.vmem %s0, %s166
      %p168 = pneg %p49
      %p169 = pneg %p46
      %p170 = pneg %p70
      %p171 = pneg %p67
      %p172 = pneg %p91
      %p173 = pneg %p88
      %p174 = pneg %p119
      %p175 = pneg %p116
      %s176 = sadd.s32 %s18, %s19
      %s177 = smul.u32 8, %s176
      %p178 = scmp.lt.s32.totalorder %s177, 15
      %s179 = scalar_select %p178, %s177, 15
      %s180 = smul.addr %s179, 8
      %s181 = scalar_lea.vmem %s3, %s180
      %s182 = sadd.s32 %s18, %s19
      %s183 = smul.u32 8, %s182
      %p184 = scmp.lt.s32.totalorder %s183, 15
      %s185 = scalar_select %p184, %s183, 15
      %s186 = smul.addr %s185, 4
      %s187 = scalar_lea.vmem %s0, %s186
      %s188 = sadd.s32 %s18, %s19
      %s189 = smul.u32 8, %s188
      %s190 = sadd.s32 %s18, %s19
      %s191 = smul.u32 8, %s190
      %p192 = scmp.lt.s32.totalorder %s191, 15
      %s193 = scalar_select %p192, %s191, 15
      %s194 = smul.addr %s193, 8
      %s195 = scalar_lea.vmem %s3, %s194
      %s196 = sadd.s32 %s18, %s19
      %s197 = smul.u32 8, %s196
      %v198 = vld [vmem:[%s187] sm:$0xf]
      %v199 = vld [vmem:[%s187 + $0x4] sm:$0xf]
      %v200 = vld [vmem:[%s187 + $0x8] sm:$0xf]
      %v201 = vld [vmem:[%s187 + $0xc] sm:$0xf]
      %v202 = vld [vmem:[%s187 + $0x10] sm:$0xf]
      %v203 = vld [vmem:[%s187 + $0x14] sm:$0xf]
      %v204 = vld [vmem:[%s187 + $0x18] sm:$0xf]
      %v205 = vld [vmem:[%s187 + $0x1c] sm:$0xf]
      %v206 = vunpack.c.l.bf16 %v198
      %v207 = vunpack.c.l.bf16 %v199
      %v208 = vunpack.c.l.bf16 %v200
      %v209 = vunpack.c.l.bf16 %v201
      %v210 = vunpack.c.l.bf16 %v202
      %v211 = vunpack.c.l.bf16 %v203
      %v212 = vunpack.c.l.bf16 %v204
      %v213 = vunpack.c.l.bf16 %v205
      %v214 = vld [vmem:[%s1] sm:$0x1]
      %v216 = vlaneseq
      %v217 = vshrl.u32 %v216, 7
      %v218 = vsub.s32 0, %v217
      %v219 = vrot.slane %v214, %v218
      %v221 = vmul.f32 %v206, %v219
      %v222 = vmul.f32 %v207, %v219
      %v223 = vmul.f32 %v208, %v219
      %v224 = vmul.f32 %v209, %v219
      %v225 = vmul.f32 %v210, %v219
      %v226 = vmul.f32 %v211, %v219
      %v227 = vmul.f32 %v212, %v219
      %v228 = vmul.f32 %v213, %v219
      %v229 = vld [vmem:[%s2] sm:$0x1]
      %v231 = vlaneseq
      %v232 = vshrl.u32 %v231, 7
      %v233 = vsub.s32 0, %v232
      %v234 = vrot.slane %v229, %v233
      %v236 = vadd.f32 %v221, %v234
      %v237 = vadd.f32 %v222, %v234
      %v238 = vadd.f32 %v223, %v234
      %v239 = vadd.f32 %v224, %v234
      %v240 = vadd.f32 %v225, %v234
      %v241 = vadd.f32 %v226, %v234
      %v242 = vadd.f32 %v227, %v234
      %v243 = vadd.f32 %v228, %v234
      %v244 = vmax.f32 %v236, 0.0
      %v245 = vmax.f32 %v237, 0.0
      %v246 = vmax.f32 %v238, 0.0
      %v247 = vmax.f32 %v239, 0.0
      %v248 = vmax.f32 %v240, 0.0
      %v249 = vmax.f32 %v241, 0.0
      %v250 = vmax.f32 %v242, 0.0
      %v251 = vmax.f32 %v243, 0.0
      %vm252 = vcmask 64512
      %253 = vst.msk [vmem:[%s195] sm:$0xff] %vm252, %v244
      %254 = vst.msk [vmem:[%s195 + $0x8] sm:$0xff] %vm252, %v245
      %255 = vst.msk [vmem:[%s195 + $0x10] sm:$0xff] %vm252, %v246
      %256 = vst.msk [vmem:[%s195 + $0x18] sm:$0xff] %vm252, %v247
      %257 = vst.msk [vmem:[%s195 + $0x20] sm:$0xff] %vm252, %v248
      %258 = vst.msk [vmem:[%s195 + $0x28] sm:$0xff] %vm252, %v249
      %259 = vst.msk [vmem:[%s195 + $0x30] sm:$0xff] %vm252, %v250
      %260 = vst.msk [vmem:[%s195 + $0x38] sm:$0xff] %vm252, %v251
      %s261 = sadd.s32 %s18, %s19
      %s262 = smul.u32 8, %s261
      %p263 = scmp.lt.s32.totalorder %s262, 15
      %s264 = scalar_select %p263, %s262, 15
      %s265 = smul.addr %s264, 8
      %s266 = scalar_lea.vmem %s3, %s265
      // Predicated region
      $region33: #{down_forward.5} parent=31 // pred_check
        %p267 = pneg %p116
      $region34: #{down_forward.5} parent=31 // pred_check_branch
        %269 = sbr.rel (%p267) target = $region36
      $region35: #{down_forward.5} parent=31 // pred_region
        %s270 = sadd.s32 %s18, %s19
        %s271 = smul.u32 8, %s270
      $region36: #{down_forward.5} parent=31 // pred_fallthru
        _
    $region32: #{down_forward.5} parent=5 // pred_fallthru
      _
    %p272 = scmp.le.s32.totalorder 2, %s9
    // Predicated region
    $region37: #{down_forward.5} parent=5 // pred_check
      %p273 = pneg %p272
    $region38: #{down_forward.5} parent=5 // pred_check_branch
      %275 = sbr.rel (%p273) target = $region40
    $region39: #{down_forward.5} parent=5 // pred_region
      %s276 = ssub.s32 %s9, 2
      // Predicated region
      $region41: #{down_forward.5} parent=39 // pred_check
        %p277 = pneg %p122
      $region42: #{down_forward.5} parent=39 // pred_check_branch
        %279 = sbr.rel (%p277) target = $region44
      $region43: #{down_forward.5} parent=39 // pred_region
        %s280 = sadd.s32 %s20, %s21
        %s281 = smul.u32 8, %s280
        %p282 = scmp.lt.s32.totalorder %s281, 15
        %s283 = scalar_select %p282, %s281, 15
        %s284 = smul.addr %s283, 8
        %s285 = scalar_lea.vmem %s3, %s284
      $region44: #{down_forward.5} parent=39 // pred_fallthru
        _
    $region40: #{down_forward.5} parent=5 // pred_fallthru
      _
  $region6: #{down_forward.5} parent=0 // loop_footer
    %s13 = sadd.s32 1, %s9
  $region7: #{down_forward.5} parent=0 // loop_footer_branch
    %8 = sbr.rel target = $region3
  $region8: #{down_forward.5} parent=0 // loop_exit
    _

// kernel: down_forward.4
$region0: #{down_forward.4}
  #allocation0 [shape = 'u32[]', space=smem, size = 0x4, offset = 0x4, fixed_abs, tag = 'smem constant byte address 0x4 - core index']
  #allocation1 [shape = 'u32[144,128]{1,0:T(1,128)}', space=vmem, size = 0x12000, scoped, tag = 'internal scratch']
  %s0 = inlined_call_operand.vmem [shape: bf16[16,8,8], index: 0, kind: input, shape index: {}, may-alias: {0,1,2}]
  %s1 = inlined_call_operand.vmem [shape: bf16[16,8,8], index: 1, kind: input, shape index: {}, may-alias: {0,1,2}]
  %s2 = inlined_call_operand.vmem [shape: bf16[16,8,8], index: 2, kind: input, shape index: {}, may-alias: {0,1,2}]
  %s3 = inlined_call_operand.vmem [shape: f32[1,8], index: 3, kind: input, shape index: {}]
  %s4 = inlined_call_operand.vmem [shape: f32[1,8], index: 4, kind: input, shape index: {}]
  %s5 = inlined_call_operand.vmem [shape: bf16[3,24,8], index: 5, kind: input, shape index: {}]
  %s6 = inlined_call_operand.vmem [shape: bf16[16,8,8], index: 6, kind: output, shape index: {0}]
  %s7 = inlined_call_operand.vmem [shape: f32[2,1,2,8], index: 7, kind: output, shape index: {1}]
  %8 = xla_tuple %s6, %s7
  %s9 = sld [smem:[#allocation0]]
  $region65: #{down_forward.4} parent=0
    _
  %s11 = ssub.s32 1, %s9
  %s12 = scalar_select 0, %s11, %s9
  loop: start=0, step=1, limit=4
  $region2: #{down_forward.4} parent=0 // loop_pre_header
    _
  $region3: #{down_forward.4} parent=0 // loop_header
    %s14 = sphi 0, %s18
    %p15 = scmp.ge.s32.totalorder %s14, 4
    %s21 = sphi 0, %s33
    %s22 = sphi 0, %s29
    %s23 = sphi 0, %s21
    %s24 = sphi 0, %s22
    %s25 = sphi 0, %s23
    %s26 = sphi 0, %s24
    %s38 = sphi 0, %s40
    %s41 = sphi 0, %s38
    %s42 = sphi 0, %s41
    %s58 = sphi 0, %s42
    %s96 = sphi 0, %s98
    %s99 = sphi 0, %s96
    %s100 = sphi 0, %s99
    %s116 = sphi 0, %s100
    %s154 = sphi 0, %s156
    %s157 = sphi 0, %s154
    %s158 = sphi 0, %s157
    %s174 = sphi 0, %s158
    %s178 = sphi 0, %s178
    %s180 = sphi 0, %s178
    %s181 = sphi 0, %s180
    %s195 = sphi 0, %s181
    %s199 = sphi 0, %s199
    %s201 = sphi 0, %s199
    %s202 = sphi 0, %s201
    %s216 = sphi 0, %s202
    %s220 = sphi 0, %s220
    %s222 = sphi 0, %s220
    %s223 = sphi 0, %s222
    %s237 = sphi 0, %s223
    %s245 = sphi 0, %s247
    %s248 = sphi 0, %s245
    %s249 = sphi 0, %s248
    %s265 = sphi 0, %s249
    %s273 = sphi 0, %s275
    %s276 = sphi 0, %s273
    %s277 = sphi 0, %s276
    %s293 = sphi 0, %s277
  $region4: #{down_forward.4} parent=0 // loop_header_branch
    %17 = sbr.rel (%p15) target = $region8
  $region5: #{down_forward.4} parent=0 // loop_body
    %s19 = ssub.s32 %s14, 1
    %s20 = ssub.s32 %s14, 2
    %s27 = sadd.s32 1, %s22
    %p28 = scmp.ge.s32.totalorder %s27, 1
    %s29 = scalar_select %p28, 0, %s27
    %s30 = sadd.s32 1, %s21
    %s31 = scalar_select %p28, %s30, %s21
    %p32 = scmp.ge.s32.totalorder %s31, 2
    %s33 = scalar_select %p32, 0, %s31
    %s34 = sadd.s32 %s21, %s22
    %s35 = sadd.s32 %s33, %s29
    %s36 = ssub.s32 %s34, %s35
    %p37 = scmp.eq.s32.totalorder %s36, 0
    %s39 = sadd.s32 %s38, 1
    %s40 = scalar_select %p37, %s38, %s39
    %p43 = pneg %p37
    %p44 = scmp.eq.s32.totalorder %s14, 1
    %p45 = por %p43, %p44
    %p46 = scmp.ne.s32.totalorder %s38, %s41
    %p47 = scmp.eq.s32.totalorder %s14, 0
    %p48 = por %p46, %p47
    %p49 = scmp.ne.s32.totalorder %s38, %s41
    %p50 = scmp.eq.s32.totalorder %s19, 1
    %p51 = por %p49, %p50
    %p52 = scmp.ne.s32.totalorder %s41, %s42
    %p53 = scmp.eq.s32.totalorder %s19, 0
    %p54 = por %p52, %p53
    %p55 = scmp.ne.s32.totalorder %s41, %s42
    %p56 = scmp.eq.s32.totalorder %s20, 1
    %p57 = por %p55, %p56
    %p59 = scmp.ne.s32.totalorder %s42, %s58
    %p60 = scmp.eq.s32.totalorder %s20, 0
    %p61 = por %p59, %p60
    %s62 = smul.u32 %s21, 8
    %s63 = smul.u32 %s22, 8
    %s64 = ssub.s32 %s63, 1
    %p65 = scmp.lt.s32.totalorder %s64, 0
    %s66 = ssub.s32 0, %s64
    %s67 = scalar_select %p65, %s66, %s64
    %s68 = sand.u32 %s67, 7
    %s69 = ssub.s32 0, %s68
    %s70 = scalar_select %p65, %s69, %s68
    %p71 = scmp.ne.s32.totalorder %s70, 0
    %p72 = scmp.lt.s32.totalorder %s70, 0
    %p73 = pnand %p72, %p71
    %p74 = pneg %p73
    %s75 = sadd.s32 %s70, 8
    %s76 = scalar_select %p74, %s75, %s70
    %s77 = sadd.s32 %s62, %s76
    %s78 = smul.u32 %s33, 8
    %s79 = smul.u32 %s29, 8
    %s80 = ssub.s32 %s79, 1
    %p81 = scmp.lt.s32.totalorder %s80, 0
    %s82 = ssub.s32 0, %s80
    %s83 = scalar_select %p81, %s82, %s80
    %s84 = sand.u32 %s83, 7
    %s85 = ssub.s32 0, %s84
    %s86 = scalar_select %p81, %s85, %s84
    %p87 = scmp.ne.s32.totalorder %s86, 0
    %p88 = scmp.lt.s32.totalorder %s86, 0
    %p89 = pnand %p88, %p87
    %p90 = pneg %p89
    %s91 = sadd.s32 %s86, 8
    %s92 = scalar_select %p90, %s91, %s86
    %s93 = sadd.s32 %s78, %s92
    %s94 = ssub.s32 %s77, %s93
    %p95 = scmp.eq.s32.totalorder %s94, 0
    %s97 = sadd.s32 %s96, 1
    %s98 = scalar_select %p95, %s96, %s97
    %p101 = pneg %p95
    %p102 = scmp.eq.s32.totalorder %s14, 1
    %p103 = por %p101, %p102
    %p104 = scmp.ne.s32.totalorder %s96, %s99
    %p105 = scmp.eq.s32.totalorder %s14, 0
    %p106 = por %p104, %p105
    %p107 = scmp.ne.s32.totalorder %s96, %s99
    %p108 = scmp.eq.s32.totalorder %s19, 1
    %p109 = por %p107, %p108
    %p110 = scmp.ne.s32.totalorder %s99, %s100
    %p111 = scmp.eq.s32.totalorder %s19, 0
    %p112 = por %p110, %p111
    %p113 = scmp.ne.s32.totalorder %s99, %s100
    %p114 = scmp.eq.s32.totalorder %s20, 1
    %p115 = por %p113, %p114
    %p117 = scmp.ne.s32.totalorder %s100, %s116
    %p118 = scmp.eq.s32.totalorder %s20, 0
    %p119 = por %p117, %p118
    %s120 = smul.u32 %s21, 8
    %s121 = sadd.s32 %s22, 1
    %s122 = smul.u32 %s121, 8
    %p123 = scmp.lt.s32.totalorder %s122, 0
    %s124 = ssub.s32 0, %s122
    %s125 = scalar_select %p123, %s124, %s122
    %s126 = sand.u32 %s125, 7
    %s127 = ssub.s32 0, %s126
    %s128 = scalar_select %p123, %s127, %s126
    %p129 = scmp.ne.s32.totalorder %s128, 0
    %p130 = scmp.lt.s32.totalorder %s128, 0
    %p131 = pnand %p130, %p129
    %p132 = pneg %p131
    %s133 = sadd.s32 %s128, 8
    %s134 = scalar_select %p132, %s133, %s128
    %s135 = sadd.s32 %s120, %s134
    %s136 = smul.u32 %s33, 8
    %s137 = sadd.s32 %s29, 1
    %s138 = smul.u32 %s137, 8
    %p139 = scmp.lt.s32.totalorder %s138, 0
    %s140 = ssub.s32 0, %s138
    %s141 = scalar_select %p139, %s140, %s138
    %s142 = sand.u32 %s141, 7
    %s143 = ssub.s32 0, %s142
    %s144 = scalar_select %p139, %s143, %s142
    %p145 = scmp.ne.s32.totalorder %s144, 0
    %p146 = scmp.lt.s32.totalorder %s144, 0
    %p147 = pnand %p146, %p145
    %p148 = pneg %p147
    %s149 = sadd.s32 %s144, 8
    %s150 = scalar_select %p148, %s149, %s144
    %s151 = sadd.s32 %s136, %s150
    %s152 = ssub.s32 %s135, %s151
    %p153 = scmp.eq.s32.totalorder %s152, 0
    %s155 = sadd.s32 %s154, 1
    %s156 = scalar_select %p153, %s154, %s155
    %p159 = pneg %p153
    %p160 = scmp.eq.s32.totalorder %s14, 1
    %p161 = por %p159, %p160
    %p162 = scmp.ne.s32.totalorder %s154, %s157
    %p163 = scmp.eq.s32.totalorder %s14, 0
    %p164 = por %p162, %p163
    %p165 = scmp.ne.s32.totalorder %s154, %s157
    %p166 = scmp.eq.s32.totalorder %s19, 1
    %p167 = por %p165, %p166
    %p168 = scmp.ne.s32.totalorder %s157, %s158
    %p169 = scmp.eq.s32.totalorder %s19, 0
    %p170 = por %p168, %p169
    %p171 = scmp.ne.s32.totalorder %s157, %s158
    %p172 = scmp.eq.s32.totalorder %s20, 1
    %p173 = por %p171, %p172
    %p175 = scmp.ne.s32.totalorder %s158, %s174
    %p176 = scmp.eq.s32.totalorder %s20, 0
    %p177 = por %p175, %p176
    %s179 = sadd.s32 %s178, 1
    %p182 = scmp.eq.s32.totalorder %s14, 1
    %p183 = scmp.ne.s32.totalorder %s178, %s180
    %p184 = scmp.eq.s32.totalorder %s14, 0
    %p185 = por %p183, %p184
    %p186 = scmp.ne.s32.totalorder %s178, %s180
    %p187 = scmp.eq.s32.totalorder %s19, 1
    %p188 = por %p186, %p187
    %p189 = scmp.ne.s32.totalorder %s180, %s181
    %p190 = scmp.eq.s32.totalorder %s19, 0
    %p191 = por %p189, %p190
    %p192 = scmp.ne.s32.totalorder %s180, %s181
    %p193 = scmp.eq.s32.totalorder %s20, 1
    %p194 = por %p192, %p193
    %p196 = scmp.ne.s32.totalorder %s181, %s195
    %p197 = scmp.eq.s32.totalorder %s20, 0
    %p198 = por %p196, %p197
    %s200 = sadd.s32 %s199, 1
    %p203 = scmp.eq.s32.totalorder %s14, 1
    %p204 = scmp.ne.s32.totalorder %s199, %s201
    %p205 = scmp.eq.s32.totalorder %s14, 0
    %p206 = por %p204, %p205
    %p207 = scmp.ne.s32.totalorder %s199, %s201
    %p208 = scmp.eq.s32.totalorder %s19, 1
    %p209 = por %p207, %p208
    %p210 = scmp.ne.s32.totalorder %s201, %s202
    %p211 = scmp.eq.s32.totalorder %s19, 0
    %p212 = por %p210, %p211
    %p213 = scmp.ne.s32.totalorder %s201, %s202
    %p214 = scmp.eq.s32.totalorder %s20, 1
    %p215 = por %p213, %p214
    %p217 = scmp.ne.s32.totalorder %s202, %s216
    %p218 = scmp.eq.s32.totalorder %s20, 0
    %p219 = por %p217, %p218
    %s221 = sadd.s32 %s220, 1
    %p224 = scmp.eq.s32.totalorder %s14, 1
    %p225 = scmp.ne.s32.totalorder %s220, %s222
    %p226 = scmp.eq.s32.totalorder %s14, 0
    %p227 = por %p225, %p226
    %p228 = scmp.ne.s32.totalorder %s220, %s222
    %p229 = scmp.eq.s32.totalorder %s19, 1
    %p230 = por %p228, %p229
    %p231 = scmp.ne.s32.totalorder %s222, %s223
    %p232 = scmp.eq.s32.totalorder %s19, 0
    %p233 = por %p231, %p232
    %p234 = scmp.ne.s32.totalorder %s222, %s223
    %p235 = scmp.eq.s32.totalorder %s20, 1
    %p236 = por %p234, %p235
    %p238 = scmp.ne.s32.totalorder %s223, %s237
    %p239 = scmp.eq.s32.totalorder %s20, 0
    %p240 = por %p238, %p239
    %s241 = sadd.s32 %s21, %s22
    %s242 = sadd.s32 %s33, %s29
    %s243 = ssub.s32 %s241, %s242
    %p244 = scmp.eq.s32.totalorder %s243, 0
    %s246 = sadd.s32 %s245, 1
    %s247 = scalar_select %p244, %s245, %s246
    %p250 = pneg %p244
    %p251 = scmp.eq.s32.totalorder %s14, 1
    %p252 = por %p250, %p251
    %p253 = scmp.ne.s32.totalorder %s245, %s248
    %p254 = scmp.eq.s32.totalorder %s14, 0
    %p255 = por %p253, %p254
    %p256 = scmp.ne.s32.totalorder %s245, %s248
    %p257 = scmp.eq.s32.totalorder %s19, 1
    %p258 = por %p256, %p257
    %p259 = scmp.ne.s32.totalorder %s248, %s249
    %p260 = scmp.eq.s32.totalorder %s19, 0
    %p261 = por %p259, %p260
    %p262 = scmp.ne.s32.totalorder %s248, %s249
    %p263 = scmp.eq.s32.totalorder %s20, 1
    %p264 = por %p262, %p263
    %p266 = scmp.ne.s32.totalorder %s249, %s265
    %p267 = scmp.eq.s32.totalorder %s20, 0
    %p268 = por %p266, %p267
    %s269 = ssub.s32 %s21, %s33
    %s270 = ssub.s32 %s22, %s29
    %s271 = sor.u32 %s269, %s270
    %p272 = scmp.eq.s32.totalorder %s271, 0
    %s274 = sadd.s32 %s273, 1
    %s275 = scalar_select %p272, %s273, %s274
    %p278 = pneg %p272
    %p279 = scmp.eq.s32.totalorder %s14, 1
    %p280 = por %p278, %p279
    %p281 = scmp.ne.s32.totalorder %s273, %s276
    %p282 = scmp.eq.s32.totalorder %s14, 0
    %p283 = por %p281, %p282
    %p284 = scmp.ne.s32.totalorder %s273, %s276
    %p285 = scmp.eq.s32.totalorder %s19, 1
    %p286 = por %p284, %p285
    %p287 = scmp.ne.s32.totalorder %s276, %s277
    %p288 = scmp.eq.s32.totalorder %s19, 0
    %p289 = por %p287, %p288
    %p290 = scmp.ne.s32.totalorder %s276, %s277
    %p291 = scmp.eq.s32.totalorder %s20, 1
    %p292 = por %p290, %p291
    %p294 = scmp.ne.s32.totalorder %s277, %s293
    %p295 = scmp.eq.s32.totalorder %s20, 0
    %p296 = por %p294, %p295
    %p297 = scmp.le.s32.totalorder 1, %s14
    %p298 = scmp.lt.s32.totalorder %s14, 3
    %p299 = pnand %p297, %p298
    %p300 = pneg %p299
    // Predicated region
    $region9: #{down_forward.4} parent=5 // pred_check
      _
    $region10: #{down_forward.4} parent=5 // pred_check_branch
      %302 = sbr.rel (%p299) target = $region12
    $region11: #{down_forward.4} parent=5 // pred_region
      %s303 = ssub.s32 %s14, 1
      // Predicated region
      $region13: #{down_forward.4} parent=11 // pred_check
        %p304 = pneg %p191
      $region14: #{down_forward.4} parent=11 // pred_check_branch
        %306 = sbr.rel (%p304) target = $region16
      $region15: #{down_forward.4} parent=11 // pred_region
        _
      $region16: #{down_forward.4} parent=11 // pred_fallthru
        _
      // Predicated region
      $region17: #{down_forward.4} parent=11 // pred_check
        %p307 = pneg %p212
      $region18: #{down_forward.4} parent=11 // pred_check_branch
        %309 = sbr.rel (%p307) target = $region20
      $region19: #{down_forward.4} parent=11 // pred_region
        _
      $region20: #{down_forward.4} parent=11 // pred_fallthru
        _
      // Predicated region
      $region21: #{down_forward.4} parent=11 // pred_check
        %p310 = pneg %p233
      $region22: #{down_forward.4} parent=11 // pred_check_branch
        %312 = sbr.rel (%p310) target = $region24
      $region23: #{down_forward.4} parent=11 // pred_region
        _
      $region24: #{down_forward.4} parent=11 // pred_fallthru
        _
    $region12: #{down_forward.4} parent=5 // pred_fallthru
      _
    %p313 = scmp.lt.s32.totalorder %s14, 2
    // Predicated region
    $region25: #{down_forward.4} parent=5 // pred_check
      %p314 = pneg %p313
    $region26: #{down_forward.4} parent=5 // pred_check_branch
      %316 = sbr.rel (%p314) target = $region28
    $region27: #{down_forward.4} parent=5 // pred_region
      // Predicated region
      $region29: #{down_forward.4} parent=27 // pred_check
        %p317 = pneg %p48
      $region30: #{down_forward.4} parent=27 // pred_check_branch
        %319 = sbr.rel (%p317) target = $region32
      $region31: #{down_forward.4} parent=27 // pred_region
        %s320 = sadd.s32 %s21, %s22
        %s321 = smul.u32 8, %s320
        %p322 = scmp.lt.s32.totalorder %s321, 15
        %s323 = scalar_select %p322, %s321, 15
        %s324 = smul.addr %s323, 4
        %s325 = scalar_lea.vmem %s0, %s324
        %s326 = sadd.s32 %s21, %s22
        %s327 = smul.u32 8, %s326
      $region32: #{down_forward.4} parent=27 // pred_fallthru
        _
      // Predicated region
      $region33: #{down_forward.4} parent=27 // pred_check
        %p328 = pneg %p106
      $region34: #{down_forward.4} parent=27 // pred_check_branch
        %330 = sbr.rel (%p328) target = $region36
      $region35: #{down_forward.4} parent=27 // pred_region
        %s331 = smul.u32 %s21, 8
        %s332 = smul.u32 %s22, 8
        %s333 = ssub.s32 %s332, 1
        %p334 = scmp.lt.s32.totalorder %s333, 0
        %s335 = ssub.s32 0, %s333
        %s336 = scalar_select %p334, %s335, %s333
        %s337 = sand.u32 %s336, 7
        %s338 = ssub.s32 0, %s337
        %s339 = scalar_select %p334, %s338, %s337
        %p340 = scmp.ne.s32.totalorder %s339, 0
        %p341 = scmp.lt.s32.totalorder %s339, 0
        %p342 = pnand %p341, %p340
        %p343 = pneg %p342
        %s344 = sadd.s32 %s339, 8
        %s345 = scalar_select %p343, %s344, %s339
        %s346 = sadd.s32 %s331, %s345
        %p347 = scmp.lt.s32.totalorder %s346, 15
        %s348 = scalar_select %p347, %s346, 15
        %s349 = smul.addr %s348, 4
        %s350 = scalar_lea.vmem %s1, %s349
        %s351 = smul.u32 %s21, 8
        %s352 = smul.u32 %s22, 8
        %s353 = ssub.s32 %s352, 1
        %p354 = scmp.lt.s32.totalorder %s353, 0
        %s355 = ssub.s32 0, %s353
        %s356 = scalar_select %p354, %s355, %s353
        %s357 = sand.u32 %s356, 7
        %s358 = ssub.s32 0, %s357
        %s359 = scalar_select %p354, %s358, %s357
        %p360 = scmp.ne.s32.totalorder %s359, 0
        %p361 = scmp.lt.s32.totalorder %s359, 0
        %p362 = pnand %p361, %p360
        %p363 = pneg %p362
        %s364 = sadd.s32 %s359, 8
        %s365 = scalar_select %p363, %s364, %s359
        %s366 = sadd.s32 %s351, %s365
      $region36: #{down_forward.4} parent=27 // pred_fallthru
        _
      // Predicated region
      $region37: #{down_forward.4} parent=27 // pred_check
        %p367 = pneg %p164
      $region38: #{down_forward.4} parent=27 // pred_check_branch
        %369 = sbr.rel (%p367) target = $region40
      $region39: #{down_forward.4} parent=27 // pred_region
        %s370 = smul.u32 %s21, 8
        %s371 = sadd.s32 %s22, 1
        %s372 = smul.u32 %s371, 8
        %p373 = scmp.lt.s32.totalorder %s372, 0
        %s374 = ssub.s32 0, %s372
        %s375 = scalar_select %p373, %s374, %s372
        %s376 = sand.u32 %s375, 7
        %s377 = ssub.s32 0, %s376
        %s378 = scalar_select %p373, %s377, %s376
        %p379 = scmp.ne.s32.totalorder %s378, 0
        %p380 = scmp.lt.s32.totalorder %s378, 0
        %p381 = pnand %p380, %p379
        %p382 = pneg %p381
        %s383 = sadd.s32 %s378, 8
        %s384 = scalar_select %p382, %s383, %s378
        %s385 = sadd.s32 %s370, %s384
        %p386 = scmp.lt.s32.totalorder %s385, 15
        %s387 = scalar_select %p386, %s385, 15
        %s388 = smul.addr %s387, 4
        %s389 = scalar_lea.vmem %s2, %s388
        %s390 = smul.u32 %s21, 8
        %s391 = sadd.s32 %s22, 1
        %s392 = smul.u32 %s391, 8
        %p393 = scmp.lt.s32.totalorder %s392, 0
        %s394 = ssub.s32 0, %s392
        %s395 = scalar_select %p393, %s394, %s392
        %s396 = sand.u32 %s395, 7
        %s397 = ssub.s32 0, %s396
        %s398 = scalar_select %p393, %s397, %s396
        %p399 = scmp.ne.s32.totalorder %s398, 0
        %p400 = scmp.lt.s32.totalorder %s398, 0
        %p401 = pnand %p400, %p399
        %p402 = pneg %p401
        %s403 = sadd.s32 %s398, 8
        %s404 = scalar_select %p402, %s403, %s398
        %s405 = sadd.s32 %s390, %s404
      $region40: #{down_forward.4} parent=27 // pred_fallthru
        _
    $region28: #{down_forward.4} parent=5 // pred_fallthru
      _
    %p406 = scmp.le.s32.totalorder 1, %s14
    %p407 = scmp.lt.s32.totalorder %s14, 3
    %p408 = pnand %p406, %p407
    %p409 = pneg %p408
    // Predicated region
    $region41: #{down_forward.4} parent=5 // pred_check
      _
    $region42: #{down_forward.4} parent=5 // pred_check_branch
      %411 = sbr.rel (%p408) target = $region44
    $region43: #{down_forward.4} parent=5 // pred_region
      %s412 = ssub.s32 %s14, 1
      %s413 = sadd.s32 %s23, %s24
      %s414 = smul.u32 8, %s413
      %p415 = scmp.lt.s32.totalorder %s414, 15
      %s416 = scalar_select %p415, %s414, 15
      %s417 = smul.addr %s416, 4
      %s418 = scalar_lea.vmem %s0, %s417
      %p419 = pneg %p54
      %p420 = pneg %p51
      %s421 = smul.u32 %s23, 8
      %s422 = smul.u32 %s24, 8
      %s423 = ssub.s32 %s422, 1
      %p424 = scmp.lt.s32.totalorder %s423, 0
      %s425 = ssub.s32 0, %s423
      %s426 = scalar_select %p424, %s425, %s423
      %s427 = sand.u32 %s426, 7
      %s428 = ssub.s32 0, %s427
      %s429 = scalar_select %p424, %s428, %s427
      %p430 = scmp.ne.s32.totalorder %s429, 0
      %p431 = scmp.lt.s32.totalorder %s429, 0
      %p432 = pnand %p431, %p430
      %p433 = pneg %p432
      %s434 = sadd.s32 %s429, 8
      %s435 = scalar_select %p433, %s434, %s429
      %s436 = sadd.s32 %s421, %s435
      %p437 = scmp.lt.s32.totalorder %s436, 15
      %s438 = scalar_select %p437, %s436, 15
      %s439 = smul.addr %s438, 4
      %s440 = scalar_lea.vmem %s1, %s439
      %p441 = pneg %p112
      %p442 = pneg %p109
      %s443 = smul.u32 %s23, 8
      %s444 = sadd.s32 %s24, 1
      %s445 = smul.u32 %s444, 8
      %p446 = scmp.lt.s32.totalorder %s445, 0
      %s447 = ssub.s32 0, %s445
      %s448 = scalar_select %p446, %s447, %s445
      %s449 = sand.u32 %s448, 7
      %s450 = ssub.s32 0, %s449
      %s451 = scalar_select %p446, %s450, %s449
      %p452 = scmp.ne.s32.totalorder %s451, 0
      %p453 = scmp.lt.s32.totalorder %s451, 0
      %p454 = pnand %p453, %p452
      %p455 = pneg %p454
      %s456 = sadd.s32 %s451, 8
      %s457 = scalar_select %p455, %s456, %s451
      %s458 = sadd.s32 %s443, %s457
      %p459 = scmp.lt.s32.totalorder %s458, 15
      %s460 = scalar_select %p459, %s458, 15
      %s461 = smul.addr %s460, 4
      %s462 = scalar_lea.vmem %s2, %s461
      %p463 = pneg %p170
      %p464 = pneg %p167
      %p465 = pneg %p191
      %p466 = pneg %p188
      %p467 = pneg %p212
      %p468 = pneg %p209
      %p469 = pneg %p233
      %p470 = pneg %p230
      %p471 = pneg %p261
      %p472 = pneg %p258
      %s473 = sadd.s32 %s23, %s24
      %s474 = smul.u32 8, %s473
      %p475 = scmp.lt.s32.totalorder %s474, 15
      %s476 = scalar_select %p475, %s474, 15
      %s477 = smul.addr %s476, 4
      %s478 = scalar_lea.vmem %s6, %s477
      %p479 = pneg %p289
      %p480 = pneg %p286
      %p481 = scmp.lt.s32.totalorder %s23, 1
      %s482 = scalar_select %p481, %s23, 1
      %p483 = scmp.lt.s32.totalorder %s24, 0
      %s484 = scalar_select %p483, %s24, 0
      %s485 = sadd.s32 %s484, %s482
      %s486 = smul.addr %s485, 2
      %s487 = scalar_lea.vmem %s7, %s486
      %s488 = sadd.s32 %s23, %s24
      %s489 = smul.u32 8, %s488
      %p490 = scmp.lt.s32.totalorder %s489, 15
      %s491 = scalar_select %p490, %s489, 15
      %s492 = smul.addr %s491, 4
      %s493 = scalar_lea.vmem %s0, %s492
      %s494 = sadd.s32 %s23, %s24
      %s495 = smul.u32 8, %s494
      %s496 = smul.u32 %s23, 8
      %s497 = smul.u32 %s24, 8
      %s498 = ssub.s32 %s497, 1
      %p499 = scmp.lt.s32.totalorder %s498, 0
      %s500 = ssub.s32 0, %s498
      %s501 = scalar_select %p499, %s500, %s498
      %s502 = sand.u32 %s501, 7
      %s503 = ssub.s32 0, %s502
      %s504 = scalar_select %p499, %s503, %s502
      %p505 = scmp.ne.s32.totalorder %s504, 0
      %p506 = scmp.lt.s32.totalorder %s504, 0
      %p507 = pnand %p506, %p505
      %p508 = pneg %p507
      %s509 = sadd.s32 %s504, 8
      %s510 = scalar_select %p508, %s509, %s504
      %s511 = sadd.s32 %s496, %s510
      %p512 = scmp.lt.s32.totalorder %s511, 15
      %s513 = scalar_select %p512, %s511, 15
      %s514 = smul.addr %s513, 4
      %s515 = scalar_lea.vmem %s1, %s514
      %s516 = smul.u32 %s23, 8
      %s517 = smul.u32 %s24, 8
      %s518 = ssub.s32 %s517, 1
      %p519 = scmp.lt.s32.totalorder %s518, 0
      %s520 = ssub.s32 0, %s518
      %s521 = scalar_select %p519, %s520, %s518
      %s522 = sand.u32 %s521, 7
      %s523 = ssub.s32 0, %s522
      %s524 = scalar_select %p519, %s523, %s522
      %p525 = scmp.ne.s32.totalorder %s524, 0
      %p526 = scmp.lt.s32.totalorder %s524, 0
      %p527 = pnand %p526, %p525
      %p528 = pneg %p527
      %s529 = sadd.s32 %s524, 8
      %s530 = scalar_select %p528, %s529, %s524
      %s531 = sadd.s32 %s516, %s530
      %s532 = smul.u32 %s23, 8
      %s533 = sadd.s32 %s24, 1
      %s534 = smul.u32 %s533, 8
      %p535 = scmp.lt.s32.totalorder %s534, 0
      %s536 = ssub.s32 0, %s534
      %s537 = scalar_select %p535, %s536, %s534
      %s538 = sand.u32 %s537, 7
      %s539 = ssub.s32 0, %s538
      %s540 = scalar_select %p535, %s539, %s538
      %p541 = scmp.ne.s32.totalorder %s540, 0
      %p542 = scmp.lt.s32.totalorder %s540, 0
      %p543 = pnand %p542, %p541
      %p544 = pneg %p543
      %s545 = sadd.s32 %s540, 8
      %s546 = scalar_select %p544, %s545, %s540
      %s547 = sadd.s32 %s532, %s546
      %p548 = scmp.lt.s32.totalorder %s547, 15
      %s549 = scalar_select %p548, %s547, 15
      %s550 = smul.addr %s549, 4
      %s551 = scalar_lea.vmem %s2, %s550
      %s552 = smul.u32 %s23, 8
      %s553 = sadd.s32 %s24, 1
      %s554 = smul.u32 %s553, 8
      %p555 = scmp.lt.s32.totalorder %s554, 0
      %s556 = ssub.s32 0, %s554
      %s557 = scalar_select %p555, %s556, %s554
      %s558 = sand.u32 %s557, 7
      %s559 = ssub.s32 0, %s558
      %s560 = scalar_select %p555, %s559, %s558
      %p561 = scmp.ne.s32.totalorder %s560, 0
      %p562 = scmp.lt.s32.totalorder %s560, 0
      %p563 = pnand %p562, %p561
      %p564 = pneg %p563
      %s565 = sadd.s32 %s560, 8
      %s566 = scalar_select %p564, %s565, %s560
      %s567 = sadd.s32 %s552, %s566
      %s568 = sadd.s32 %s23, %s24
      %s569 = smul.u32 8, %s568
      %p570 = scmp.lt.s32.totalorder %s569, 15
      %s571 = scalar_select %p570, %s569, 15
      %s572 = smul.addr %s571, 4
      %s573 = scalar_lea.vmem %s6, %s572
      %s574 = sadd.s32 %s23, %s24
      %s575 = smul.u32 8, %s574
      %p576 = scmp.lt.s32.totalorder %s23, 1
      %s577 = scalar_select %p576, %s23, 1
      %p578 = scmp.lt.s32.totalorder %s24, 0
      %s579 = scalar_select %p578, %s24, 0
      %s580 = sadd.s32 %s579, %s577
      %s581 = smul.addr %s580, 2
      %s582 = scalar_lea.vmem %s7, %s581
      %v584 = vld [vmem:[%s515] sm:$0xf]
      %v585 = vld [vmem:[%s493] sm:$0xf]
      %v586 = vld [vmem:[%s493 + $0x4] sm:$0xf]
      %v587 = vld [vmem:[%s493 + $0x8] sm:$0xf]
      %v588 = vld [vmem:[%s493 + $0xc] sm:$0xf]
      %v589 = vld [vmem:[%s493 + $0x10] sm:$0xf]
      %v590 = vld [vmem:[%s493 + $0x14] sm:$0xf]
      %v591 = vld [vmem:[%s493 + $0x18] sm:$0xf]
      %v592 = vld [vmem:[%s493 + $0x1c] sm:$0xf]
      %v593 = vld [vmem:[%s551] sm:$0xf]
      %v594 = vunpack.c.l.bf16 %v584
      %v595 = vunpack.c.l.bf16 %v585
      %v596 = vunpack.c.l.bf16 %v586
      %v597 = vunpack.c.l.bf16 %v587
      %v598 = vunpack.c.l.bf16 %v588
      %v599 = vunpack.c.l.bf16 %v589
      %v600 = vunpack.c.l.bf16 %v590
      %v601 = vunpack.c.l.bf16 %v591
      %v602 = vunpack.c.l.bf16 %v592
      %v603 = vunpack.c.l.bf16 %v593
      %v604 = vld [vmem:[%s3] sm:$0x1]
      %v605 = vld [vmem:[%s4] sm:$0x1]
      %v607 = vlaneseq
      %v608 = vshrl.u32 %v607, 7
      %v609 = vsub.s32 0, %v608
      %v610 = vrot.slane %v604, %v609
      %v612 = vmul.f32 %v594, %v610
      %v613 = vmul.f32 %v595, %v610
      %v614 = vmul.f32 %v596, %v610
      %v615 = vmul.f32 %v597, %v610
      %v616 = vmul.f32 %v598, %v610
      %v617 = vmul.f32 %v599, %v610
      %v618 = vmul.f32 %v600, %v610
      %v619 = vmul.f32 %v601, %v610
      %v620 = vmul.f32 %v602, %v610
      %v621 = vmul.f32 %v603, %v610
      %v623 = vlaneseq
      %v624 = vshrl.u32 %v623, 7
      %v625 = vsub.s32 0, %v624
      %v626 = vrot.slane %v605, %v625
      %v628 = vadd.f32 %v612, %v626
      %v629 = vadd.f32 %v613, %v626
      %v630 = vadd.f32 %v614, %v626
      %v631 = vadd.f32 %v615, %v626
      %v632 = vadd.f32 %v616, %v626
      %v633 = vadd.f32 %v617, %v626
      %v634 = vadd.f32 %v618, %v626
      %v635 = vadd.f32 %v619, %v626
      %v636 = vadd.f32 %v620, %v626
      %v637 = vadd.f32 %v621, %v626
      %v638 = vmax.f32 %v628, 0.0
      %v639 = vmax.f32 %v629, 0.0
      %v640 = vmax.f32 %v630, 0.0
      %v641 = vmax.f32 %v631, 0.0
      %v642 = vmax.f32 %v632, 0.0
      %v643 = vmax.f32 %v633, 0.0
      %v644 = vmax.f32 %v634, 0.0
      %v645 = vmax.f32 %v635, 0.0
      %v646 = vmax.f32 %v636, 0.0
      %v647 = vmax.f32 %v637, 0.0
      %656 = vrot.lane.b32.xlu0 %v639, 8
      %v657 = vpop.permute.xlu0 %656
      %658 = vrot.lane.b32.xlu0 %v640, 8
      %v659 = vpop.permute.xlu0 %658
      %660 = vrot.lane.b32.xlu0 %v641, 8
      %v661 = vpop.permute.xlu0 %660
      %662 = vrot.lane.b32.xlu0 %v642, 8
      %v663 = vpop.permute.xlu0 %662
      %664 = vrot.lane.b32.xlu0 %v643, 8
      %v665 = vpop.permute.xlu0 %664
      %666 = vrot.lane.b32.xlu0 %v644, 8
      %v667 = vpop.permute.xlu0 %666
      %668 = vrot.lane.b32.xlu0 %v645, 8
      %v669 = vpop.permute.xlu0 %668
      %670 = vrot.lane.b32.xlu0 %v646, 8
      %v671 = vpop.permute.xlu0 %670
      %681 = vrot.lane.b32.xlu0 %v640, 16
      %v682 = vpop.permute.xlu0 %681
      %683 = vrot.lane.b32.xlu0 %v641, 16
      %v684 = vpop.permute.xlu0 %683
      %685 = vrot.lane.b32.xlu0 %v642, 16
      %v686 = vpop.permute.xlu0 %685
      %687 = vrot.lane.b32.xlu0 %v643, 16
      %v688 = vpop.permute.xlu0 %687
      %689 = vrot.lane.b32.xlu0 %v644, 16
      %v690 = vpop.permute.xlu0 %689
      %691 = vrot.lane.b32.xlu0 %v645, 16
      %v692 = vpop.permute.xlu0 %691
      %693 = vrot.lane.b32.xlu0 %v646, 16
      %v694 = vpop.permute.xlu0 %693
      %695 = vrot.lane.b32.xlu0 %v647, 16
      %v696 = vpop.permute.xlu0 %695
      %vm705 = vcmask 64512
      %v706 = vsel %vm705, %v638, %v657
      %v707 = vsel %vm705, %v639, %v659
      %v708 = vsel %vm705, %v640, %v661
      %v709 = vsel %vm705, %v641, %v663
      %v710 = vsel %vm705, %v642, %v665
      %v711 = vsel %vm705, %v643, %v667
      %v712 = vsel %vm705, %v644, %v669
      %v713 = vsel %vm705, %v645, %v671
      %vm714 = vcmask 130048
      %v715 = vsel %vm714, %v706, %v682
      %v716 = vsel %vm714, %v707, %v684
      %v717 = vsel %vm714, %v708, %v686
      %v718 = vsel %vm714, %v709, %v688
      %v719 = vsel %vm714, %v710, %v690
      %v720 = vsel %vm714, %v711, %v692
      %v721 = vsel %vm714, %v712, %v694
      %v722 = vsel %vm714, %v713, %v696
      %v723 = vpack.c.bf16 %v716, %v715
      %v724 = vpack.c.bf16 %v718, %v717
      %v725 = vpack.c.bf16 %v720, %v719
      %v726 = vpack.c.bf16 %v722, %v721
      %v727 = vld [vmem:[%s5] sm:$0xf]
      %v728 = vld [vmem:[%s5 + $0x4] sm:$0xf]
      %v729 = vld [vmem:[%s5 + $0x8] sm:$0xf]
      %v733 = vunpack.c.l.b16 %v727
      %v734 = vunpack.c.l.b16 %v728
      %v735 = vunpack.c.l.b16 %v729
      %v736 = vpack.c.b16 %v734, %v733
      %v737 = vpack.c.b16 %v735, %v735
      %vm739 = vcmask 195584
      %v741 = vsel %vm739, %v723, 0
      %v744 = vsel %vm739, %v724, 0
      %v747 = vsel %vm739, %v725, 0
      %v750 = vsel %vm739, %v726, 0
      %vm752 = vcmask 1043456
      %v754 = vsel %vm752, %v737, 0
      %756 = vmatprep.subr.bf16.mxu0 0
      %757 = vmatpush1.bf16.msra.mxu0 0
      %758 = vmatprep.subr.bf16.mxu0 0
      %759 = vmatpush1.bf16.msra.mxu0 0
      %760 = vmatprep.subr.bf16.mxu0 0
      %761 = vmatpush1.bf16.msra.mxu0 0
      %762 = vmatprep.subr.bf16.mxu0 0
      %763 = vmatpush1.bf16.msra.mxu0 0
      %764 = vmatprep.subr.bf16.mxu0 0
      %765 = vmatpush1.bf16.msra.mxu0 0
      %766 = vmatprep.subr.bf16.mxu0 0
      %767 = vmatpush1.bf16.msra.mxu0 0
      %768 = vmatprep.subr.bf16.mxu0 0
      %769 = vmatpush1.bf16.msra.mxu0 %v754
      %770 = vmatprep.subr.bf16.mxu0 0
      %771 = vmatpush1.bf16.msra.mxu0 %v736
      %772 = vmatprep.subr.bf16.mxu0 0
      %773 = vmatpush2.bf16.msra.mxu0 0
      %774 = vmatprep.subr.bf16.mxu0 0
      %775 = vmatpush2.bf16.msra.mxu0 0
      %776 = vmatprep.subr.bf16.mxu0 0
      %777 = vmatpush2.bf16.msra.mxu0 0
      %778 = vmatprep.subr.bf16.mxu0 0
      %779 = vmatpush2.bf16.msra.mxu0 0
      %780 = vmatprep.subr.bf16.mxu0 0
      %781 = vmatpush2.bf16.msra.mxu0 0
      %782 = vmatprep.subr.bf16.mxu0 0
      %783 = vmatpush2.bf16.msra.mxu0 0
      %784 = vmatprep.subr.bf16.mxu0 0
      %785 = vmatpush2.bf16.msra.mxu0 0
      %786 = vmatprep.subr.bf16.mxu0 0
      %787 = vmatpush2.bf16.msra.mxu0 0
      %788 = vmatprep.mubr.bf16.mxu0 0
      %789 = vmatmul.mubr.bf16.gmra.mxu0 %v741
      %v790 = vpop.f32.mrf.mxu0
      %v791 = vadd.f32 0.0, %v790
      %v792 = vpop.f32.mrf.mxu0
      %v793 = vpop.f32.mrf.mxu0
      %v794 = vadd.f32 0.0, %v793
      %v795 = vpop.f32.mrf.mxu0
      %796 = vmatprep.mubr.bf16.mxu0 0
      %797 = vmatmul.mubr.bf16.gmra.mxu0 %v744
      %v798 = vpop.f32.mrf.mxu0
      %v799 = vadd.f32 0.0, %v798
      %v800 = vpop.f32.mrf.mxu0
      %v801 = vpop.f32.mrf.mxu0
      %v802 = vadd.f32 0.0, %v801
      %v803 = vpop.f32.mrf.mxu0
      %804 = vmatprep.mubr.bf16.mxu0 0
      %805 = vmatmul.mubr.bf16.gmra.mxu0 %v747
      %v806 = vpop.f32.mrf.mxu0
      %v807 = vadd.f32 0.0, %v806
      %v808 = vpop.f32.mrf.mxu0
      %v809 = vpop.f32.mrf.mxu0
      %v810 = vadd.f32 0.0, %v809
      %v811 = vpop.f32.mrf.mxu0
      %812 = vmatprep.mubr.bf16.mxu0 0
      %813 = vmatmul.mubr.bf16.gmra.mxu0 %v750
      %v814 = vpop.f32.mrf.mxu0
      %v815 = vadd.f32 0.0, %v814
      %v816 = vpop.f32.mrf.mxu0
      %v817 = vpop.f32.mrf.mxu0
      %v818 = vadd.f32 0.0, %v817
      %v819 = vpop.f32.mrf.mxu0
      %820 = vdwg.mxu0
      %s821 = scalar_lea.vmem %s5, 12
      %v822 = vld [vmem:[%s821] sm:$0xf]
      %v823 = vld [vmem:[%s821 + $0x4] sm:$0xf]
      %v824 = vld [vmem:[%s821 + $0x8] sm:$0xf]
      %v828 = vunpack.c.l.b16 %v822
      %v829 = vunpack.c.l.b16 %v823
      %v830 = vunpack.c.l.b16 %v824
      %v831 = vpack.c.b16 %v829, %v828
      %v832 = vpack.c.b16 %v830, %v830
      %v835 = vsel %vm752, %v832, 0
      %837 = vmatprep.subr.bf16.mxu0 0
      %838 = vmatpush1.bf16.msra.mxu0 0
      %839 = vmatprep.subr.bf16.mxu0 0
      %840 = vmatpush1.bf16.msra.mxu0 0
      %841 = vmatprep.subr.bf16.mxu0 0
      %842 = vmatpush1.bf16.msra.mxu0 0
      %843 = vmatprep.subr.bf16.mxu0 0
      %844 = vmatpush1.bf16.msra.mxu0 0
      %845 = vmatprep.subr.bf16.mxu0 0
      %846 = vmatpush1.bf16.msra.mxu0 0
      %847 = vmatprep.subr.bf16.mxu0 0
      %848 = vmatpush1.bf16.msra.mxu0 0
      %849 = vmatprep.subr.bf16.mxu0 0
      %850 = vmatpush1.bf16.msra.mxu0 %v835
      %851 = vmatprep.subr.bf16.mxu0 0
      %852 = vmatpush1.bf16.msra.mxu0 %v831
      %853 = vmatprep.subr.bf16.mxu0 0
      %854 = vmatpush2.bf16.msra.mxu0 0
      %855 = vmatprep.subr.bf16.mxu0 0
      %856 = vmatpush2.bf16.msra.mxu0 0
      %857 = vmatprep.subr.bf16.mxu0 0
      %858 = vmatpush2.bf16.msra.mxu0 0
      %859 = vmatprep.subr.bf16.mxu0 0
      %860 = vmatpush2.bf16.msra.mxu0 0
      %861 = vmatprep.subr.bf16.mxu0 0
      %862 = vmatpush2.bf16.msra.mxu0 0
      %863 = vmatprep.subr.bf16.mxu0 0
      %864 = vmatpush2.bf16.msra.mxu0 0
      %865 = vmatprep.subr.bf16.mxu0 0
      %866 = vmatpush2.bf16.msra.mxu0 0
      %867 = vmatprep.subr.bf16.mxu0 0
      %868 = vmatpush2.bf16.msra.mxu0 0
      %869 = vmatprep.mubr.bf16.mxu0 0
      %870 = vmatmul.mubr.bf16.gmra.mxu0 %v741
      %v871 = vpop.f32.mrf.mxu0
      %v872 = vadd.f32 0.0, %v871
      %v873 = vpop.f32.mrf.mxu0
      %v874 = vpop.f32.mrf.mxu0
      %v875 = vadd.f32 0.0, %v874
      %v876 = vpop.f32.mrf.mxu0
      %877 = vmatprep.mubr.bf16.mxu0 0
      %878 = vmatmul.mubr.bf16.gmra.mxu0 %v744
      %v879 = vpop.f32.mrf.mxu0
      %v880 = vadd.f32 0.0, %v879
      %v881 = vpop.f32.mrf.mxu0
      %v882 = vpop.f32.mrf.mxu0
      %v883 = vadd.f32 0.0, %v882
      %v884 = vpop.f32.mrf.mxu0
      %885 = vmatprep.mubr.bf16.mxu0 0
      %886 = vmatmul.mubr.bf16.gmra.mxu0 %v747
      %v887 = vpop.f32.mrf.mxu0
      %v888 = vadd.f32 0.0, %v887
      %v889 = vpop.f32.mrf.mxu0
      %v890 = vpop.f32.mrf.mxu0
      %v891 = vadd.f32 0.0, %v890
      %v892 = vpop.f32.mrf.mxu0
      %893 = vmatprep.mubr.bf16.mxu0 0
      %894 = vmatmul.mubr.bf16.gmra.mxu0 %v750
      %v895 = vpop.f32.mrf.mxu0
      %v896 = vadd.f32 0.0, %v895
      %v897 = vpop.f32.mrf.mxu0
      %v898 = vpop.f32.mrf.mxu0
      %v899 = vadd.f32 0.0, %v898
      %v900 = vpop.f32.mrf.mxu0
      %901 = vdwg.mxu0
      %s902 = scalar_lea.vmem %s5, 24
      %v903 = vld [vmem:[%s902] sm:$0xf]
      %v904 = vld [vmem:[%s902 + $0x4] sm:$0xf]
      %v905 = vld [vmem:[%s902 + $0x8] sm:$0xf]
      %v909 = vunpack.c.l.b16 %v903
      %v910 = vunpack.c.l.b16 %v904
      %v911 = vunpack.c.l.b16 %v905
      %v912 = vpack.c.b16 %v910, %v909
      %v913 = vpack.c.b16 %v911, %v911
      %v916 = vsel %vm752, %v913, 0
      %918 = vmatprep.subr.bf16.mxu0 0
      %919 = vmatpush1.bf16.msra.mxu0 0
      %920 = vmatprep.subr.bf16.mxu0 0
      %921 = vmatpush1.bf16.msra.mxu0 0
      %922 = vmatprep.subr.bf16.mxu0 0
      %923 = vmatpush1.bf16.msra.mxu0 0
      %924 = vmatprep.subr.bf16.mxu0 0
      %925 = vmatpush1.bf16.msra.mxu0 0
      %926 = vmatprep.subr.bf16.mxu0 0
      %927 = vmatpush1.bf16.msra.mxu0 0
      %928 = vmatprep.subr.bf16.mxu0 0
      %929 = vmatpush1.bf16.msra.mxu0 0
      %930 = vmatprep.subr.bf16.mxu0 0
      %931 = vmatpush1.bf16.msra.mxu0 %v916
      %932 = vmatprep.subr.bf16.mxu0 0
      %933 = vmatpush1.bf16.msra.mxu0 %v912
      %934 = vmatprep.subr.bf16.mxu0 0
      %935 = vmatpush2.bf16.msra.mxu0 0
      %936 = vmatprep.subr.bf16.mxu0 0
      %937 = vmatpush2.bf16.msra.mxu0 0
      %938 = vmatprep.subr.bf16.mxu0 0
      %939 = vmatpush2.bf16.msra.mxu0 0
      %940 = vmatprep.subr.bf16.mxu0 0
      %941 = vmatpush2.bf16.msra.mxu0 0
      %942 = vmatprep.subr.bf16.mxu0 0
      %943 = vmatpush2.bf16.msra.mxu0 0
      %944 = vmatprep.subr.bf16.mxu0 0
      %945 = vmatpush2.bf16.msra.mxu0 0
      %946 = vmatprep.subr.bf16.mxu0 0
      %947 = vmatpush2.bf16.msra.mxu0 0
      %948 = vmatprep.subr.bf16.mxu0 0
      %949 = vmatpush2.bf16.msra.mxu0 0
      %950 = vmatprep.mubr.bf16.mxu0 0
      %951 = vmatmul.mubr.bf16.gmra.mxu0 %v741
      %v952 = vpop.f32.mrf.mxu0
      %v953 = vadd.f32 0.0, %v952
      %v954 = vpop.f32.mrf.mxu0
      %v955 = vpop.f32.mrf.mxu0
      %v956 = vadd.f32 0.0, %v955
      %v957 = vpop.f32.mrf.mxu0
      %958 = vmatprep.mubr.bf16.mxu0 0
      %959 = vmatmul.mubr.bf16.gmra.mxu0 %v744
      %v960 = vpop.f32.mrf.mxu0
      %v961 = vadd.f32 0.0, %v960
      %v962 = vpop.f32.mrf.mxu0
      %v963 = vpop.f32.mrf.mxu0
      %v964 = vadd.f32 0.0, %v963
      %v965 = vpop.f32.mrf.mxu0
      %966 = vmatprep.mubr.bf16.mxu0 0
      %967 = vmatmul.mubr.bf16.gmra.mxu0 %v747
      %v968 = vpop.f32.mrf.mxu0
      %v969 = vadd.f32 0.0, %v968
      %v970 = vpop.f32.mrf.mxu0
      %v971 = vpop.f32.mrf.mxu0
      %v972 = vadd.f32 0.0, %v971
      %v973 = vpop.f32.mrf.mxu0
      %974 = vmatprep.mubr.bf16.mxu0 0
      %975 = vmatmul.mubr.bf16.gmra.mxu0 %v750
      %v976 = vpop.f32.mrf.mxu0
      %v977 = vadd.f32 0.0, %v976
      %v978 = vpop.f32.mrf.mxu0
      %v979 = vpop.f32.mrf.mxu0
      %v980 = vadd.f32 0.0, %v979
      %v981 = vpop.f32.mrf.mxu0
      %982 = vdwg.mxu0
      %v991 = vrot.slane %v791, 7
      %v992 = vrot.slane %v794, 7
      %v993 = vrot.slane %v799, 7
      %v994 = vrot.slane %v802, 7
      %v995 = vrot.slane %v807, 7
      %v996 = vrot.slane %v810, 7
      %v997 = vrot.slane %v815, 7
      %v998 = vrot.slane %v818, 7
      %vm1007 = vcmask 1040384
      %v1008 = vsel %vm1007, %v991, %v991
      %v1009 = vsel %vm1007, %v992, %v992
      %v1010 = vsel %vm1007, %v993, %v993
      %v1011 = vsel %vm1007, %v994, %v994
      %v1012 = vsel %vm1007, %v995, %v995
      %v1013 = vsel %vm1007, %v996, %v996
      %v1014 = vsel %vm1007, %v997, %v997
      %v1015 = vsel %vm1007, %v998, %v998
      %v1016 = vadd.f32 %v1008, %v872
      %v1017 = vadd.f32 %v1009, %v875
      %v1018 = vadd.f32 %v1010, %v880
      %v1019 = vadd.f32 %v1011, %v883
      %v1020 = vadd.f32 %v1012, %v888
      %v1021 = vadd.f32 %v1013, %v891
      %v1022 = vadd.f32 %v1014, %v896
      %v1023 = vadd.f32 %v1015, %v899
      %v1032 = vrot.slane %v953, 1
      %v1033 = vrot.slane %v956, 1
      %v1034 = vrot.slane %v961, 1
      %v1035 = vrot.slane %v964, 1
      %v1036 = vrot.slane %v969, 1
      %v1037 = vrot.slane %v972, 1
      %v1038 = vrot.slane %v977, 1
      %v1039 = vrot.slane %v980, 1
      %vm1048 = vcmask 1046528
      %v1049 = vsel %vm1048, %v1032, %v1032
      %v1050 = vsel %vm1048, %v1033, %v1033
      %v1051 = vsel %vm1048, %v1034, %v1034
      %v1052 = vsel %vm1048, %v1035, %v1035
      %v1053 = vsel %vm1048, %v1036, %v1036
      %v1054 = vsel %vm1048, %v1037, %v1037
      %v1055 = vsel %vm1048, %v1038, %v1038
      %v1056 = vsel %vm1048, %v1039, %v1039
      %v1057 = vadd.f32 %v1016, %v1049
      %v1058 = vadd.f32 %v1017, %v1050
      %v1059 = vadd.f32 %v1018, %v1051
      %v1060 = vadd.f32 %v1019, %v1052
      %v1061 = vadd.f32 %v1020, %v1053
      %v1062 = vadd.f32 %v1021, %v1054
      %v1063 = vadd.f32 %v1022, %v1055
      %v1064 = vadd.f32 %v1023, %v1056
      %v1065 = vpack.c.bf16 %v1057, %v1057
      %v1066 = vpack.c.bf16 %v1058, %v1058
      %v1067 = vpack.c.bf16 %v1059, %v1059
      %v1068 = vpack.c.bf16 %v1060, %v1060
      %v1069 = vpack.c.bf16 %v1061, %v1061
      %v1070 = vpack.c.bf16 %v1062, %v1062
      %v1071 = vpack.c.bf16 %v1063, %v1063
      %v1072 = vpack.c.bf16 %v1064, %v1064
      %vm1073 = vcmask 60416
      %1074 = vst.msk [vmem:[%s573] sm:$0xf] %vm1073, %v1065
      %1075 = vst.msk [vmem:[%s573 + $0x4] sm:$0xf] %vm1073, %v1066
      %1076 = vst.msk [vmem:[%s573 + $0x8] sm:$0xf] %vm1073, %v1067
      %1077 = vst.msk [vmem:[%s573 + $0xc] sm:$0xf] %vm1073, %v1068
      %1078 = vst.msk [vmem:[%s573 + $0x10] sm:$0xf] %vm1073, %v1069
      %1079 = vst.msk [vmem:[%s573 + $0x14] sm:$0xf] %vm1073, %v1070
      %1080 = vst.msk [vmem:[%s573 + $0x18] sm:$0xf] %vm1073, %v1071
      %1081 = vst.msk [vmem:[%s573 + $0x1c] sm:$0xf] %vm1073, %v1072
      %v1082 = vsel %vm705, %v1057, 0.0
      %v1083 = vsel %vm705, %v1058, 0.0
      %v1084 = vadd.f32 %v1082, %v1083
      %v1085 = vsel %vm705, %v1059, 0.0
      %v1086 = vadd.f32 %v1084, %v1085
      %v1087 = vsel %vm705, %v1060, 0.0
      %v1088 = vadd.f32 %v1086, %v1087
      %v1089 = vsel %vm705, %v1061, 0.0
      %v1090 = vadd.f32 %v1088, %v1089
      %v1091 = vsel %vm705, %v1062, 0.0
      %v1092 = vadd.f32 %v1090, %v1091
      %v1093 = vsel %vm705, %v1063, 0.0
      %v1094 = vadd.f32 %v1092, %v1093
      %v1095 = vsel %vm705, %v1064, 0.0
      %v1096 = vadd.f32 %v1094, %v1095
      %v1097 = vrot.slane %v1096, 4
      %v1098 = vadd.f32 %v1096, %v1097
      %v1099 = vrot.slane %v1098, 2
      %v1100 = vadd.f32 %v1098, %v1099
      %v1101 = vrot.slane %v1100, 1
      %v1102 = vadd.f32 %v1100, %v1101
      %v1103 = vmul.f32 %v1057, %v1057
      %v1104 = vmul.f32 %v1058, %v1058
      %v1105 = vmul.f32 %v1059, %v1059
      %v1106 = vmul.f32 %v1060, %v1060
      %v1107 = vmul.f32 %v1061, %v1061
      %v1108 = vmul.f32 %v1062, %v1062
      %v1109 = vmul.f32 %v1063, %v1063
      %v1110 = vmul.f32 %v1064, %v1064
      %v1111 = vsel %vm705, %v1103, 0.0
      %v1112 = vsel %vm705, %v1104, 0.0
      %v1113 = vadd.f32 %v1111, %v1112
      %v1114 = vsel %vm705, %v1105, 0.0
      %v1115 = vadd.f32 %v1113, %v1114
      %v1116 = vsel %vm705, %v1106, 0.0
      %v1117 = vadd.f32 %v1115, %v1116
      %v1118 = vsel %vm705, %v1107, 0.0
      %v1119 = vadd.f32 %v1117, %v1118
      %v1120 = vsel %vm705, %v1108, 0.0
      %v1121 = vadd.f32 %v1119, %v1120
      %v1122 = vsel %vm705, %v1109, 0.0
      %v1123 = vadd.f32 %v1121, %v1122
      %v1124 = vsel %vm705, %v1110, 0.0
      %v1125 = vadd.f32 %v1123, %v1124
      %v1126 = vrot.slane %v1125, 4
      %v1127 = vadd.f32 %v1125, %v1126
      %v1128 = vrot.slane %v1127, 2
      %v1129 = vadd.f32 %v1127, %v1128
      %v1130 = vrot.slane %v1129, 1
      %v1131 = vadd.f32 %v1129, %v1130
      %v1132 = vsel %vm1007, %v1102, %v1131
      %vm1133 = vcmask 58368
      %1134 = vst.msk [vmem:[%s582] sm:$0x3] %vm1133, %v1132
      %s1135 = sadd.s32 %s23, %s24
      %s1136 = smul.u32 8, %s1135
      %p1137 = scmp.lt.s32.totalorder %s1136, 15
      %s1138 = scalar_select %p1137, %s1136, 15
      %s1139 = smul.addr %s1138, 4
      %s1140 = scalar_lea.vmem %s6, %s1139
      %p1141 = scmp.lt.s32.totalorder %s23, 1
      %s1142 = scalar_select %p1141, %s23, 1
      %p1143 = scmp.lt.s32.totalorder %s24, 0
      %s1144 = scalar_select %p1143, %s24, 0
      %s1145 = sadd.s32 %s1144, %s1142
      %s1146 = smul.addr %s1145, 2
      %s1147 = scalar_lea.vmem %s7, %s1146
      // Predicated region
      $region45: #{down_forward.4} parent=43 // pred_check
        %p1148 = pneg %p258
      $region46: #{down_forward.4} parent=43 // pred_check_branch
        %1150 = sbr.rel (%p1148) target = $region48
      $region47: #{down_forward.4} parent=43 // pred_region
        %s1151 = sadd.s32 %s23, %s24
        %s1152 = smul.u32 8, %s1151
      $region48: #{down_forward.4} parent=43 // pred_fallthru
        _
      // Predicated region
      $region49: #{down_forward.4} parent=43 // pred_check
        %p1153 = pneg %p286
      $region50: #{down_forward.4} parent=43 // pred_check_branch
        %1155 = sbr.rel (%p1153) target = $region52
      $region51: #{down_forward.4} parent=43 // pred_region
        _
      $region52: #{down_forward.4} parent=43 // pred_fallthru
        _
    $region44: #{down_forward.4} parent=5 // pred_fallthru
      _
    %p1156 = scmp.le.s32.totalorder 2, %s14
    // Predicated region
    $region53: #{down_forward.4} parent=5 // pred_check
      %p1157 = pneg %p1156
    $region54: #{down_forward.4} parent=5 // pred_check_branch
      %1159 = sbr.rel (%p1157) target = $region56
    $region55: #{down_forward.4} parent=5 // pred_region
      %s1160 = ssub.s32 %s14, 2
      // Predicated region
      $region57: #{down_forward.4} parent=55 // pred_check
        %p1161 = pneg %p264
      $region58: #{down_forward.4} parent=55 // pred_check_branch
        %1163 = sbr.rel (%p1161) target = $region60
      $region59: #{down_forward.4} parent=55 // pred_region
        %s1164 = sadd.s32 %s25, %s26
        %s1165 = smul.u32 8, %s1164
        %p1166 = scmp.lt.s32.totalorder %s1165, 15
        %s1167 = scalar_select %p1166, %s1165, 15
        %s1168 = smul.addr %s1167, 4
        %s1169 = scalar_lea.vmem %s6, %s1168
      $region60: #{down_forward.4} parent=55 // pred_fallthru
        _
      // Predicated region
      $region61: #{down_forward.4} parent=55 // pred_check
        %p1170 = pneg %p292
      $region62: #{down_forward.4} parent=55 // pred_check_branch
        %1172 = sbr.rel (%p1170) target = $region64
      $region63: #{down_forward.4} parent=55 // pred_region
        %p1173 = scmp.lt.s32.totalorder %s25, 1
        %s1174 = scalar_select %p1173, %s25, 1
        %p1175 = scmp.lt.s32.totalorder %s26, 0
        %s1176 = scalar_select %p1175, %s26, 0
        %s1177 = sadd.s32 %s1176, %s1174
        %s1178 = smul.addr %s1177, 2
        %s1179 = scalar_lea.vmem %s7, %s1178
      $region64: #{down_forward.4} parent=55 // pred_fallthru
        _
    $region56: #{down_forward.4} parent=5 // pred_fallthru
      _
  $region6: #{down_forward.4} parent=0 // loop_footer
    %s18 = sadd.s32 1, %s14
  $region7: #{down_forward.4} parent=0 // loop_footer_branch
    %13 = sbr.rel target = $region3
  $region8: #{down_forward.4} parent=0 // loop_exit
    _

// kernel: down_forward.3
$region0: #{down_forward.3}
  #allocation0 [shape = 'u32[]', space=smem, size = 0x4, offset = 0x4, fixed_abs, tag = 'smem constant byte address 0x4 - core index']
  #allocation1 [shape = 'u32[144,128]{1,0:T(1,128)}', space=vmem, size = 0x12000, scoped, tag = 'internal scratch']
  %s0 = inlined_call_operand.vmem [shape: bf16[2,16,8,8], index: 0, kind: input, shape index: {}, may-alias: {0,1,2}]
  %s1 = inlined_call_operand.vmem [shape: bf16[2,16,8,8], index: 1, kind: input, shape index: {}, may-alias: {0,1,2}]
  %s2 = inlined_call_operand.vmem [shape: bf16[2,16,8,8], index: 2, kind: input, shape index: {}, may-alias: {0,1,2}]
  %s3 = inlined_call_operand.vmem [shape: bf16[3,12,8], index: 3, kind: input, shape index: {}]
  %s4 = inlined_call_operand.vmem [shape: bf16[16,8,8], index: 4, kind: output, shape index: {0}]
  %s5 = inlined_call_operand.vmem [shape: f32[2,1,2,8], index: 5, kind: output, shape index: {1}]
  %6 = xla_tuple %s4, %s5
  %s7 = sld [smem:[#allocation0]]
  $region57: #{down_forward.3} parent=0
    _
  %s9 = ssub.s32 1, %s7
  %s10 = scalar_select 0, %s9, %s7
  loop: start=0, step=1, limit=4
  $region2: #{down_forward.3} parent=0 // loop_pre_header
    _
  $region3: #{down_forward.3} parent=0 // loop_header
    %s12 = sphi 0, %s16
    %p13 = scmp.ge.s32.totalorder %s12, 4
    %s19 = sphi 0, %s31
    %s20 = sphi 0, %s27
    %s21 = sphi 0, %s19
    %s22 = sphi 0, %s20
    %s23 = sphi 0, %s21
    %s24 = sphi 0, %s22
    %s36 = sphi 0, %s38
    %s39 = sphi 0, %s36
    %s40 = sphi 0, %s39
    %s56 = sphi 0, %s40
    %s92 = sphi 0, %s94
    %s95 = sphi 0, %s92
    %s96 = sphi 0, %s95
    %s112 = sphi 0, %s96
    %s148 = sphi 0, %s150
    %s151 = sphi 0, %s148
    %s152 = sphi 0, %s151
    %s168 = sphi 0, %s152
    %s172 = sphi 0, %s172
    %s174 = sphi 0, %s172
    %s175 = sphi 0, %s174
    %s189 = sphi 0, %s175
    %s197 = sphi 0, %s199
    %s200 = sphi 0, %s197
    %s201 = sphi 0, %s200
    %s217 = sphi 0, %s201
    %s225 = sphi 0, %s227
    %s228 = sphi 0, %s225
    %s229 = sphi 0, %s228
    %s245 = sphi 0, %s229
  $region4: #{down_forward.3} parent=0 // loop_header_branch
    %15 = sbr.rel (%p13) target = $region8
  $region5: #{down_forward.3} parent=0 // loop_body
    %s17 = ssub.s32 %s12, 1
    %s18 = ssub.s32 %s12, 2
    %s25 = sadd.s32 1, %s20
    %p26 = scmp.ge.s32.totalorder %s25, 1
    %s27 = scalar_select %p26, 0, %s25
    %s28 = sadd.s32 1, %s19
    %s29 = scalar_select %p26, %s28, %s19
    %p30 = scmp.ge.s32.totalorder %s29, 2
    %s31 = scalar_select %p30, 0, %s29
    %s32 = ssub.s32 %s19, %s31
    %s33 = ssub.s32 %s20, %s27
    %s34 = sor.u32 %s32, %s33
    %p35 = scmp.eq.s32.totalorder %s34, 0
    %s37 = sadd.s32 %s36, 1
    %s38 = scalar_select %p35, %s36, %s37
    %p41 = pneg %p35
    %p42 = scmp.eq.s32.totalorder %s12, 1
    %p43 = por %p41, %p42
    %p44 = scmp.ne.s32.totalorder %s36, %s39
    %p45 = scmp.eq.s32.totalorder %s12, 0
    %p46 = por %p44, %p45
    %p47 = scmp.ne.s32.totalorder %s36, %s39
    %p48 = scmp.eq.s32.totalorder %s17, 1
    %p49 = por %p47, %p48
    %p50 = scmp.ne.s32.totalorder %s39, %s40
    %p51 = scmp.eq.s32.totalorder %s17, 0
    %p52 = por %p50, %p51
    %p53 = scmp.ne.s32.totalorder %s39, %s40
    %p54 = scmp.eq.s32.totalorder %s18, 1
    %p55 = por %p53, %p54
    %p57 = scmp.ne.s32.totalorder %s40, %s56
    %p58 = scmp.eq.s32.totalorder %s18, 0
    %p59 = por %p57, %p58
    %s60 = smul.u32 %s20, 8
    %s61 = ssub.s32 %s60, 1
    %p62 = scmp.lt.s32.totalorder %s61, 0
    %s63 = ssub.s32 0, %s61
    %s64 = scalar_select %p62, %s63, %s61
    %s65 = sand.u32 %s64, 7
    %s66 = ssub.s32 0, %s65
    %s67 = scalar_select %p62, %s66, %s65
    %p68 = scmp.ne.s32.totalorder %s67, 0
    %p69 = scmp.lt.s32.totalorder %s67, 0
    %p70 = pnand %p69, %p68
    %p71 = pneg %p70
    %s72 = sadd.s32 %s67, 8
    %s73 = scalar_select %p71, %s72, %s67
    %s74 = smul.u32 %s27, 8
    %s75 = ssub.s32 %s74, 1
    %p76 = scmp.lt.s32.totalorder %s75, 0
    %s77 = ssub.s32 0, %s75
    %s78 = scalar_select %p76, %s77, %s75
    %s79 = sand.u32 %s78, 7
    %s80 = ssub.s32 0, %s79
    %s81 = scalar_select %p76, %s80, %s79
    %p82 = scmp.ne.s32.totalorder %s81, 0
    %p83 = scmp.lt.s32.totalorder %s81, 0
    %p84 = pnand %p83, %p82
    %p85 = pneg %p84
    %s86 = sadd.s32 %s81, 8
    %s87 = scalar_select %p85, %s86, %s81
    %s88 = ssub.s32 %s19, %s31
    %s89 = ssub.s32 %s73, %s87
    %s90 = sor.u32 %s88, %s89
    %p91 = scmp.eq.s32.totalorder %s90, 0
    %s93 = sadd.s32 %s92, 1
    %s94 = scalar_select %p91, %s92, %s93
    %p97 = pneg %p91
    %p98 = scmp.eq.s32.totalorder %s12, 1
    %p99 = por %p97, %p98
    %p100 = scmp.ne.s32.totalorder %s92, %s95
    %p101 = scmp.eq.s32.totalorder %s12, 0
    %p102 = por %p100, %p101
    %p103 = scmp.ne.s32.totalorder %s92, %s95
    %p104 = scmp.eq.s32.totalorder %s17, 1
    %p105 = por %p103, %p104
    %p106 = scmp.ne.s32.totalorder %s95, %s96
    %p107 = scmp.eq.s32.totalorder %s17, 0
    %p108 = por %p106, %p107
    %p109 = scmp.ne.s32.totalorder %s95, %s96
    %p110 = scmp.eq.s32.totalorder %s18, 1
    %p111 = por %p109, %p110
    %p113 = scmp.ne.s32.totalorder %s96, %s112
    %p114 = scmp.eq.s32.totalorder %s18, 0
    %p115 = por %p113, %p114
    %s116 = sadd.s32 %s20, 1
    %s117 = smul.u32 %s116, 8
    %p118 = scmp.lt.s32.totalorder %s117, 0
    %s119 = ssub.s32 0, %s117
    %s120 = scalar_select %p118, %s119, %s117
    %s121 = sand.u32 %s120, 7
    %s122 = ssub.s32 0, %s121
    %s123 = scalar_select %p118, %s122, %s121
    %p124 = scmp.ne.s32.totalorder %s123, 0
    %p125 = scmp.lt.s32.totalorder %s123, 0
    %p126 = pnand %p125, %p124
    %p127 = pneg %p126
    %s128 = sadd.s32 %s123, 8
    %s129 = scalar_select %p127, %s128, %s123
    %s130 = sadd.s32 %s27, 1
    %s131 = smul.u32 %s130, 8
    %p132 = scmp.lt.s32.totalorder %s131, 0
    %s133 = ssub.s32 0, %s131
    %s134 = scalar_select %p132, %s133, %s131
    %s135 = sand.u32 %s134, 7
    %s136 = ssub.s32 0, %s135
    %s137 = scalar_select %p132, %s136, %s135
    %p138 = scmp.ne.s32.totalorder %s137, 0
    %p139 = scmp.lt.s32.totalorder %s137, 0
    %p140 = pnand %p139, %p138
    %p141 = pneg %p140
    %s142 = sadd.s32 %s137, 8
    %s143 = scalar_select %p141, %s142, %s137
    %s144 = ssub.s32 %s19, %s31
    %s145 = ssub.s32 %s129, %s143
    %s146 = sor.u32 %s144, %s145
    %p147 = scmp.eq.s32.totalorder %s146, 0
    %s149 = sadd.s32 %s148, 1
    %s150 = scalar_select %p147, %s148, %s149
    %p153 = pneg %p147
    %p154 = scmp.eq.s32.totalorder %s12, 1
    %p155 = por %p153, %p154
    %p156 = scmp.ne.s32.totalorder %s148, %s151
    %p157 = scmp.eq.s32.totalorder %s12, 0
    %p158 = por %p156, %p157
    %p159 = scmp.ne.s32.totalorder %s148, %s151
    %p160 = scmp.eq.s32.totalorder %s17, 1
    %p161 = por %p159, %p160
    %p162 = scmp.ne.s32.totalorder %s151, %s152
    %p163 = scmp.eq.s32.totalorder %s17, 0
    %p164 = por %p162, %p163
    %p165 = scmp.ne.s32.totalorder %s151, %s152
    %p166 = scmp.eq.s32.totalorder %s18, 1
    %p167 = por %p165, %p166
    %p169 = scmp.ne.s32.totalorder %s152, %s168
    %p170 = scmp.eq.s32.totalorder %s18, 0
    %p171 = por %p169, %p170
    %s173 = sadd.s32 %s172, 1
    %p176 = scmp.eq.s32.totalorder %s12, 1
    %p177 = scmp.ne.s32.totalorder %s172, %s174
    %p178 = scmp.eq.s32.totalorder %s12, 0
    %p179 = por %p177, %p178
    %p180 = scmp.ne.s32.totalorder %s172, %s174
    %p181 = scmp.eq.s32.totalorder %s17, 1
    %p182 = por %p180, %p181
    %p183 = scmp.ne.s32.totalorder %s174, %s175
    %p184 = scmp.eq.s32.totalorder %s17, 0
    %p185 = por %p183, %p184
    %p186 = scmp.ne.s32.totalorder %s174, %s175
    %p187 = scmp.eq.s32.totalorder %s18, 1
    %p188 = por %p186, %p187
    %p190 = scmp.ne.s32.totalorder %s175, %s189
    %p191 = scmp.eq.s32.totalorder %s18, 0
    %p192 = por %p190, %p191
    %s193 = sadd.s32 %s19, %s20
    %s194 = sadd.s32 %s31, %s27
    %s195 = ssub.s32 %s193, %s194
    %p196 = scmp.eq.s32.totalorder %s195, 0
    %s198 = sadd.s32 %s197, 1
    %s199 = scalar_select %p196, %s197, %s198
    %p202 = pneg %p196
    %p203 = scmp.eq.s32.totalorder %s12, 1
    %p204 = por %p202, %p203
    %p205 = scmp.ne.s32.totalorder %s197, %s200
    %p206 = scmp.eq.s32.totalorder %s12, 0
    %p207 = por %p205, %p206
    %p208 = scmp.ne.s32.totalorder %s197, %s200
    %p209 = scmp.eq.s32.totalorder %s17, 1
    %p210 = por %p208, %p209
    %p211 = scmp.ne.s32.totalorder %s200, %s201
    %p212 = scmp.eq.s32.totalorder %s17, 0
    %p213 = por %p211, %p212
    %p214 = scmp.ne.s32.totalorder %s200, %s201
    %p215 = scmp.eq.s32.totalorder %s18, 1
    %p216 = por %p214, %p215
    %p218 = scmp.ne.s32.totalorder %s201, %s217
    %p219 = scmp.eq.s32.totalorder %s18, 0
    %p220 = por %p218, %p219
    %s221 = ssub.s32 %s19, %s31
    %s222 = ssub.s32 %s20, %s27
    %s223 = sor.u32 %s221, %s222
    %p224 = scmp.eq.s32.totalorder %s223, 0
    %s226 = sadd.s32 %s225, 1
    %s227 = scalar_select %p224, %s225, %s226
    %p230 = pneg %p224
    %p231 = scmp.eq.s32.totalorder %s12, 1
    %p232 = por %p230, %p231
    %p233 = scmp.ne.s32.totalorder %s225, %s228
    %p234 = scmp.eq.s32.totalorder %s12, 0
    %p235 = por %p233, %p234
    %p236 = scmp.ne.s32.totalorder %s225, %s228
    %p237 = scmp.eq.s32.totalorder %s17, 1
    %p238 = por %p236, %p237
    %p239 = scmp.ne.s32.totalorder %s228, %s229
    %p240 = scmp.eq.s32.totalorder %s17, 0
    %p241 = por %p239, %p240
    %p242 = scmp.ne.s32.totalorder %s228, %s229
    %p243 = scmp.eq.s32.totalorder %s18, 1
    %p244 = por %p242, %p243
    %p246 = scmp.ne.s32.totalorder %s229, %s245
    %p247 = scmp.eq.s32.totalorder %s18, 0
    %p248 = por %p246, %p247
    %p249 = scmp.le.s32.totalorder 1, %s12
    %p250 = scmp.lt.s32.totalorder %s12, 3
    %p251 = pnand %p249, %p250
    %p252 = pneg %p251
    // Predicated region
    $region9: #{down_forward.3} parent=5 // pred_check
      _
    $region10: #{down_forward.3} parent=5 // pred_check_branch
      %254 = sbr.rel (%p251) target = $region12
    $region11: #{down_forward.3} parent=5 // pred_region
      %s255 = ssub.s32 %s12, 1
      // Predicated region
      $region13: #{down_forward.3} parent=11 // pred_check
        %p256 = pneg %p185
      $region14: #{down_forward.3} parent=11 // pred_check_branch
        %258 = sbr.rel (%p256) target = $region16
      $region15: #{down_forward.3} parent=11 // pred_region
        _
      $region16: #{down_forward.3} parent=11 // pred_fallthru
        _
    $region12: #{down_forward.3} parent=5 // pred_fallthru
      _
    %p259 = scmp.lt.s32.totalorder %s12, 2
    // Predicated region
    $region17: #{down_forward.3} parent=5 // pred_check
      %p260 = pneg %p259
    $region18: #{down_forward.3} parent=5 // pred_check_branch
      %262 = sbr.rel (%p260) target = $region20
    $region19: #{down_forward.3} parent=5 // pred_region
      // Predicated region
      $region21: #{down_forward.3} parent=19 // pred_check
        %p263 = pneg %p46
      $region22: #{down_forward.3} parent=19 // pred_check_branch
        %265 = sbr.rel (%p263) target = $region24
      $region23: #{down_forward.3} parent=19 // pred_region
        %s266 = smul.u32 16, %s20
        %p267 = scmp.lt.s32.totalorder %s19, 1
        %s268 = scalar_select %p267, %s19, 1
        %p269 = scmp.lt.s32.totalorder %s266, 15
        %s270 = scalar_select %p269, %s266, 15
        %s271 = smul.addr %s268, 16
        %s272 = sadd.s32 %s270, %s271
        %s273 = smul.addr %s272, 4
        %s274 = scalar_lea.vmem %s0, %s273
        %s275 = smul.u32 16, %s20
      $region24: #{down_forward.3} parent=19 // pred_fallthru
        _
      // Predicated region
      $region25: #{down_forward.3} parent=19 // pred_check
        %p276 = pneg %p102
      $region26: #{down_forward.3} parent=19 // pred_check_branch
        %278 = sbr.rel (%p276) target = $region28
      $region27: #{down_forward.3} parent=19 // pred_region
        %s279 = smul.u32 %s20, 8
        %s280 = ssub.s32 %s279, 1
        %p281 = scmp.lt.s32.totalorder %s280, 0
        %s282 = ssub.s32 0, %s280
        %s283 = scalar_select %p281, %s282, %s280
        %s284 = sand.u32 %s283, 7
        %s285 = ssub.s32 0, %s284
        %s286 = scalar_select %p281, %s285, %s284
        %p287 = scmp.ne.s32.totalorder %s286, 0
        %p288 = scmp.lt.s32.totalorder %s286, 0
        %p289 = pnand %p288, %p287
        %p290 = pneg %p289
        %s291 = sadd.s32 %s286, 8
        %s292 = scalar_select %p290, %s291, %s286
        %s293 = smul.u32 2, %s292
        %p294 = scmp.lt.s32.totalorder %s19, 1
        %s295 = scalar_select %p294, %s19, 1
        %p296 = scmp.lt.s32.totalorder %s293, 15
        %s297 = scalar_select %p296, %s293, 15
        %s298 = smul.addr %s295, 16
        %s299 = sadd.s32 %s297, %s298
        %s300 = smul.addr %s299, 4
        %s301 = scalar_lea.vmem %s1, %s300
        %s302 = smul.u32 %s20, 8
        %s303 = ssub.s32 %s302, 1
        %p304 = scmp.lt.s32.totalorder %s303, 0
        %s305 = ssub.s32 0, %s303
        %s306 = scalar_select %p304, %s305, %s303
        %s307 = sand.u32 %s306, 7
        %s308 = ssub.s32 0, %s307
        %s309 = scalar_select %p304, %s308, %s307
        %p310 = scmp.ne.s32.totalorder %s309, 0
        %p311 = scmp.lt.s32.totalorder %s309, 0
        %p312 = pnand %p311, %p310
        %p313 = pneg %p312
        %s314 = sadd.s32 %s309, 8
        %s315 = scalar_select %p313, %s314, %s309
        %s316 = smul.u32 2, %s315
      $region28: #{down_forward.3} parent=19 // pred_fallthru
        _
      // Predicated region
      $region29: #{down_forward.3} parent=19 // pred_check
        %p317 = pneg %p158
      $region30: #{down_forward.3} parent=19 // pred_check_branch
        %319 = sbr.rel (%p317) target = $region32
      $region31: #{down_forward.3} parent=19 // pred_region
        %s320 = sadd.s32 %s20, 1
        %s321 = smul.u32 %s320, 8
        %p322 = scmp.lt.s32.totalorder %s321, 0
        %s323 = ssub.s32 0, %s321
        %s324 = scalar_select %p322, %s323, %s321
        %s325 = sand.u32 %s324, 7
        %s326 = ssub.s32 0, %s325
        %s327 = scalar_select %p322, %s326, %s325
        %p328 = scmp.ne.s32.totalorder %s327, 0
        %p329 = scmp.lt.s32.totalorder %s327, 0
        %p330 = pnand %p329, %p328
        %p331 = pneg %p330
        %s332 = sadd.s32 %s327, 8
        %s333 = scalar_select %p331, %s332, %s327
        %s334 = smul.u32 2, %s333
        %p335 = scmp.lt.s32.totalorder %s19, 1
        %s336 = scalar_select %p335, %s19, 1
        %p337 = scmp.lt.s32.totalorder %s334, 15
        %s338 = scalar_select %p337, %s334, 15
        %s339 = smul.addr %s336, 16
        %s340 = sadd.s32 %s338, %s339
        %s341 = smul.addr %s340, 4
        %s342 = scalar_lea.vmem %s2, %s341
        %s343 = sadd.s32 %s20, 1
        %s344 = smul.u32 %s343, 8
        %p345 = scmp.lt.s32.totalorder %s344, 0
        %s346 = ssub.s32 0, %s344
        %s347 = scalar_select %p345, %s346, %s344
        %s348 = sand.u32 %s347, 7
        %s349 = ssub.s32 0, %s348
        %s350 = scalar_select %p345, %s349, %s348
        %p351 = scmp.ne.s32.totalorder %s350, 0
        %p352 = scmp.lt.s32.totalorder %s350, 0
        %p353 = pnand %p352, %p351
        %p354 = pneg %p353
        %s355 = sadd.s32 %s350, 8
        %s356 = scalar_select %p354, %s355, %s350
        %s357 = smul.u32 2, %s356
      $region32: #{down_forward.3} parent=19 // pred_fallthru
        _
    $region20: #{down_forward.3} parent=5 // pred_fallthru
      _
    %p358 = scmp.le.s32.totalorder 1, %s12
    %p359 = scmp.lt.s32.totalorder %s12, 3
    %p360 = pnand %p358, %p359
    %p361 = pneg %p360
    // Predicated region
    $region33: #{down_forward.3} parent=5 // pred_check
      _
    $region34: #{down_forward.3} parent=5 // pred_check_branch
      %363 = sbr.rel (%p360) target = $region36
    $region35: #{down_forward.3} parent=5 // pred_region
      %s364 = ssub.s32 %s12, 1
      %s365 = smul.u32 16, %s22
      %p366 = scmp.lt.s32.totalorder %s21, 1
      %s367 = scalar_select %p366, %s21, 1
      %p368 = scmp.lt.s32.totalorder %s365, 15
      %s369 = scalar_select %p368, %s365, 15
      %s370 = smul.addr %s367, 16
      %s371 = sadd.s32 %s369, %s370
      %s372 = smul.addr %s371, 4
      %s373 = scalar_lea.vmem %s0, %s372
      %p374 = pneg %p52
      %p375 = pneg %p49
      %s376 = smul.u32 %s22, 8
      %s377 = ssub.s32 %s376, 1
      %p378 = scmp.lt.s32.totalorder %s377, 0
      %s379 = ssub.s32 0, %s377
      %s380 = scalar_select %p378, %s379, %s377
      %s381 = sand.u32 %s380, 7
      %s382 = ssub.s32 0, %s381
      %s383 = scalar_select %p378, %s382, %s381
      %p384 = scmp.ne.s32.totalorder %s383, 0
      %p385 = scmp.lt.s32.totalorder %s383, 0
      %p386 = pnand %p385, %p384
      %p387 = pneg %p386
      %s388 = sadd.s32 %s383, 8
      %s389 = scalar_select %p387, %s388, %s383
      %s390 = smul.u32 2, %s389
      %p391 = scmp.lt.s32.totalorder %s21, 1
      %s392 = scalar_select %p391, %s21, 1
      %p393 = scmp.lt.s32.totalorder %s390, 15
      %s394 = scalar_select %p393, %s390, 15
      %s395 = smul.addr %s392, 16
      %s396 = sadd.s32 %s394, %s395
      %s397 = smul.addr %s396, 4
      %s398 = scalar_lea.vmem %s1, %s397
      %p399 = pneg %p108
      %p400 = pneg %p105
      %s401 = sadd.s32 %s22, 1
      %s402 = smul.u32 %s401, 8
      %p403 = scmp.lt.s32.totalorder %s402, 0
      %s404 = ssub.s32 0, %s402
      %s405 = scalar_select %p403, %s404, %s402
      %s406 = sand.u32 %s405, 7
      %s407 = ssub.s32 0, %s406
      %s408 = scalar_select %p403, %s407, %s406
      %p409 = scmp.ne.s32.totalorder %s408, 0
      %p410 = scmp.lt.s32.totalorder %s408, 0
      %p411 = pnand %p410, %p409
      %p412 = pneg %p411
      %s413 = sadd.s32 %s408, 8
      %s414 = scalar_select %p412, %s413, %s408
      %s415 = smul.u32 2, %s414
      %p416 = scmp.lt.s32.totalorder %s21, 1
      %s417 = scalar_select %p416, %s21, 1
      %p418 = scmp.lt.s32.totalorder %s415, 15
      %s419 = scalar_select %p418, %s415, 15
      %s420 = smul.addr %s417, 16
      %s421 = sadd.s32 %s419, %s420
      %s422 = smul.addr %s421, 4
      %s423 = scalar_lea.vmem %s2, %s422
      %p424 = pneg %p164
      %p425 = pneg %p161
      %p426 = pneg %p185
      %p427 = pneg %p182
      %p428 = pneg %p213
      %p429 = pneg %p210
      %s430 = sadd.s32 %s21, %s22
      %s431 = smul.u32 8, %s430
      %p432 = scmp.lt.s32.totalorder %s431, 15
      %s433 = scalar_select %p432, %s431, 15
      %s434 = smul.addr %s433, 4
      %s435 = scalar_lea.vmem %s4, %s434
      %p436 = pneg %p241
      %p437 = pneg %p238
      %p438 = scmp.lt.s32.totalorder %s21, 1
      %s439 = scalar_select %p438, %s21, 1
      %p440 = scmp.lt.s32.totalorder %s22, 0
      %s441 = scalar_select %p440, %s22, 0
      %s442 = sadd.s32 %s441, %s439
      %s443 = smul.addr %s442, 2
      %s444 = scalar_lea.vmem %s5, %s443
      %s445 = smul.u32 16, %s22
      %p446 = scmp.lt.s32.totalorder %s21, 1
      %s447 = scalar_select %p446, %s21, 1
      %p448 = scmp.lt.s32.totalorder %s445, 15
      %s449 = scalar_select %p448, %s445, 15
      %s450 = smul.addr %s447, 16
      %s451 = sadd.s32 %s449, %s450
      %s452 = smul.addr %s451, 4
      %s453 = scalar_lea.vmem %s0, %s452
      %s454 = smul.u32 16, %s22
      %s455 = smul.u32 %s22, 8
      %s456 = ssub.s32 %s455, 1
      %p457 = scmp.lt.s32.totalorder %s456, 0
      %s458 = ssub.s32 0, %s456
      %s459 = scalar_select %p457, %s458, %s456
      %s460 = sand.u32 %s459, 7
      %s461 = ssub.s32 0, %s460
      %s462 = scalar_select %p457, %s461, %s460
      %p463 = scmp.ne.s32.totalorder %s462, 0
      %p464 = scmp.lt.s32.totalorder %s462, 0
      %p465 = pnand %p464, %p463
      %p466 = pneg %p465
      %s467 = sadd.s32 %s462, 8
      %s468 = scalar_select %p466, %s467, %s462
      %s469 = smul.u32 2, %s468
      %p470 = scmp.lt.s32.totalorder %s21, 1
      %s471 = scalar_select %p470, %s21, 1
      %p472 = scmp.lt.s32.totalorder %s469, 15
      %s473 = scalar_select %p472, %s469, 15
      %s474 = smul.addr %s471, 16
      %s475 = sadd.s32 %s473, %s474
      %s476 = smul.addr %s475, 4
      %s477 = scalar_lea.vmem %s1, %s476
      %s478 = smul.u32 %s22, 8
      %s479 = ssub.s32 %s478, 1
      %p480 = scmp.lt.s32.totalorder %s479, 0
      %s481 = ssub.s32 0, %s479
      %s482 = scalar_select %p480, %s481, %s479
      %s483 = sand.u32 %s482, 7
      %s484 = ssub.s32 0, %s483
      %s485 = scalar_select %p480, %s484, %s483
      %p486 = scmp.ne.s32.totalorder %s485, 0
      %p487 = scmp.lt.s32.totalorder %s485, 0
      %p488 = pnand %p487, %p486
      %p489 = pneg %p488
      %s490 = sadd.s32 %s485, 8
      %s491 = scalar_select %p489, %s490, %s485
      %s492 = smul.u32 2, %s491
      %s493 = sadd.s32 %s22, 1
      %s494 = smul.u32 %s493, 8
      %p495 = scmp.lt.s32.totalorder %s494, 0
      %s496 = ssub.s32 0, %s494
      %s497 = scalar_select %p495, %s496, %s494
      %s498 = sand.u32 %s497, 7
      %s499 = ssub.s32 0, %s498
      %s500 = scalar_select %p495, %s499, %s498
      %p501 = scmp.ne.s32.totalorder %s500, 0
      %p502 = scmp.lt.s32.totalorder %s500, 0
      %p503 = pnand %p502, %p501
      %p504 = pneg %p503
      %s505 = sadd.s32 %s500, 8
      %s506 = scalar_select %p504, %s505, %s500
      %s507 = smul.u32 2, %s506
      %p508 = scmp.lt.s32.totalorder %s21, 1
      %s509 = scalar_select %p508, %s21, 1
      %p510 = scmp.lt.s32.totalorder %s507, 15
      %s511 = scalar_select %p510, %s507, 15
      %s512 = smul.addr %s509, 16
      %s513 = sadd.s32 %s511, %s512
      %s514 = smul.addr %s513, 4
      %s515 = scalar_lea.vmem %s2, %s514
      %s516 = sadd.s32 %s22, 1
      %s517 = smul.u32 %s516, 8
      %p518 = scmp.lt.s32.totalorder %s517, 0
      %s519 = ssub.s32 0, %s517
      %s520 = scalar_select %p518, %s519, %s517
      %s521 = sand.u32 %s520, 7
      %s522 = ssub.s32 0, %s521
      %s523 = scalar_select %p518, %s522, %s521
      %p524 = scmp.ne.s32.totalorder %s523, 0
      %p525 = scmp.lt.s32.totalorder %s523, 0
      %p526 = pnand %p525, %p524
      %p527 = pneg %p526
      %s528 = sadd.s32 %s523, 8
      %s529 = scalar_select %p527, %s528, %s523
      %s530 = smul.u32 2, %s529
      %s531 = sadd.s32 %s21, %s22
      %s532 = smul.u32 8, %s531
      %p533 = scmp.lt.s32.totalorder %s532, 15
      %s534 = scalar_select %p533, %s532, 15
      %s535 = smul.addr %s534, 4
      %s536 = scalar_lea.vmem %s4, %s535
      %s537 = sadd.s32 %s21, %s22
      %s538 = smul.u32 8, %s537
      %p539 = scmp.lt.s32.totalorder %s21, 1
      %s540 = scalar_select %p539, %s21, 1
      %p541 = scmp.lt.s32.totalorder %s22, 0
      %s542 = scalar_select %p541, %s22, 0
      %s543 = sadd.s32 %s542, %s540
      %s544 = smul.addr %s543, 2
      %s545 = scalar_lea.vmem %s5, %s544
      %v547 = vld [vmem:[%s477] sm:$0xf]
      %v548 = vld [vmem:[%s477 + $0x4] sm:$0xf]
      %v549 = vunpack.c.l.bf16 %v547
      %v550 = vunpack.c.l.bf16 %v548
      %553 = vrot.lane.b32.xlu0 %v549, 124
      %v554 = vpop.permute.xlu0 %553
      %555 = vrot.lane.b32.xlu0 %v550, 124
      %v556 = vpop.permute.xlu0 %555
      %v559 = vmax.f32 %v549, %v554
      %v560 = vmax.f32 %v550, %v556
      %v561 = vmax.f32 %v559, %v560
      %v562 = vld [vmem:[%s453] sm:$0xf]
      %v563 = vld [vmem:[%s453 + $0x4] sm:$0xf]
      %v564 = vld [vmem:[%s453 + $0x8] sm:$0xf]
      %v565 = vld [vmem:[%s453 + $0xc] sm:$0xf]
      %v566 = vld [vmem:[%s453 + $0x10] sm:$0xf]
      %v567 = vld [vmem:[%s453 + $0x14] sm:$0xf]
      %v568 = vld [vmem:[%s453 + $0x18] sm:$0xf]
      %v569 = vld [vmem:[%s453 + $0x1c] sm:$0xf]
      %v570 = vld [vmem:[%s453 + $0x20] sm:$0xf]
      %v571 = vld [vmem:[%s453 + $0x24] sm:$0xf]
      %v572 = vld [vmem:[%s453 + $0x28] sm:$0xf]
      %v573 = vld [vmem:[%s453 + $0x2c] sm:$0xf]
      %v574 = vld [vmem:[%s453 + $0x30] sm:$0xf]
      %v575 = vld [vmem:[%s453 + $0x34] sm:$0xf]
      %v576 = vld [vmem:[%s453 + $0x38] sm:$0xf]
      %v577 = vld [vmem:[%s453 + $0x3c] sm:$0xf]
      %v578 = vunpack.c.l.bf16 %v562
      %v579 = vunpack.c.l.bf16 %v563
      %v580 = vunpack.c.l.bf16 %v564
      %v581 = vunpack.c.l.bf16 %v565
      %v582 = vunpack.c.l.bf16 %v566
      %v583 = vunpack.c.l.bf16 %v567
      %v584 = vunpack.c.l.bf16 %v568
      %v585 = vunpack.c.l.bf16 %v569
      %v586 = vunpack.c.l.bf16 %v570
      %v587 = vunpack.c.l.bf16 %v571
      %v588 = vunpack.c.l.bf16 %v572
      %v589 = vunpack.c.l.bf16 %v573
      %v590 = vunpack.c.l.bf16 %v574
      %v591 = vunpack.c.l.bf16 %v575
      %v592 = vunpack.c.l.bf16 %v576
      %v593 = vunpack.c.l.bf16 %v577
      %610 = vrot.lane.b32.xlu0 %v578, 124
      %v611 = vpop.permute.xlu0 %610
      %612 = vrot.lane.b32.xlu0 %v579, 124
      %v613 = vpop.permute.xlu0 %612
      %614 = vrot.lane.b32.xlu0 %v580, 124
      %v615 = vpop.permute.xlu0 %614
      %616 = vrot.lane.b32.xlu0 %v581, 124
      %v617 = vpop.permute.xlu0 %616
      %618 = vrot.lane.b32.xlu0 %v582, 124
      %v619 = vpop.permute.xlu0 %618
      %620 = vrot.lane.b32.xlu0 %v583, 124
      %v621 = vpop.permute.xlu0 %620
      %622 = vrot.lane.b32.xlu0 %v584, 124
      %v623 = vpop.permute.xlu0 %622
      %624 = vrot.lane.b32.xlu0 %v585, 124
      %v625 = vpop.permute.xlu0 %624
      %626 = vrot.lane.b32.xlu0 %v586, 124
      %v627 = vpop.permute.xlu0 %626
      %628 = vrot.lane.b32.xlu0 %v587, 124
      %v629 = vpop.permute.xlu0 %628
      %630 = vrot.lane.b32.xlu0 %v588, 124
      %v631 = vpop.permute.xlu0 %630
      %632 = vrot.lane.b32.xlu0 %v589, 124
      %v633 = vpop.permute.xlu0 %632
      %634 = vrot.lane.b32.xlu0 %v590, 124
      %v635 = vpop.permute.xlu0 %634
      %636 = vrot.lane.b32.xlu0 %v591, 124
      %v637 = vpop.permute.xlu0 %636
      %638 = vrot.lane.b32.xlu0 %v592, 124
      %v639 = vpop.permute.xlu0 %638
      %640 = vrot.lane.b32.xlu0 %v593, 124
      %v641 = vpop.permute.xlu0 %640
      %v658 = vmax.f32 %v578, %v611
      %v659 = vmax.f32 %v579, %v613
      %v660 = vmax.f32 %v580, %v615
      %v661 = vmax.f32 %v581, %v617
      %v662 = vmax.f32 %v582, %v619
      %v663 = vmax.f32 %v583, %v621
      %v664 = vmax.f32 %v584, %v623
      %v665 = vmax.f32 %v585, %v625
      %v666 = vmax.f32 %v586, %v627
      %v667 = vmax.f32 %v587, %v629
      %v668 = vmax.f32 %v588, %v631
      %v669 = vmax.f32 %v589, %v633
      %v670 = vmax.f32 %v590, %v635
      %v671 = vmax.f32 %v591, %v637
      %v672 = vmax.f32 %v592, %v639
      %v673 = vmax.f32 %v593, %v641
      %v674 = vmax.f32 %v658, %v659
      %v675 = vmax.f32 %v660, %v661
      %v676 = vmax.f32 %v662, %v663
      %v677 = vmax.f32 %v664, %v665
      %v678 = vmax.f32 %v666, %v667
      %v679 = vmax.f32 %v668, %v669
      %v680 = vmax.f32 %v670, %v671
      %v681 = vmax.f32 %v672, %v673
      %v682 = vld [vmem:[%s515] sm:$0xf]
      %v683 = vld [vmem:[%s515 + $0x4] sm:$0xf]
      %v684 = vunpack.c.l.bf16 %v682
      %v685 = vunpack.c.l.bf16 %v683
      %688 = vrot.lane.b32.xlu0 %v684, 124
      %v689 = vpop.permute.xlu0 %688
      %690 = vrot.lane.b32.xlu0 %v685, 124
      %v691 = vpop.permute.xlu0 %690
      %v694 = vmax.f32 %v684, %v689
      %v695 = vmax.f32 %v685, %v691
      %v696 = vmax.f32 %v694, %v695
      %705 = vrot.lane.b32.xlu0 %v674, 4
      %v706 = vpop.permute.xlu0 %705
      %707 = vrot.lane.b32.xlu0 %v675, 4
      %v708 = vpop.permute.xlu0 %707
      %709 = vrot.lane.b32.xlu0 %v676, 4
      %v710 = vpop.permute.xlu0 %709
      %711 = vrot.lane.b32.xlu0 %v677, 4
      %v712 = vpop.permute.xlu0 %711
      %713 = vrot.lane.b32.xlu0 %v678, 4
      %v714 = vpop.permute.xlu0 %713
      %715 = vrot.lane.b32.xlu0 %v679, 4
      %v716 = vpop.permute.xlu0 %715
      %717 = vrot.lane.b32.xlu0 %v680, 4
      %v718 = vpop.permute.xlu0 %717
      %719 = vrot.lane.b32.xlu0 %v681, 4
      %v720 = vpop.permute.xlu0 %719
      %730 = vrot.lane.b32.xlu0 %v675, 8
      %v731 = vpop.permute.xlu0 %730
      %732 = vrot.lane.b32.xlu0 %v676, 8
      %v733 = vpop.permute.xlu0 %732
      %734 = vrot.lane.b32.xlu0 %v677, 8
      %v735 = vpop.permute.xlu0 %734
      %736 = vrot.lane.b32.xlu0 %v678, 8
      %v737 = vpop.permute.xlu0 %736
      %738 = vrot.lane.b32.xlu0 %v679, 8
      %v739 = vpop.permute.xlu0 %738
      %740 = vrot.lane.b32.xlu0 %v680, 8
      %v741 = vpop.permute.xlu0 %740
      %742 = vrot.lane.b32.xlu0 %v681, 8
      %v743 = vpop.permute.xlu0 %742
      %744 = vrot.lane.b32.xlu0 %v696, 8
      %v745 = vpop.permute.xlu0 %744
      %vm754 = vcmask 31744
      %v755 = vsel %vm754, %v561, %v706
      %v756 = vsel %vm754, %v674, %v708
      %v757 = vsel %vm754, %v675, %v710
      %v758 = vsel %vm754, %v676, %v712
      %v759 = vsel %vm754, %v677, %v714
      %v760 = vsel %vm754, %v678, %v716
      %v761 = vsel %vm754, %v679, %v718
      %v762 = vsel %vm754, %v680, %v720
      %vm763 = vcmask 64512
      %v764 = vsel %vm763, %v755, %v731
      %v765 = vsel %vm763, %v756, %v733
      %v766 = vsel %vm763, %v757, %v735
      %v767 = vsel %vm763, %v758, %v737
      %v768 = vsel %vm763, %v759, %v739
      %v769 = vsel %vm763, %v760, %v741
      %v770 = vsel %vm763, %v761, %v743
      %v771 = vsel %vm763, %v762, %v745
      %v772 = vpack.c.bf16 %v765, %v764
      %v773 = vpack.c.bf16 %v767, %v766
      %v774 = vpack.c.bf16 %v769, %v768
      %v775 = vpack.c.bf16 %v771, %v770
      %v776 = vld [vmem:[%s3] sm:$0xf]
      %v777 = vld [vmem:[%s3 + $0x4] sm:$0x3]
      %v780 = vunpack.c.l.b16 %v776
      %v781 = vunpack.c.l.b16 %v777
      %v782 = vpack.c.b16 %v781, %v780
      %vm783 = vcmask 97280
      %v785 = vsel %vm783, %v772, 0
      %v788 = vsel %vm783, %v773, 0
      %v791 = vsel %vm783, %v774, 0
      %v794 = vsel %vm783, %v775, 0
      %vm796 = vcmask 1045504
      %v798 = vsel %vm796, %v782, 0
      %800 = vmatprep.subr.bf16.mxu0 0
      %801 = vmatpush1.bf16.msra.mxu0 0
      %802 = vmatprep.subr.bf16.mxu0 0
      %803 = vmatpush1.bf16.msra.mxu0 0
      %804 = vmatprep.subr.bf16.mxu0 0
      %805 = vmatpush1.bf16.msra.mxu0 0
      %806 = vmatprep.subr.bf16.mxu0 0
      %807 = vmatpush1.bf16.msra.mxu0 0
      %808 = vmatprep.subr.bf16.mxu0 0
      %809 = vmatpush1.bf16.msra.mxu0 0
      %810 = vmatprep.subr.bf16.mxu0 0
      %811 = vmatpush1.bf16.msra.mxu0 0
      %812 = vmatprep.subr.bf16.mxu0 0
      %813 = vmatpush1.bf16.msra.mxu0 0
      %814 = vmatprep.subr.bf16.mxu0 0
      %815 = vmatpush1.bf16.msra.mxu0 %v798
      %816 = vmatprep.subr.bf16.mxu0 0
      %817 = vmatpush2.bf16.msra.mxu0 0
      %818 = vmatprep.subr.bf16.mxu0 0
      %819 = vmatpush2.bf16.msra.mxu0 0
      %820 = vmatprep.subr.bf16.mxu0 0
      %821 = vmatpush2.bf16.msra.mxu0 0
      %822 = vmatprep.subr.bf16.mxu0 0
      %823 = vmatpush2.bf16.msra.mxu0 0
      %824 = vmatprep.subr.bf16.mxu0 0
      %825 = vmatpush2.bf16.msra.mxu0 0
      %826 = vmatprep.subr.bf16.mxu0 0
      %827 = vmatpush2.bf16.msra.mxu0 0
      %828 = vmatprep.subr.bf16.mxu0 0
      %829 = vmatpush2.bf16.msra.mxu0 0
      %830 = vmatprep.subr.bf16.mxu0 0
      %831 = vmatpush2.bf16.msra.mxu0 0
      %832 = vmatprep.mubr.bf16.mxu0 0
      %833 = vmatmul.mubr.bf16.gmra.mxu0 %v785
      %v834 = vpop.f32.mrf.mxu0
      %v835 = vadd.f32 0.0, %v834
      %v836 = vpop.f32.mrf.mxu0
      %v837 = vpop.f32.mrf.mxu0
      %v838 = vadd.f32 0.0, %v837
      %v839 = vpop.f32.mrf.mxu0
      %840 = vmatprep.mubr.bf16.mxu0 0
      %841 = vmatmul.mubr.bf16.gmra.mxu0 %v788
      %v842 = vpop.f32.mrf.mxu0
      %v843 = vadd.f32 0.0, %v842
      %v844 = vpop.f32.mrf.mxu0
      %v845 = vpop.f32.mrf.mxu0
      %v846 = vadd.f32 0.0, %v845
      %v847 = vpop.f32.mrf.mxu0
      %848 = vmatprep.mubr.bf16.mxu0 0
      %849 = vmatmul.mubr.bf16.gmra.mxu0 %v791
      %v850 = vpop.f32.mrf.mxu0
      %v851 = vadd.f32 0.0, %v850
      %v852 = vpop.f32.mrf.mxu0
      %v853 = vpop.f32.mrf.mxu0
      %v854 = vadd.f32 0.0, %v853
      %v855 = vpop.f32.mrf.mxu0
      %856 = vmatprep.mubr.bf16.mxu0 0
      %857 = vmatmul.mubr.bf16.gmra.mxu0 %v794
      %v858 = vpop.f32.mrf.mxu0
      %v859 = vadd.f32 0.0, %v858
      %v860 = vpop.f32.mrf.mxu0
      %v861 = vpop.f32.mrf.mxu0
      %v862 = vadd.f32 0.0, %v861
      %v863 = vpop.f32.mrf.mxu0
      %864 = vdwg.mxu0
      %s865 = scalar_lea.vmem %s3, 8
      %v866 = vld [vmem:[%s865] sm:$0xf]
      %v867 = vld [vmem:[%s865 + $0x4] sm:$0x3]
      %v870 = vunpack.c.l.b16 %v866
      %v871 = vunpack.c.l.b16 %v867
      %v872 = vpack.c.b16 %v871, %v870
      %v874 = vsel %vm796, %v872, 0
      %876 = vmatprep.subr.bf16.mxu0 0
      %877 = vmatpush1.bf16.msra.mxu0 0
      %878 = vmatprep.subr.bf16.mxu0 0
      %879 = vmatpush1.bf16.msra.mxu0 0
      %880 = vmatprep.subr.bf16.mxu0 0
      %881 = vmatpush1.bf16.msra.mxu0 0
      %882 = vmatprep.subr.bf16.mxu0 0
      %883 = vmatpush1.bf16.msra.mxu0 0
      %884 = vmatprep.subr.bf16.mxu0 0
      %885 = vmatpush1.bf16.msra.mxu0 0
      %886 = vmatprep.subr.bf16.mxu0 0
      %887 = vmatpush1.bf16.msra.mxu0 0
      %888 = vmatprep.subr.bf16.mxu0 0
      %889 = vmatpush1.bf16.msra.mxu0 0
      %890 = vmatprep.subr.bf16.mxu0 0
      %891 = vmatpush1.bf16.msra.mxu0 %v874
      %892 = vmatprep.subr.bf16.mxu0 0
      %893 = vmatpush2.bf16.msra.mxu0 0
      %894 = vmatprep.subr.bf16.mxu0 0
      %895 = vmatpush2.bf16.msra.mxu0 0
      %896 = vmatprep.subr.bf16.mxu0 0
      %897 = vmatpush2.bf16.msra.mxu0 0
      %898 = vmatprep.subr.bf16.mxu0 0
      %899 = vmatpush2.bf16.msra.mxu0 0
      %900 = vmatprep.subr.bf16.mxu0 0
      %901 = vmatpush2.bf16.msra.mxu0 0
      %902 = vmatprep.subr.bf16.mxu0 0
      %903 = vmatpush2.bf16.msra.mxu0 0
      %904 = vmatprep.subr.bf16.mxu0 0
      %905 = vmatpush2.bf16.msra.mxu0 0
      %906 = vmatprep.subr.bf16.mxu0 0
      %907 = vmatpush2.bf16.msra.mxu0 0
      %908 = vmatprep.mubr.bf16.mxu0 0
      %909 = vmatmul.mubr.bf16.gmra.mxu0 %v785
      %v910 = vpop.f32.mrf.mxu0
      %v911 = vadd.f32 0.0, %v910
      %v912 = vpop.f32.mrf.mxu0
      %v913 = vpop.f32.mrf.mxu0
      %v914 = vadd.f32 0.0, %v913
      %v915 = vpop.f32.mrf.mxu0
      %916 = vmatprep.mubr.bf16.mxu0 0
      %917 = vmatmul.mubr.bf16.gmra.mxu0 %v788
      %v918 = vpop.f32.mrf.mxu0
      %v919 = vadd.f32 0.0, %v918
      %v920 = vpop.f32.mrf.mxu0
      %v921 = vpop.f32.mrf.mxu0
      %v922 = vadd.f32 0.0, %v921
      %v923 = vpop.f32.mrf.mxu0
      %924 = vmatprep.mubr.bf16.mxu0 0
      %925 = vmatmul.mubr.bf16.gmra.mxu0 %v791
      %v926 = vpop.f32.mrf.mxu0
      %v927 = vadd.f32 0.0, %v926
      %v928 = vpop.f32.mrf.mxu0
      %v929 = vpop.f32.mrf.mxu0
      %v930 = vadd.f32 0.0, %v929
      %v931 = vpop.f32.mrf.mxu0
      %932 = vmatprep.mubr.bf16.mxu0 0
      %933 = vmatmul.mubr.bf16.gmra.mxu0 %v794
      %v934 = vpop.f32.mrf.mxu0
      %v935 = vadd.f32 0.0, %v934
      %v936 = vpop.f32.mrf.mxu0
      %v937 = vpop.f32.mrf.mxu0
      %v938 = vadd.f32 0.0, %v937
      %v939 = vpop.f32.mrf.mxu0
      %940 = vdwg.mxu0
      %s941 = scalar_lea.vmem %s3, 16
      %v942 = vld [vmem:[%s941] sm:$0xf]
      %v943 = vld [vmem:[%s941 + $0x4] sm:$0x3]
      %v946 = vunpack.c.l.b16 %v942
      %v947 = vunpack.c.l.b16 %v943
      %v948 = vpack.c.b16 %v947, %v946
      %v950 = vsel %vm796, %v948, 0
      %952 = vmatprep.subr.bf16.mxu0 0
      %953 = vmatpush1.bf16.msra.mxu0 0
      %954 = vmatprep.subr.bf16.mxu0 0
      %955 = vmatpush1.bf16.msra.mxu0 0
      %956 = vmatprep.subr.bf16.mxu0 0
      %957 = vmatpush1.bf16.msra.mxu0 0
      %958 = vmatprep.subr.bf16.mxu0 0
      %959 = vmatpush1.bf16.msra.mxu0 0
      %960 = vmatprep.subr.bf16.mxu0 0
      %961 = vmatpush1.bf16.msra.mxu0 0
      %962 = vmatprep.subr.bf16.mxu0 0
      %963 = vmatpush1.bf16.msra.mxu0 0
      %964 = vmatprep.subr.bf16.mxu0 0
      %965 = vmatpush1.bf16.msra.mxu0 0
      %966 = vmatprep.subr.bf16.mxu0 0
      %967 = vmatpush1.bf16.msra.mxu0 %v950
      %968 = vmatprep.subr.bf16.mxu0 0
      %969 = vmatpush2.bf16.msra.mxu0 0
      %970 = vmatprep.subr.bf16.mxu0 0
      %971 = vmatpush2.bf16.msra.mxu0 0
      %972 = vmatprep.subr.bf16.mxu0 0
      %973 = vmatpush2.bf16.msra.mxu0 0
      %974 = vmatprep.subr.bf16.mxu0 0
      %975 = vmatpush2.bf16.msra.mxu0 0
      %976 = vmatprep.subr.bf16.mxu0 0
      %977 = vmatpush2.bf16.msra.mxu0 0
      %978 = vmatprep.subr.bf16.mxu0 0
      %979 = vmatpush2.bf16.msra.mxu0 0
      %980 = vmatprep.subr.bf16.mxu0 0
      %981 = vmatpush2.bf16.msra.mxu0 0
      %982 = vmatprep.subr.bf16.mxu0 0
      %983 = vmatpush2.bf16.msra.mxu0 0
      %984 = vmatprep.mubr.bf16.mxu0 0
      %985 = vmatmul.mubr.bf16.gmra.mxu0 %v785
      %v986 = vpop.f32.mrf.mxu0
      %v987 = vadd.f32 0.0, %v986
      %v988 = vpop.f32.mrf.mxu0
      %v989 = vpop.f32.mrf.mxu0
      %v990 = vadd.f32 0.0, %v989
      %v991 = vpop.f32.mrf.mxu0
      %992 = vmatprep.mubr.bf16.mxu0 0
      %993 = vmatmul.mubr.bf16.gmra.mxu0 %v788
      %v994 = vpop.f32.mrf.mxu0
      %v995 = vadd.f32 0.0, %v994
      %v996 = vpop.f32.mrf.mxu0
      %v997 = vpop.f32.mrf.mxu0
      %v998 = vadd.f32 0.0, %v997
      %v999 = vpop.f32.mrf.mxu0
      %1000 = vmatprep.mubr.bf16.mxu0 0
      %1001 = vmatmul.mubr.bf16.gmra.mxu0 %v791
      %v1002 = vpop.f32.mrf.mxu0
      %v1003 = vadd.f32 0.0, %v1002
      %v1004 = vpop.f32.mrf.mxu0
      %v1005 = vpop.f32.mrf.mxu0
      %v1006 = vadd.f32 0.0, %v1005
      %v1007 = vpop.f32.mrf.mxu0
      %1008 = vmatprep.mubr.bf16.mxu0 0
      %1009 = vmatmul.mubr.bf16.gmra.mxu0 %v794
      %v1010 = vpop.f32.mrf.mxu0
      %v1011 = vadd.f32 0.0, %v1010
      %v1012 = vpop.f32.mrf.mxu0
      %v1013 = vpop.f32.mrf.mxu0
      %v1014 = vadd.f32 0.0, %v1013
      %v1015 = vpop.f32.mrf.mxu0
      %1016 = vdwg.mxu0
      %v1025 = vrot.slane %v835, 7
      %v1026 = vrot.slane %v838, 7
      %v1027 = vrot.slane %v843, 7
      %v1028 = vrot.slane %v846, 7
      %v1029 = vrot.slane %v851, 7
      %v1030 = vrot.slane %v854, 7
      %v1031 = vrot.slane %v859, 7
      %v1032 = vrot.slane %v862, 7
      %vm1041 = vcmask 1040384
      %v1042 = vsel %vm1041, %v1025, %v1025
      %v1043 = vsel %vm1041, %v1026, %v1026
      %v1044 = vsel %vm1041, %v1027, %v1027
      %v1045 = vsel %vm1041, %v1028, %v1028
      %v1046 = vsel %vm1041, %v1029, %v1029
      %v1047 = vsel %vm1041, %v1030, %v1030
      %v1048 = vsel %vm1041, %v1031, %v1031
      %v1049 = vsel %vm1041, %v1032, %v1032
      %v1050 = vadd.f32 %v1042, %v911
      %v1051 = vadd.f32 %v1043, %v914
      %v1052 = vadd.f32 %v1044, %v919
      %v1053 = vadd.f32 %v1045, %v922
      %v1054 = vadd.f32 %v1046, %v927
      %v1055 = vadd.f32 %v1047, %v930
      %v1056 = vadd.f32 %v1048, %v935
      %v1057 = vadd.f32 %v1049, %v938
      %v1066 = vrot.slane %v987, 1
      %v1067 = vrot.slane %v990, 1
      %v1068 = vrot.slane %v995, 1
      %v1069 = vrot.slane %v998, 1
      %v1070 = vrot.slane %v1003, 1
      %v1071 = vrot.slane %v1006, 1
      %v1072 = vrot.slane %v1011, 1
      %v1073 = vrot.slane %v1014, 1
      %vm1082 = vcmask 1046528
      %v1083 = vsel %vm1082, %v1066, %v1066
      %v1084 = vsel %vm1082, %v1067, %v1067
      %v1085 = vsel %vm1082, %v1068, %v1068
      %v1086 = vsel %vm1082, %v1069, %v1069
      %v1087 = vsel %vm1082, %v1070, %v1070
      %v1088 = vsel %vm1082, %v1071, %v1071
      %v1089 = vsel %vm1082, %v1072, %v1072
      %v1090 = vsel %vm1082, %v1073, %v1073
      %v1091 = vadd.f32 %v1050, %v1083
      %v1092 = vadd.f32 %v1051, %v1084
      %v1093 = vadd.f32 %v1052, %v1085
      %v1094 = vadd.f32 %v1053, %v1086
      %v1095 = vadd.f32 %v1054, %v1087
      %v1096 = vadd.f32 %v1055, %v1088
      %v1097 = vadd.f32 %v1056, %v1089
      %v1098 = vadd.f32 %v1057, %v1090
      %v1099 = vpack.c.bf16 %v1091, %v1091
      %v1100 = vpack.c.bf16 %v1092, %v1092
      %v1101 = vpack.c.bf16 %v1093, %v1093
      %v1102 = vpack.c.bf16 %v1094, %v1094
      %v1103 = vpack.c.bf16 %v1095, %v1095
      %v1104 = vpack.c.bf16 %v1096, %v1096
      %v1105 = vpack.c.bf16 %v1097, %v1097
      %v1106 = vpack.c.bf16 %v1098, %v1098
      %vm1107 = vcmask 60416
      %1108 = vst.msk [vmem:[%s536] sm:$0xf] %vm1107, %v1099
      %1109 = vst.msk [vmem:[%s536 + $0x4] sm:$0xf] %vm1107, %v1100
      %1110 = vst.msk [vmem:[%s536 + $0x8] sm:$0xf] %vm1107, %v1101
      %1111 = vst.msk [vmem:[%s536 + $0xc] sm:$0xf] %vm1107, %v1102
      %1112 = vst.msk [vmem:[%s536 + $0x10] sm:$0xf] %vm1107, %v1103
      %1113 = vst.msk [vmem:[%s536 + $0x14] sm:$0xf] %vm1107, %v1104
      %1114 = vst.msk [vmem:[%s536 + $0x18] sm:$0xf] %vm1107, %v1105
      %1115 = vst.msk [vmem:[%s536 + $0x1c] sm:$0xf] %vm1107, %v1106
      %v1116 = vsel %vm763, %v1091, 0.0
      %v1117 = vsel %vm763, %v1092, 0.0
      %v1118 = vadd.f32 %v1116, %v1117
      %v1119 = vsel %vm763, %v1093, 0.0
      %v1120 = vadd.f32 %v1118, %v1119
      %v1121 = vsel %vm763, %v1094, 0.0
      %v1122 = vadd.f32 %v1120, %v1121
      %v1123 = vsel %vm763, %v1095, 0.0
      %v1124 = vadd.f32 %v1122, %v1123
      %v1125 = vsel %vm763, %v1096, 0.0
      %v1126 = vadd.f32 %v1124, %v1125
      %v1127 = vsel %vm763, %v1097, 0.0
      %v1128 = vadd.f32 %v1126, %v1127
      %v1129 = vsel %vm763, %v1098, 0.0
      %v1130 = vadd.f32 %v1128, %v1129
      %v1131 = vrot.slane %v1130, 4
      %v1132 = vadd.f32 %v1130, %v1131
      %v1133 = vrot.slane %v1132, 2
      %v1134 = vadd.f32 %v1132, %v1133
      %v1135 = vrot.slane %v1134, 1
      %v1136 = vadd.f32 %v1134, %v1135
      %v1137 = vmul.f32 %v1091, %v1091
      %v1138 = vmul.f32 %v1092, %v1092
      %v1139 = vmul.f32 %v1093, %v1093
      %v1140 = vmul.f32 %v1094, %v1094
      %v1141 = vmul.f32 %v1095, %v1095
      %v1142 = vmul.f32 %v1096, %v1096
      %v1143 = vmul.f32 %v1097, %v1097
      %v1144 = vmul.f32 %v1098, %v1098
      %v1145 = vsel %vm763, %v1137, 0.0
      %v1146 = vsel %vm763, %v1138, 0.0
      %v1147 = vadd.f32 %v1145, %v1146
      %v1148 = vsel %vm763, %v1139, 0.0
      %v1149 = vadd.f32 %v1147, %v1148
      %v1150 = vsel %vm763, %v1140, 0.0
      %v1151 = vadd.f32 %v1149, %v1150
      %v1152 = vsel %vm763, %v1141, 0.0
      %v1153 = vadd.f32 %v1151, %v1152
      %v1154 = vsel %vm763, %v1142, 0.0
      %v1155 = vadd.f32 %v1153, %v1154
      %v1156 = vsel %vm763, %v1143, 0.0
      %v1157 = vadd.f32 %v1155, %v1156
      %v1158 = vsel %vm763, %v1144, 0.0
      %v1159 = vadd.f32 %v1157, %v1158
      %v1160 = vrot.slane %v1159, 4
      %v1161 = vadd.f32 %v1159, %v1160
      %v1162 = vrot.slane %v1161, 2
      %v1163 = vadd.f32 %v1161, %v1162
      %v1164 = vrot.slane %v1163, 1
      %v1165 = vadd.f32 %v1163, %v1164
      %v1166 = vsel %vm1041, %v1136, %v1165
      %vm1167 = vcmask 58368
      %1168 = vst.msk [vmem:[%s545] sm:$0x3] %vm1167, %v1166
      %s1169 = sadd.s32 %s21, %s22
      %s1170 = smul.u32 8, %s1169
      %p1171 = scmp.lt.s32.totalorder %s1170, 15
      %s1172 = scalar_select %p1171, %s1170, 15
      %s1173 = smul.addr %s1172, 4
      %s1174 = scalar_lea.vmem %s4, %s1173
      %p1175 = scmp.lt.s32.totalorder %s21, 1
      %s1176 = scalar_select %p1175, %s21, 1
      %p1177 = scmp.lt.s32.totalorder %s22, 0
      %s1178 = scalar_select %p1177, %s22, 0
      %s1179 = sadd.s32 %s1178, %s1176
      %s1180 = smul.addr %s1179, 2
      %s1181 = scalar_lea.vmem %s5, %s1180
      // Predicated region
      $region37: #{down_forward.3} parent=35 // pred_check
        %p1182 = pneg %p210
      $region38: #{down_forward.3} parent=35 // pred_check_branch
        %1184 = sbr.rel (%p1182) target = $region40
      $region39: #{down_forward.3} parent=35 // pred_region
        %s1185 = sadd.s32 %s21, %s22
        %s1186 = smul.u32 8, %s1185
      $region40: #{down_forward.3} parent=35 // pred_fallthru
        _
      // Predicated region
      $region41: #{down_forward.3} parent=35 // pred_check
        %p1187 = pneg %p238
      $region42: #{down_forward.3} parent=35 // pred_check_branch
        %1189 = sbr.rel (%p1187) target = $region44
      $region43: #{down_forward.3} parent=35 // pred_region
        _
      $region44: #{down_forward.3} parent=35 // pred_fallthru
        _
    $region36: #{down_forward.3} parent=5 // pred_fallthru
      _
    %p1190 = scmp.le.s32.totalorder 2, %s12
    // Predicated region
    $region45: #{down_forward.3} parent=5 // pred_check
      %p1191 = pneg %p1190
    $region46: #{down_forward.3} parent=5 // pred_check_branch
      %1193 = sbr.rel (%p1191) target = $region48
    $region47: #{down_forward.3} parent=5 // pred_region
      %s1194 = ssub.s32 %s12, 2
      // Predicated region
      $region49: #{down_forward.3} parent=47 // pred_check
        %p1195 = pneg %p216
      $region50: #{down_forward.3} parent=47 // pred_check_branch
        %1197 = sbr.rel (%p1195) target = $region52
      $region51: #{down_forward.3} parent=47 // pred_region
        %s1198 = sadd.s32 %s23, %s24
        %s1199 = smul.u32 8, %s1198
        %p1200 = scmp.lt.s32.totalorder %s1199, 15
        %s1201 = scalar_select %p1200, %s1199, 15
        %s1202 = smul.addr %s1201, 4
        %s1203 = scalar_lea.vmem %s4, %s1202
      $region52: #{down_forward.3} parent=47 // pred_fallthru
        _
      // Predicated region
      $region53: #{down_forward.3} parent=47 // pred_check
        %p1204 = pneg %p244
      $region54: #{down_forward.3} parent=47 // pred_check_branch
        %1206 = sbr.rel (%p1204) target = $region56
      $region55: #{down_forward.3} parent=47 // pred_region
        %p1207 = scmp.lt.s32.totalorder %s23, 1
        %s1208 = scalar_select %p1207, %s23, 1
        %p1209 = scmp.lt.s32.totalorder %s24, 0
        %s1210 = scalar_select %p1209, %s24, 0
        %s1211 = sadd.s32 %s1210, %s1208
        %s1212 = smul.addr %s1211, 2
        %s1213 = scalar_lea.vmem %s5, %s1212
      $region56: #{down_forward.3} parent=47 // pred_fallthru
        _
    $region48: #{down_forward.3} parent=5 // pred_fallthru
      _
  $region6: #{down_forward.3} parent=0 // loop_footer
    %s16 = sadd.s32 1, %s12
  $region7: #{down_forward.3} parent=0 // loop_footer_branch
    %11 = sbr.rel target = $region3
  $region8: #{down_forward.3} parent=0 // loop_exit
    _

</llo_original>
